<compile_context>
chip_gen: v5e
topology: v5e:2x2
jax: 0.10.0
libtpu: 0.0.40
codegen_flags: <defaults>
</compile_context>

<pallas_src>
import jax
import jax.numpy as jnp
from jax import lax
from jax.experimental import pallas as pl
from jax.experimental.pallas import tpu as pltpu  # noqa: F401  (TPU backend assumed)

N_EMBED = 32
BLOCK_SIZE = 32
N_HEAD = 4
N_LAYER = 4
HEAD_SIZE = N_EMBED // N_HEAD
LN_EPS = 1e-5

PARAMS_PER_BLOCK = 11  # ln1w, ln1b, wqkv, projw, projb, ln2w, ln2b, w1, b1, w2, b2


def _layernorm(x, w, b):
    mu = jnp.mean(x, axis=-1, keepdims=True)
    var = jnp.mean((x - mu) ** 2, axis=-1, keepdims=True)
    return (x - mu) * lax.rsqrt(var + LN_EPS) * w + b


# ---------------------------------------------------------------------------
# Fused kernel: 4 x (x + MHA(LN1(x)); x + FFN(LN2(x)))  ->  LN_f  ->  lm_head
# Single invocation (no grid); everything resident in VMEM.
# ---------------------------------------------------------------------------
def fused_forward_kernel(x_ref, mask_ref, *refs):
    out_ref = refs[-1]
    prefs = refs[:-1]

    B, T, C = x_ref.shape
    BT = B * T
    Vp = out_ref.shape[-1]            # padded vocab (multiple of 128)

    x = x_ref[...].reshape(BT, C)     # leading-dim merge; lane layout unchanged

    # Block-causal mask (same-batch AND causal), built once in the wrapper and
    # reused across all layers / heads.
    keep = mask_ref[...] != 0.0       # (BT, BT) bool

    # NOTE: reference scales by C ** -0.5 with C = n_embed (not head_size).
    scale = 1.0 / jnp.sqrt(jnp.float32(N_EMBED))

    i = 0
    for _ in range(N_LAYER):
        (ln1w, ln1b, wqkv, projw, projb,
         ln2w, ln2b, w1, b1, w2, b2) = prefs[i:i + PARAMS_PER_BLOCK]
        i += PARAMS_PER_BLOCK

        # --- multi-head self-attention on LN1(x) ---
        xn = _layernorm(x, ln1w[...], ln1b[...])                      # (BT, C)
        qkv = jnp.dot(xn, wqkv[...],
                      preferred_element_type=jnp.float32)             # (BT, 3C)
        projw_v = projw[...]
        sa = jnp.zeros((BT, C), jnp.float32)
        for h in range(N_HEAD):
            lo = h * HEAD_SIZE
            hi = (h + 1) * HEAD_SIZE
            q = qkv[:, lo:hi]
            k = qkv[:, C + lo:C + hi]
            v = qkv[:, 2 * C + lo:2 * C + hi]
            wei = jnp.dot(q, k.T, preferred_element_type=jnp.float32) * scale
            wei = jnp.where(keep, wei, -jnp.inf)
            wei = wei - jnp.max(wei, axis=-1, keepdims=True)
            p = jnp.exp(wei)
            # Exact reciprocal (approx=True would loosen the 1e-4 check).
            p = p * pl.reciprocal(jnp.sum(p, axis=-1, keepdims=True), approx=False)
            # TODO(synk): attention dropout omitted (eval-mode identity)
            oh = jnp.dot(p, v, preferred_element_type=jnp.float32)    # (BT, D)
            # Fold the head-concat into the output projection:
            #   concat_h(oh) @ Wproj == sum_h oh @ Wproj[h*D:(h+1)*D, :]
            sa = sa + jnp.dot(oh, projw_v[lo:hi, :],
                              preferred_element_type=jnp.float32)
        x = x + sa + projb[...]                                       # residual 1

        # --- feed-forward on LN2(x) ---
        xn2 = _layernorm(x, ln2w[...], ln2b[...])
        h1 = jnp.dot(xn2, w1[...], preferred_element_type=jnp.float32) + b1[...]
        h1 = jnp.maximum(h1, 0.0)
        x = x + jnp.dot(h1, w2[...], preferred_element_type=jnp.float32) + b2[...]

    # --- final LayerNorm + lm_head (output padded to 128 lanes) ---
    lnf_w, lnf_b, lm_w, lm_b = prefs[i:i + 4]
    xn = _layernorm(x, lnf_w[...], lnf_b[...])
    logits = jnp.dot(xn, lm_w[...], preferred_element_type=jnp.float32) + lm_b[...]
    out_ref[...] = logits.reshape(B, T, Vp)


def _pad_lanes(a, to):
    pad = to - a.shape[-1]
    if pad == 0:
        return a
    return jnp.pad(a, [(0, 0)] * (a.ndim - 1) + [(0, pad)])


def bigram_lm_forward(idx, params):
    """Fused Pallas forward: idx (B, T) int32 -> logits (B, T, vocab_size)."""
    B, T = idx.shape
    assert T <= BLOCK_SIZE, "sequence length exceeds block_size"

    # TODO(synk): embedding gather is data-dependent per token; done as plain
    # JAX glue rather than a Pallas kernel at this scale.
    x = (params["tok_emb"][idx] + params["pos_emb"][:T][None, :, :]).astype(jnp.float32)

    vocab = params["lm_w"].shape[1]
    vocab_pad = max(128, ((vocab + 127) // 128) * 128)

    # Block-causal mask over flattened (B*T) rows: same batch AND col <= row.
    BT = B * T
    r = jnp.arange(BT)[:, None]
    c = jnp.arange(BT)[None, :]
    mask = ((r // T == c // T) & (r >= c)).astype(jnp.float32)        # (BT, BT)

    flat_params = []
    for (ln1w, ln1b, wq, wk, wv, pw, pb, ln2w, ln2b, w1, b1, w2, b2) in params["blocks"]:
        wqkv = jnp.concatenate([wq, wk, wv], axis=1)                  # (C, 3C) slab
        flat_params += [ln1w, ln1b, wqkv, pw, pb, ln2w, ln2b, w1, b1, w2, b2]
    flat_params += [params["lnf_w"], params["lnf_b"],
                    _pad_lanes(params["lm_w"], vocab_pad),
                    _pad_lanes(params["lm_b"], vocab_pad)]

    logits_pad = pl.pallas_call(
        fused_forward_kernel,
        out_shape=jax.ShapeDtypeStruct((B, T, vocab_pad), jnp.float32),
    )(x, mask, *flat_params)

    return logits_pad[..., :vocab]


# ---------------------------------------------------------------------------
# Parameter init (deterministic, synthetic)
# ---------------------------------------------------------------------------
def init_params(key, vocab_size):
    keys = iter(jax.random.split(key, 64))
    std = 0.02
    nrm = lambda shape: (std * jax.random.normal(next(keys), shape)).astype(jnp.float32)

    params = {
        "tok_emb": nrm((vocab_size, N_EMBED)),
        "pos_emb": nrm((BLOCK_SIZE, N_EMBED)),
        "blocks": [],
        "lnf_w": jnp.ones((1, N_EMBED), jnp.float32),
        "lnf_b": jnp.zeros((1, N_EMBED), jnp.float32),
        "lm_w": nrm((N_EMBED, vocab_size)),
        "lm_b": jnp.zeros((1, vocab_size), jnp.float32),
    }
    for _ in range(N_LAYER):
        blk = [
            jnp.ones((1, N_EMBED), jnp.float32),    # ln1 w
            jnp.zeros((1, N_EMBED), jnp.float32),   # ln1 b
            nrm((N_EMBED, N_EMBED)),                # Wq (all heads, concat on out dim)
            nrm((N_EMBED, N_EMBED)),                # Wk
            nrm((N_EMBED, N_EMBED)),                # Wv
            nrm((N_EMBED, N_EMBED)),                # proj w
            jnp.zeros((1, N_EMBED), jnp.float32),   # proj b
            jnp.ones((1, N_EMBED), jnp.float32),    # ln2 w
            jnp.zeros((1, N_EMBED), jnp.float32),   # ln2 b
            nrm((N_EMBED, 4 * N_EMBED)),            # ff w1
            jnp.zeros((1, 4 * N_EMBED), jnp.float32),
            nrm((4 * N_EMBED, N_EMBED)),            # ff w2
            jnp.zeros((1, N_EMBED), jnp.float32),
        ]
        params["blocks"].append(blk)
    return params


# ---------------------------------------------------------------------------
# Pure-JAX reference (mirrors PyTorch semantics) for verification
# ---------------------------------------------------------------------------
def reference_forward(idx, params):
    B, T = idx.shape
    x = params["tok_emb"][idx] + params["pos_emb"][:T][None, :, :]
    row = jnp.arange(T)[:, None]
    col = jnp.arange(T)[None, :]
    causal = row >= col
    scale = 1.0 / jnp.sqrt(jnp.float32(N_EMBED))
    for (ln1w, ln1b, wq, wk, wv, pw, pb, ln2w, ln2b, w1, b1, w2, b2) in params["blocks"]:
        xn = _layernorm(x, ln1w, ln1b)
        outs = []
        for h in range(N_HEAD):
            sl = slice(h * HEAD_SIZE, (h + 1) * HEAD_SIZE)
            q = xn @ wq[:, sl]
            k = xn @ wk[:, sl]
            v = xn @ wv[:, sl]
            wei = jnp.einsum("btd,bsd->bts", q, k) * scale
            wei = jnp.where(causal[None], wei, -jnp.inf)
            wei = jax.nn.softmax(wei, axis=-1)
            outs.append(jnp.einsum("bts,bsd->btd", wei, v))
        sa = jnp.concatenate(outs, axis=-1) @ pw + pb
        x = x + sa
        xn2 = _layernorm(x, ln2w, ln2b)
        x = x + jnp.maximum(xn2 @ w1 + b1, 0.0) @ w2 + b2
    xn = _layernorm(x, params["lnf_w"], params["lnf_b"])
    return xn @ params["lm_w"] + params["lm_b"]


if __name__ == "__main__":
    VOCAB = 65   # shakespeare char vocab
    B, T = 2, 8

    key = jax.random.PRNGKey(0)
    k_param, k_idx = jax.random.split(key)
    params = init_params(k_param, VOCAB)
    idx = jax.random.randint(k_idx, (B, T), 0, VOCAB, dtype=jnp.int32)

    logits = jax.block_until_ready(bigram_lm_forward(idx, params))
    assert logits.shape == (B, T, VOCAB)

    ref = jax.block_until_ready(reference_forward(idx, params))
    assert jnp.allclose(logits, ref, atol=1e-4, rtol=1e-4), (
        float(jnp.max(jnp.abs(logits - ref))))

    print("KERNEL_OK")
</pallas_src>

<mosaic_0001>
module attributes {stable_mosaic.version = 11 : i64} {
  func.func @fused_forward_kernel(%arg0: memref<2x8x32xf32, #tpu.memory_space<vmem>>, %arg1: memref<16x16xf32, #tpu.memory_space<vmem>>, %arg2: memref<1x32xf32, #tpu.memory_space<vmem>>, %arg3: memref<1x32xf32, #tpu.memory_space<vmem>>, %arg4: memref<32x96xf32, #tpu.memory_space<vmem>>, %arg5: memref<32x32xf32, #tpu.memory_space<vmem>>, %arg6: memref<1x32xf32, #tpu.memory_space<vmem>>, %arg7: memref<1x32xf32, #tpu.memory_space<vmem>>, %arg8: memref<1x32xf32, #tpu.memory_space<vmem>>, %arg9: memref<32x128xf32, #tpu.memory_space<vmem>>, %arg10: memref<1x128xf32, #tpu.memory_space<vmem>>, %arg11: memref<128x32xf32, #tpu.memory_space<vmem>>, %arg12: memref<1x32xf32, #tpu.memory_space<vmem>>, %arg13: memref<1x32xf32, #tpu.memory_space<vmem>>, %arg14: memref<1x32xf32, #tpu.memory_space<vmem>>, %arg15: memref<32x96xf32, #tpu.memory_space<vmem>>, %arg16: memref<32x32xf32, #tpu.memory_space<vmem>>, %arg17: memref<1x32xf32, #tpu.memory_space<vmem>>, %arg18: memref<1x32xf32, #tpu.memory_space<vmem>>, %arg19: memref<1x32xf32, #tpu.memory_space<vmem>>, %arg20: memref<32x128xf32, #tpu.memory_space<vmem>>, %arg21: memref<1x128xf32, #tpu.memory_space<vmem>>, %arg22: memref<128x32xf32, #tpu.memory_space<vmem>>, %arg23: memref<1x32xf32, #tpu.memory_space<vmem>>, %arg24: memref<1x32xf32, #tpu.memory_space<vmem>>, %arg25: memref<1x32xf32, #tpu.memory_space<vmem>>, %arg26: memref<32x96xf32, #tpu.memory_space<vmem>>, %arg27: memref<32x32xf32, #tpu.memory_space<vmem>>, %arg28: memref<1x32xf32, #tpu.memory_space<vmem>>, %arg29: memref<1x32xf32, #tpu.memory_space<vmem>>, %arg30: memref<1x32xf32, #tpu.memory_space<vmem>>, %arg31: memref<32x128xf32, #tpu.memory_space<vmem>>, %arg32: memref<1x128xf32, #tpu.memory_space<vmem>>, %arg33: memref<128x32xf32, #tpu.memory_space<vmem>>, %arg34: memref<1x32xf32, #tpu.memory_space<vmem>>, %arg35: memref<1x32xf32, #tpu.memory_space<vmem>>, %arg36: memref<1x32xf32, #tpu.memory_space<vmem>>, %arg37: memref<32x96xf32, #tpu.memory_space<vmem>>, %arg38: memref<32x32xf32, #tpu.memory_space<vmem>>, %arg39: memref<1x32xf32, #tpu.memory_space<vmem>>, %arg40: memref<1x32xf32, #tpu.memory_space<vmem>>, %arg41: memref<1x32xf32, #tpu.memory_space<vmem>>, %arg42: memref<32x128xf32, #tpu.memory_space<vmem>>, %arg43: memref<1x128xf32, #tpu.memory_space<vmem>>, %arg44: memref<128x32xf32, #tpu.memory_space<vmem>>, %arg45: memref<1x32xf32, #tpu.memory_space<vmem>>, %arg46: memref<1x32xf32, #tpu.memory_space<vmem>>, %arg47: memref<1x32xf32, #tpu.memory_space<vmem>>, %arg48: memref<32x128xf32, #tpu.memory_space<vmem>>, %arg49: memref<1x128xf32, #tpu.memory_space<vmem>>, %arg50: memref<2x8x128xf32, #tpu.memory_space<vmem>>) attributes {dimension_semantics = [], scalar_prefetch = 0 : i64, scratch_operands = 0 : i64, tpu.core_type = #tpu.core_type<tc>} {
    %c0 = arith.constant 0 : index
    %c0_0 = arith.constant 0 : index
    %c0_1 = arith.constant 0 : index
    %0 = vector.load %arg0[%c0, %c0_0, %c0_1] : memref<2x8x32xf32, #tpu.memory_space<vmem>>, vector<2x8x32xf32>
    %1 = vector.shape_cast %0 : vector<2x8x32xf32> to vector<16x32xf32>
    %c0_2 = arith.constant 0 : index
    %c0_3 = arith.constant 0 : index
    %2 = vector.load %arg1[%c0_2, %c0_3] : memref<16x16xf32, #tpu.memory_space<vmem>>, vector<16x16xf32>
    %cst = arith.constant 0.000000e+00 : f32
    %3 = vector.broadcast %cst : f32 to vector<16x16xf32>
    %4 = arith.cmpf one, %2, %3 : vector<16x16xf32>
    %cst_4 = arith.constant 3.200000e+01 : f32
    %5 = math.sqrt %cst_4 : f32
    %cst_5 = arith.constant 1.000000e+00 : f32
    %6 = arith.divf %cst_5, %5 : f32
    %c0_6 = arith.constant 0 : index
    %c0_7 = arith.constant 0 : index
    %7 = vector.load %arg2[%c0_6, %c0_7] : memref<1x32xf32, #tpu.memory_space<vmem>>, vector<1x32xf32>
    %c0_8 = arith.constant 0 : index
    %c0_9 = arith.constant 0 : index
    %8 = vector.load %arg3[%c0_8, %c0_9] : memref<1x32xf32, #tpu.memory_space<vmem>>, vector<1x32xf32>
    %cst_10 = arith.constant dense<0.000000e+00> : vector<16xf32>
    %9 = vector.multi_reduction <add>, %1, %cst_10 [1] : vector<16x32xf32> to vector<16xf32>
    %10 = vector.shape_cast %9 : vector<16xf32> to vector<16x1xf32>
    %cst_11 = arith.constant 3.200000e+01 : f32
    %11 = vector.broadcast %cst_11 : f32 to vector<16x1xf32>
    %12 = arith.divf %10, %11 : vector<16x1xf32>
    %13 = vector.broadcast %12 : vector<16x1xf32> to vector<16x32xf32>
    %14 = arith.subf %1, %13 : vector<16x32xf32>
    %15 = arith.mulf %14, %14 : vector<16x32xf32>
    %cst_12 = arith.constant dense<0.000000e+00> : vector<16xf32>
    %16 = vector.multi_reduction <add>, %15, %cst_12 [1] : vector<16x32xf32> to vector<16xf32>
    %17 = vector.shape_cast %16 : vector<16xf32> to vector<16x1xf32>
    %cst_13 = arith.constant 3.200000e+01 : f32
    %18 = vector.broadcast %cst_13 : f32 to vector<16x1xf32>
    %19 = arith.divf %17, %18 : vector<16x1xf32>
    %20 = vector.broadcast %12 : vector<16x1xf32> to vector<16x32xf32>
    %21 = arith.subf %1, %20 : vector<16x32xf32>
    %cst_14 = arith.constant 9.99999974E-6 : f32
    %22 = vector.broadcast %cst_14 : f32 to vector<16x1xf32>
    %23 = arith.addf %19, %22 : vector<16x1xf32>
    %24 = math.rsqrt %23 : vector<16x1xf32>
    %25 = vector.broadcast %24 : vector<16x1xf32> to vector<16x32xf32>
    %26 = arith.mulf %21, %25 : vector<16x32xf32>
    %27 = vector.broadcast %7 : vector<1x32xf32> to vector<16x32xf32>
    %28 = arith.mulf %26, %27 : vector<16x32xf32>
    %29 = vector.broadcast %8 : vector<1x32xf32> to vector<16x32xf32>
    %30 = arith.addf %28, %29 : vector<16x32xf32>
    %c0_15 = arith.constant 0 : index
    %c0_16 = arith.constant 0 : index
    %31 = vector.load %arg4[%c0_15, %c0_16] : memref<32x96xf32, #tpu.memory_space<vmem>>, vector<32x96xf32>
    %cst_17 = arith.constant dense<0.000000e+00> : vector<16x96xf32>
    %32 = tpu.matmul %30, %31, %cst_17 {dimension_numbers = #tpu.dot_dimension_numbers<[1], [0], [0], [1], [0, 0, 1, 1], [], []>} : vector<16x32xf32>, vector<32x96xf32>, vector<16x96xf32> -> vector<16x96xf32>
    %c0_18 = arith.constant 0 : index
    %c0_19 = arith.constant 0 : index
    %33 = vector.load %arg5[%c0_18, %c0_19] : memref<32x32xf32, #tpu.memory_space<vmem>>, vector<32x32xf32>
    %cst_20 = arith.constant 0.000000e+00 : f32
    %34 = vector.broadcast %cst_20 : f32 to vector<16x32xf32>
    %35 = vector.extract_strided_slice %32 {offsets = [0, 0], sizes = [16, 8], strides = [1, 1]} : vector<16x96xf32> to vector<16x8xf32>
    %36 = vector.extract_strided_slice %32 {offsets = [0, 32], sizes = [16, 8], strides = [1, 1]} : vector<16x96xf32> to vector<16x8xf32>
    %37 = vector.extract_strided_slice %32 {offsets = [0, 64], sizes = [16, 8], strides = [1, 1]} : vector<16x96xf32> to vector<16x8xf32>
    %38 = tpu.transpose %36, [1, 0] : vector<16x8xf32> -> vector<8x16xf32>
    %cst_21 = arith.constant dense<0.000000e+00> : vector<16x16xf32>
    %39 = tpu.matmul %35, %38, %cst_21 {dimension_numbers = #tpu.dot_dimension_numbers<[1], [0], [0], [1], [0, 0, 1, 1], [], []>} : vector<16x8xf32>, vector<8x16xf32>, vector<16x16xf32> -> vector<16x16xf32>
    %40 = vector.broadcast %6 : f32 to vector<16x16xf32>
    %41 = arith.mulf %39, %40 : vector<16x16xf32>
    %cst_22 = arith.constant 0xFF800000 : f32
    %42 = vector.broadcast %cst_22 : f32 to vector<16x16xf32>
    %43 = arith.select %4, %41, %42 : vector<16x16xi1>, vector<16x16xf32>
    %cst_23 = arith.constant dense<0xFF800000> : vector<16xf32>
    %44 = vector.multi_reduction <maximumf>, %43, %cst_23 [1] : vector<16x16xf32> to vector<16xf32>
    %45 = vector.shape_cast %44 : vector<16xf32> to vector<16x1xf32>
    %46 = vector.broadcast %45 : vector<16x1xf32> to vector<16x16xf32>
    %47 = arith.subf %43, %46 : vector<16x16xf32>
    %48 = math.exp %47 : vector<16x16xf32>
    %cst_24 = arith.constant dense<0.000000e+00> : vector<16xf32>
    %49 = vector.multi_reduction <add>, %48, %cst_24 [1] : vector<16x16xf32> to vector<16xf32>
    %50 = vector.shape_cast %49 : vector<16xf32> to vector<16x1xf32>
    %51 = tpu.reciprocal %50 : vector<16x1xf32> -> vector<16x1xf32>
    %52 = vector.broadcast %51 : vector<16x1xf32> to vector<16x16xf32>
    %53 = arith.mulf %48, %52 : vector<16x16xf32>
    %cst_25 = arith.constant dense<0.000000e+00> : vector<16x8xf32>
    %54 = tpu.matmul %53, %37, %cst_25 {dimension_numbers = #tpu.dot_dimension_numbers<[1], [0], [0], [1], [0, 0, 1, 1], [], []>} : vector<16x16xf32>, vector<16x8xf32>, vector<16x8xf32> -> vector<16x8xf32>
    %55 = vector.extract_strided_slice %33 {offsets = [0, 0], sizes = [8, 32], strides = [1, 1]} : vector<32x32xf32> to vector<8x32xf32>
    %cst_26 = arith.constant dense<0.000000e+00> : vector<16x32xf32>
    %56 = tpu.matmul %54, %55, %cst_26 {dimension_numbers = #tpu.dot_dimension_numbers<[1], [0], [0], [1], [0, 0, 1, 1], [], []>} : vector<16x8xf32>, vector<8x32xf32>, vector<16x32xf32> -> vector<16x32xf32>
    %57 = arith.addf %34, %56 : vector<16x32xf32>
    %58 = vector.extract_strided_slice %32 {offsets = [0, 8], sizes = [16, 8], strides = [1, 1]} : vector<16x96xf32> to vector<16x8xf32>
    %59 = vector.extract_strided_slice %32 {offsets = [0, 40], sizes = [16, 8], strides = [1, 1]} : vector<16x96xf32> to vector<16x8xf32>
    %60 = vector.extract_strided_slice %32 {offsets = [0, 72], sizes = [16, 8], strides = [1, 1]} : vector<16x96xf32> to vector<16x8xf32>
    %61 = tpu.transpose %59, [1, 0] : vector<16x8xf32> -> vector<8x16xf32>
    %cst_27 = arith.constant dense<0.000000e+00> : vector<16x16xf32>
    %62 = tpu.matmul %58, %61, %cst_27 {dimension_numbers = #tpu.dot_dimension_numbers<[1], [0], [0], [1], [0, 0, 1, 1], [], []>} : vector<16x8xf32>, vector<8x16xf32>, vector<16x16xf32> -> vector<16x16xf32>
    %63 = vector.broadcast %6 : f32 to vector<16x16xf32>
    %64 = arith.mulf %62, %63 : vector<16x16xf32>
    %cst_28 = arith.constant 0xFF800000 : f32
    %65 = vector.broadcast %cst_28 : f32 to vector<16x16xf32>
    %66 = arith.select %4, %64, %65 : vector<16x16xi1>, vector<16x16xf32>
    %cst_29 = arith.constant dense<0xFF800000> : vector<16xf32>
    %67 = vector.multi_reduction <maximumf>, %66, %cst_29 [1] : vector<16x16xf32> to vector<16xf32>
    %68 = vector.shape_cast %67 : vector<16xf32> to vector<16x1xf32>
    %69 = vector.broadcast %68 : vector<16x1xf32> to vector<16x16xf32>
    %70 = arith.subf %66, %69 : vector<16x16xf32>
    %71 = math.exp %70 : vector<16x16xf32>
    %cst_30 = arith.constant dense<0.000000e+00> : vector<16xf32>
    %72 = vector.multi_reduction <add>, %71, %cst_30 [1] : vector<16x16xf32> to vector<16xf32>
    %73 = vector.shape_cast %72 : vector<16xf32> to vector<16x1xf32>
    %74 = tpu.reciprocal %73 : vector<16x1xf32> -> vector<16x1xf32>
    %75 = vector.broadcast %74 : vector<16x1xf32> to vector<16x16xf32>
    %76 = arith.mulf %71, %75 : vector<16x16xf32>
    %cst_31 = arith.constant dense<0.000000e+00> : vector<16x8xf32>
    %77 = tpu.matmul %76, %60, %cst_31 {dimension_numbers = #tpu.dot_dimension_numbers<[1], [0], [0], [1], [0, 0, 1, 1], [], []>} : vector<16x16xf32>, vector<16x8xf32>, vector<16x8xf32> -> vector<16x8xf32>
    %78 = vector.extract_strided_slice %33 {offsets = [8, 0], sizes = [8, 32], strides = [1, 1]} : vector<32x32xf32> to vector<8x32xf32>
    %cst_32 = arith.constant dense<0.000000e+00> : vector<16x32xf32>
    %79 = tpu.matmul %77, %78, %cst_32 {dimension_numbers = #tpu.dot_dimension_numbers<[1], [0], [0], [1], [0, 0, 1, 1], [], []>} : vector<16x8xf32>, vector<8x32xf32>, vector<16x32xf32> -> vector<16x32xf32>
    %80 = arith.addf %57, %79 : vector<16x32xf32>
    %81 = vector.extract_strided_slice %32 {offsets = [0, 16], sizes = [16, 8], strides = [1, 1]} : vector<16x96xf32> to vector<16x8xf32>
    %82 = vector.extract_strided_slice %32 {offsets = [0, 48], sizes = [16, 8], strides = [1, 1]} : vector<16x96xf32> to vector<16x8xf32>
    %83 = vector.extract_strided_slice %32 {offsets = [0, 80], sizes = [16, 8], strides = [1, 1]} : vector<16x96xf32> to vector<16x8xf32>
    %84 = tpu.transpose %82, [1, 0] : vector<16x8xf32> -> vector<8x16xf32>
    %cst_33 = arith.constant dense<0.000000e+00> : vector<16x16xf32>
    %85 = tpu.matmul %81, %84, %cst_33 {dimension_numbers = #tpu.dot_dimension_numbers<[1], [0], [0], [1], [0, 0, 1, 1], [], []>} : vector<16x8xf32>, vector<8x16xf32>, vector<16x16xf32> -> vector<16x16xf32>
    %86 = vector.broadcast %6 : f32 to vector<16x16xf32>
    %87 = arith.mulf %85, %86 : vector<16x16xf32>
    %cst_34 = arith.constant 0xFF800000 : f32
    %88 = vector.broadcast %cst_34 : f32 to vector<16x16xf32>
    %89 = arith.select %4, %87, %88 : vector<16x16xi1>, vector<16x16xf32>
    %cst_35 = arith.constant dense<0xFF800000> : vector<16xf32>
    %90 = vector.multi_reduction <maximumf>, %89, %cst_35 [1] : vector<16x16xf32> to vector<16xf32>
    %91 = vector.shape_cast %90 : vector<16xf32> to vector<16x1xf32>
    %92 = vector.broadcast %91 : vector<16x1xf32> to vector<16x16xf32>
    %93 = arith.subf %89, %92 : vector<16x16xf32>
    %94 = math.exp %93 : vector<16x16xf32>
    %cst_36 = arith.constant dense<0.000000e+00> : vector<16xf32>
    %95 = vector.multi_reduction <add>, %94, %cst_36 [1] : vector<16x16xf32> to vector<16xf32>
    %96 = vector.shape_cast %95 : vector<16xf32> to vector<16x1xf32>
    %97 = tpu.reciprocal %96 : vector<16x1xf32> -> vector<16x1xf32>
    %98 = vector.broadcast %97 : vector<16x1xf32> to vector<16x16xf32>
    %99 = arith.mulf %94, %98 : vector<16x16xf32>
    %cst_37 = arith.constant dense<0.000000e+00> : vector<16x8xf32>
    %100 = tpu.matmul %99, %83, %cst_37 {dimension_numbers = #tpu.dot_dimension_numbers<[1], [0], [0], [1], [0, 0, 1, 1], [], []>} : vector<16x16xf32>, vector<16x8xf32>, vector<16x8xf32> -> vector<16x8xf32>
    %101 = vector.extract_strided_slice %33 {offsets = [16, 0], sizes = [8, 32], strides = [1, 1]} : vector<32x32xf32> to vector<8x32xf32>
    %cst_38 = arith.constant dense<0.000000e+00> : vector<16x32xf32>
    %102 = tpu.matmul %100, %101, %cst_38 {dimension_numbers = #tpu.dot_dimension_numbers<[1], [0], [0], [1], [0, 0, 1, 1], [], []>} : vector<16x8xf32>, vector<8x32xf32>, vector<16x32xf32> -> vector<16x32xf32>
    %103 = arith.addf %80, %102 : vector<16x32xf32>
    %104 = vector.extract_strided_slice %32 {offsets = [0, 24], sizes = [16, 8], strides = [1, 1]} : vector<16x96xf32> to vector<16x8xf32>
    %105 = vector.extract_strided_slice %32 {offsets = [0, 56], sizes = [16, 8], strides = [1, 1]} : vector<16x96xf32> to vector<16x8xf32>
    %106 = vector.extract_strided_slice %32 {offsets = [0, 88], sizes = [16, 8], strides = [1, 1]} : vector<16x96xf32> to vector<16x8xf32>
    %107 = tpu.transpose %105, [1, 0] : vector<16x8xf32> -> vector<8x16xf32>
    %cst_39 = arith.constant dense<0.000000e+00> : vector<16x16xf32>
    %108 = tpu.matmul %104, %107, %cst_39 {dimension_numbers = #tpu.dot_dimension_numbers<[1], [0], [0], [1], [0, 0, 1, 1], [], []>} : vector<16x8xf32>, vector<8x16xf32>, vector<16x16xf32> -> vector<16x16xf32>
    %109 = vector.broadcast %6 : f32 to vector<16x16xf32>
    %110 = arith.mulf %108, %109 : vector<16x16xf32>
    %cst_40 = arith.constant 0xFF800000 : f32
    %111 = vector.broadcast %cst_40 : f32 to vector<16x16xf32>
    %112 = arith.select %4, %110, %111 : vector<16x16xi1>, vector<16x16xf32>
    %cst_41 = arith.constant dense<0xFF800000> : vector<16xf32>
    %113 = vector.multi_reduction <maximumf>, %112, %cst_41 [1] : vector<16x16xf32> to vector<16xf32>
    %114 = vector.shape_cast %113 : vector<16xf32> to vector<16x1xf32>
    %115 = vector.broadcast %114 : vector<16x1xf32> to vector<16x16xf32>
    %116 = arith.subf %112, %115 : vector<16x16xf32>
    %117 = math.exp %116 : vector<16x16xf32>
    %cst_42 = arith.constant dense<0.000000e+00> : vector<16xf32>
    %118 = vector.multi_reduction <add>, %117, %cst_42 [1] : vector<16x16xf32> to vector<16xf32>
    %119 = vector.shape_cast %118 : vector<16xf32> to vector<16x1xf32>
    %120 = tpu.reciprocal %119 : vector<16x1xf32> -> vector<16x1xf32>
    %121 = vector.broadcast %120 : vector<16x1xf32> to vector<16x16xf32>
    %122 = arith.mulf %117, %121 : vector<16x16xf32>
    %cst_43 = arith.constant dense<0.000000e+00> : vector<16x8xf32>
    %123 = tpu.matmul %122, %106, %cst_43 {dimension_numbers = #tpu.dot_dimension_numbers<[1], [0], [0], [1], [0, 0, 1, 1], [], []>} : vector<16x16xf32>, vector<16x8xf32>, vector<16x8xf32> -> vector<16x8xf32>
    %124 = vector.extract_strided_slice %33 {offsets = [24, 0], sizes = [8, 32], strides = [1, 1]} : vector<32x32xf32> to vector<8x32xf32>
    %cst_44 = arith.constant dense<0.000000e+00> : vector<16x32xf32>
    %125 = tpu.matmul %123, %124, %cst_44 {dimension_numbers = #tpu.dot_dimension_numbers<[1], [0], [0], [1], [0, 0, 1, 1], [], []>} : vector<16x8xf32>, vector<8x32xf32>, vector<16x32xf32> -> vector<16x32xf32>
    %126 = arith.addf %103, %125 : vector<16x32xf32>
    %127 = arith.addf %1, %126 : vector<16x32xf32>
    %c0_45 = arith.constant 0 : index
    %c0_46 = arith.constant 0 : index
    %128 = vector.load %arg6[%c0_45, %c0_46] : memref<1x32xf32, #tpu.memory_space<vmem>>, vector<1x32xf32>
    %129 = vector.broadcast %128 : vector<1x32xf32> to vector<16x32xf32>
    %130 = arith.addf %127, %129 : vector<16x32xf32>
    %c0_47 = arith.constant 0 : index
    %c0_48 = arith.constant 0 : index
    %131 = vector.load %arg7[%c0_47, %c0_48] : memref<1x32xf32, #tpu.memory_space<vmem>>, vector<1x32xf32>
    %c0_49 = arith.constant 0 : index
    %c0_50 = arith.constant 0 : index
    %132 = vector.load %arg8[%c0_49, %c0_50] : memref<1x32xf32, #tpu.memory_space<vmem>>, vector<1x32xf32>
    %cst_51 = arith.constant dense<0.000000e+00> : vector<16xf32>
    %133 = vector.multi_reduction <add>, %130, %cst_51 [1] : vector<16x32xf32> to vector<16xf32>
    %134 = vector.shape_cast %133 : vector<16xf32> to vector<16x1xf32>
    %cst_52 = arith.constant 3.200000e+01 : f32
    %135 = vector.broadcast %cst_52 : f32 to vector<16x1xf32>
    %136 = arith.divf %134, %135 : vector<16x1xf32>
    %137 = vector.broadcast %136 : vector<16x1xf32> to vector<16x32xf32>
    %138 = arith.subf %130, %137 : vector<16x32xf32>
    %139 = arith.mulf %138, %138 : vector<16x32xf32>
    %cst_53 = arith.constant dense<0.000000e+00> : vector<16xf32>
    %140 = vector.multi_reduction <add>, %139, %cst_53 [1] : vector<16x32xf32> to vector<16xf32>
    %141 = vector.shape_cast %140 : vector<16xf32> to vector<16x1xf32>
    %cst_54 = arith.constant 3.200000e+01 : f32
    %142 = vector.broadcast %cst_54 : f32 to vector<16x1xf32>
    %143 = arith.divf %141, %142 : vector<16x1xf32>
    %144 = vector.broadcast %136 : vector<16x1xf32> to vector<16x32xf32>
    %145 = arith.subf %130, %144 : vector<16x32xf32>
    %cst_55 = arith.constant 9.99999974E-6 : f32
    %146 = vector.broadcast %cst_55 : f32 to vector<16x1xf32>
    %147 = arith.addf %143, %146 : vector<16x1xf32>
    %148 = math.rsqrt %147 : vector<16x1xf32>
    %149 = vector.broadcast %148 : vector<16x1xf32> to vector<16x32xf32>
    %150 = arith.mulf %145, %149 : vector<16x32xf32>
    %151 = vector.broadcast %131 : vector<1x32xf32> to vector<16x32xf32>
    %152 = arith.mulf %150, %151 : vector<16x32xf32>
    %153 = vector.broadcast %132 : vector<1x32xf32> to vector<16x32xf32>
    %154 = arith.addf %152, %153 : vector<16x32xf32>
    %c0_56 = arith.constant 0 : index
    %c0_57 = arith.constant 0 : index
    %155 = vector.load %arg9[%c0_56, %c0_57] : memref<32x128xf32, #tpu.memory_space<vmem>>, vector<32x128xf32>
    %cst_58 = arith.constant dense<0.000000e+00> : vector<16x128xf32>
    %156 = tpu.matmul %154, %155, %cst_58 {dimension_numbers = #tpu.dot_dimension_numbers<[1], [0], [0], [1], [0, 0, 1, 1], [], []>} : vector<16x32xf32>, vector<32x128xf32>, vector<16x128xf32> -> vector<16x128xf32>
    %c0_59 = arith.constant 0 : index
    %c0_60 = arith.constant 0 : index
    %157 = vector.load %arg10[%c0_59, %c0_60] : memref<1x128xf32, #tpu.memory_space<vmem>>, vector<1x128xf32>
    %158 = vector.broadcast %157 : vector<1x128xf32> to vector<16x128xf32>
    %159 = arith.addf %156, %158 : vector<16x128xf32>
    %cst_61 = arith.constant 0.000000e+00 : f32
    %160 = vector.broadcast %cst_61 : f32 to vector<16x128xf32>
    %161 = arith.maximumf %159, %160 : vector<16x128xf32>
    %c0_62 = arith.constant 0 : index
    %c0_63 = arith.constant 0 : index
    %162 = vector.load %arg11[%c0_62, %c0_63] : memref<128x32xf32, #tpu.memory_space<vmem>>, vector<128x32xf32>
    %cst_64 = arith.constant dense<0.000000e+00> : vector<16x32xf32>
    %163 = tpu.matmul %161, %162, %cst_64 {dimension_numbers = #tpu.dot_dimension_numbers<[1], [0], [0], [1], [0, 0, 1, 1], [], []>} : vector<16x128xf32>, vector<128x32xf32>, vector<16x32xf32> -> vector<16x32xf32>
    %164 = arith.addf %130, %163 : vector<16x32xf32>
    %c0_65 = arith.constant 0 : index
    %c0_66 = arith.constant 0 : index
    %165 = vector.load %arg12[%c0_65, %c0_66] : memref<1x32xf32, #tpu.memory_space<vmem>>, vector<1x32xf32>
    %166 = vector.broadcast %165 : vector<1x32xf32> to vector<16x32xf32>
    %167 = arith.addf %164, %166 : vector<16x32xf32>
    %c0_67 = arith.constant 0 : index
    %c0_68 = arith.constant 0 : index
    %168 = vector.load %arg13[%c0_67, %c0_68] : memref<1x32xf32, #tpu.memory_space<vmem>>, vector<1x32xf32>
    %c0_69 = arith.constant 0 : index
    %c0_70 = arith.constant 0 : index
    %169 = vector.load %arg14[%c0_69, %c0_70] : memref<1x32xf32, #tpu.memory_space<vmem>>, vector<1x32xf32>
    %cst_71 = arith.constant dense<0.000000e+00> : vector<16xf32>
    %170 = vector.multi_reduction <add>, %167, %cst_71 [1] : vector<16x32xf32> to vector<16xf32>
    %171 = vector.shape_cast %170 : vector<16xf32> to vector<16x1xf32>
    %cst_72 = arith.constant 3.200000e+01 : f32
    %172 = vector.broadcast %cst_72 : f32 to vector<16x1xf32>
    %173 = arith.divf %171, %172 : vector<16x1xf32>
    %174 = vector.broadcast %173 : vector<16x1xf32> to vector<16x32xf32>
    %175 = arith.subf %167, %174 : vector<16x32xf32>
    %176 = arith.mulf %175, %175 : vector<16x32xf32>
    %cst_73 = arith.constant dense<0.000000e+00> : vector<16xf32>
    %177 = vector.multi_reduction <add>, %176, %cst_73 [1] : vector<16x32xf32> to vector<16xf32>
    %178 = vector.shape_cast %177 : vector<16xf32> to vector<16x1xf32>
    %cst_74 = arith.constant 3.200000e+01 : f32
    %179 = vector.broadcast %cst_74 : f32 to vector<16x1xf32>
    %180 = arith.divf %178, %179 : vector<16x1xf32>
    %181 = vector.broadcast %173 : vector<16x1xf32> to vector<16x32xf32>
    %182 = arith.subf %167, %181 : vector<16x32xf32>
    %cst_75 = arith.constant 9.99999974E-6 : f32
    %183 = vector.broadcast %cst_75 : f32 to vector<16x1xf32>
    %184 = arith.addf %180, %183 : vector<16x1xf32>
    %185 = math.rsqrt %184 : vector<16x1xf32>
    %186 = vector.broadcast %185 : vector<16x1xf32> to vector<16x32xf32>
    %187 = arith.mulf %182, %186 : vector<16x32xf32>
    %188 = vector.broadcast %168 : vector<1x32xf32> to vector<16x32xf32>
    %189 = arith.mulf %187, %188 : vector<16x32xf32>
    %190 = vector.broadcast %169 : vector<1x32xf32> to vector<16x32xf32>
    %191 = arith.addf %189, %190 : vector<16x32xf32>
    %c0_76 = arith.constant 0 : index
    %c0_77 = arith.constant 0 : index
    %192 = vector.load %arg15[%c0_76, %c0_77] : memref<32x96xf32, #tpu.memory_space<vmem>>, vector<32x96xf32>
    %cst_78 = arith.constant dense<0.000000e+00> : vector<16x96xf32>
    %193 = tpu.matmul %191, %192, %cst_78 {dimension_numbers = #tpu.dot_dimension_numbers<[1], [0], [0], [1], [0, 0, 1, 1], [], []>} : vector<16x32xf32>, vector<32x96xf32>, vector<16x96xf32> -> vector<16x96xf32>
    %c0_79 = arith.constant 0 : index
    %c0_80 = arith.constant 0 : index
    %194 = vector.load %arg16[%c0_79, %c0_80] : memref<32x32xf32, #tpu.memory_space<vmem>>, vector<32x32xf32>
    %cst_81 = arith.constant 0.000000e+00 : f32
    %195 = vector.broadcast %cst_81 : f32 to vector<16x32xf32>
    %196 = vector.extract_strided_slice %193 {offsets = [0, 0], sizes = [16, 8], strides = [1, 1]} : vector<16x96xf32> to vector<16x8xf32>
    %197 = vector.extract_strided_slice %193 {offsets = [0, 32], sizes = [16, 8], strides = [1, 1]} : vector<16x96xf32> to vector<16x8xf32>
    %198 = vector.extract_strided_slice %193 {offsets = [0, 64], sizes = [16, 8], strides = [1, 1]} : vector<16x96xf32> to vector<16x8xf32>
    %199 = tpu.transpose %197, [1, 0] : vector<16x8xf32> -> vector<8x16xf32>
    %cst_82 = arith.constant dense<0.000000e+00> : vector<16x16xf32>
    %200 = tpu.matmul %196, %199, %cst_82 {dimension_numbers = #tpu.dot_dimension_numbers<[1], [0], [0], [1], [0, 0, 1, 1], [], []>} : vector<16x8xf32>, vector<8x16xf32>, vector<16x16xf32> -> vector<16x16xf32>
    %201 = vector.broadcast %6 : f32 to vector<16x16xf32>
    %202 = arith.mulf %200, %201 : vector<16x16xf32>
    %cst_83 = arith.constant 0xFF800000 : f32
    %203 = vector.broadcast %cst_83 : f32 to vector<16x16xf32>
    %204 = arith.select %4, %202, %203 : vector<16x16xi1>, vector<16x16xf32>
    %cst_84 = arith.constant dense<0xFF800000> : vector<16xf32>
    %205 = vector.multi_reduction <maximumf>, %204, %cst_84 [1] : vector<16x16xf32> to vector<16xf32>
    %206 = vector.shape_cast %205 : vector<16xf32> to vector<16x1xf32>
    %207 = vector.broadcast %206 : vector<16x1xf32> to vector<16x16xf32>
    %208 = arith.subf %204, %207 : vector<16x16xf32>
    %209 = math.exp %208 : vector<16x16xf32>
    %cst_85 = arith.constant dense<0.000000e+00> : vector<16xf32>
    %210 = vector.multi_reduction <add>, %209, %cst_85 [1] : vector<16x16xf32> to vector<16xf32>
    %211 = vector.shape_cast %210 : vector<16xf32> to vector<16x1xf32>
    %212 = tpu.reciprocal %211 : vector<16x1xf32> -> vector<16x1xf32>
    %213 = vector.broadcast %212 : vector<16x1xf32> to vector<16x16xf32>
    %214 = arith.mulf %209, %213 : vector<16x16xf32>
    %cst_86 = arith.constant dense<0.000000e+00> : vector<16x8xf32>
    %215 = tpu.matmul %214, %198, %cst_86 {dimension_numbers = #tpu.dot_dimension_numbers<[1], [0], [0], [1], [0, 0, 1, 1], [], []>} : vector<16x16xf32>, vector<16x8xf32>, vector<16x8xf32> -> vector<16x8xf32>
    %216 = vector.extract_strided_slice %194 {offsets = [0, 0], sizes = [8, 32], strides = [1, 1]} : vector<32x32xf32> to vector<8x32xf32>
    %cst_87 = arith.constant dense<0.000000e+00> : vector<16x32xf32>
    %217 = tpu.matmul %215, %216, %cst_87 {dimension_numbers = #tpu.dot_dimension_numbers<[1], [0], [0], [1], [0, 0, 1, 1], [], []>} : vector<16x8xf32>, vector<8x32xf32>, vector<16x32xf32> -> vector<16x32xf32>
    %218 = arith.addf %195, %217 : vector<16x32xf32>
    %219 = vector.extract_strided_slice %193 {offsets = [0, 8], sizes = [16, 8], strides = [1, 1]} : vector<16x96xf32> to vector<16x8xf32>
    %220 = vector.extract_strided_slice %193 {offsets = [0, 40], sizes = [16, 8], strides = [1, 1]} : vector<16x96xf32> to vector<16x8xf32>
    %221 = vector.extract_strided_slice %193 {offsets = [0, 72], sizes = [16, 8], strides = [1, 1]} : vector<16x96xf32> to vector<16x8xf32>
    %222 = tpu.transpose %220, [1, 0] : vector<16x8xf32> -> vector<8x16xf32>
    %cst_88 = arith.constant dense<0.000000e+00> : vector<16x16xf32>
    %223 = tpu.matmul %219, %222, %cst_88 {dimension_numbers = #tpu.dot_dimension_numbers<[1], [0], [0], [1], [0, 0, 1, 1], [], []>} : vector<16x8xf32>, vector<8x16xf32>, vector<16x16xf32> -> vector<16x16xf32>
    %224 = vector.broadcast %6 : f32 to vector<16x16xf32>
    %225 = arith.mulf %223, %224 : vector<16x16xf32>
    %cst_89 = arith.constant 0xFF800000 : f32
    %226 = vector.broadcast %cst_89 : f32 to vector<16x16xf32>
    %227 = arith.select %4, %225, %226 : vector<16x16xi1>, vector<16x16xf32>
    %cst_90 = arith.constant dense<0xFF800000> : vector<16xf32>
    %228 = vector.multi_reduction <maximumf>, %227, %cst_90 [1] : vector<16x16xf32> to vector<16xf32>
    %229 = vector.shape_cast %228 : vector<16xf32> to vector<16x1xf32>
    %230 = vector.broadcast %229 : vector<16x1xf32> to vector<16x16xf32>
    %231 = arith.subf %227, %230 : vector<16x16xf32>
    %232 = math.exp %231 : vector<16x16xf32>
    %cst_91 = arith.constant dense<0.000000e+00> : vector<16xf32>
    %233 = vector.multi_reduction <add>, %232, %cst_91 [1] : vector<16x16xf32> to vector<16xf32>
    %234 = vector.shape_cast %233 : vector<16xf32> to vector<16x1xf32>
    %235 = tpu.reciprocal %234 : vector<16x1xf32> -> vector<16x1xf32>
    %236 = vector.broadcast %235 : vector<16x1xf32> to vector<16x16xf32>
    %237 = arith.mulf %232, %236 : vector<16x16xf32>
    %cst_92 = arith.constant dense<0.000000e+00> : vector<16x8xf32>
    %238 = tpu.matmul %237, %221, %cst_92 {dimension_numbers = #tpu.dot_dimension_numbers<[1], [0], [0], [1], [0, 0, 1, 1], [], []>} : vector<16x16xf32>, vector<16x8xf32>, vector<16x8xf32> -> vector<16x8xf32>
    %239 = vector.extract_strided_slice %194 {offsets = [8, 0], sizes = [8, 32], strides = [1, 1]} : vector<32x32xf32> to vector<8x32xf32>
    %cst_93 = arith.constant dense<0.000000e+00> : vector<16x32xf32>
    %240 = tpu.matmul %238, %239, %cst_93 {dimension_numbers = #tpu.dot_dimension_numbers<[1], [0], [0], [1], [0, 0, 1, 1], [], []>} : vector<16x8xf32>, vector<8x32xf32>, vector<16x32xf32> -> vector<16x32xf32>
    %241 = arith.addf %218, %240 : vector<16x32xf32>
    %242 = vector.extract_strided_slice %193 {offsets = [0, 16], sizes = [16, 8], strides = [1, 1]} : vector<16x96xf32> to vector<16x8xf32>
    %243 = vector.extract_strided_slice %193 {offsets = [0, 48], sizes = [16, 8], strides = [1, 1]} : vector<16x96xf32> to vector<16x8xf32>
    %244 = vector.extract_strided_slice %193 {offsets = [0, 80], sizes = [16, 8], strides = [1, 1]} : vector<16x96xf32> to vector<16x8xf32>
    %245 = tpu.transpose %243, [1, 0] : vector<16x8xf32> -> vector<8x16xf32>
    %cst_94 = arith.constant dense<0.000000e+00> : vector<16x16xf32>
    %246 = tpu.matmul %242, %245, %cst_94 {dimension_numbers = #tpu.dot_dimension_numbers<[1], [0], [0], [1], [0, 0, 1, 1], [], []>} : vector<16x8xf32>, vector<8x16xf32>, vector<16x16xf32> -> vector<16x16xf32>
    %247 = vector.broadcast %6 : f32 to vector<16x16xf32>
    %248 = arith.mulf %246, %247 : vector<16x16xf32>
    %cst_95 = arith.constant 0xFF800000 : f32
    %249 = vector.broadcast %cst_95 : f32 to vector<16x16xf32>
    %250 = arith.select %4, %248, %249 : vector<16x16xi1>, vector<16x16xf32>
    %cst_96 = arith.constant dense<0xFF800000> : vector<16xf32>
    %251 = vector.multi_reduction <maximumf>, %250, %cst_96 [1] : vector<16x16xf32> to vector<16xf32>
    %252 = vector.shape_cast %251 : vector<16xf32> to vector<16x1xf32>
    %253 = vector.broadcast %252 : vector<16x1xf32> to vector<16x16xf32>
    %254 = arith.subf %250, %253 : vector<16x16xf32>
    %255 = math.exp %254 : vector<16x16xf32>
    %cst_97 = arith.constant dense<0.000000e+00> : vector<16xf32>
    %256 = vector.multi_reduction <add>, %255, %cst_97 [1] : vector<16x16xf32> to vector<16xf32>
    %257 = vector.shape_cast %256 : vector<16xf32> to vector<16x1xf32>
    %258 = tpu.reciprocal %257 : vector<16x1xf32> -> vector<16x1xf32>
    %259 = vector.broadcast %258 : vector<16x1xf32> to vector<16x16xf32>
    %260 = arith.mulf %255, %259 : vector<16x16xf32>
    %cst_98 = arith.constant dense<0.000000e+00> : vector<16x8xf32>
    %261 = tpu.matmul %260, %244, %cst_98 {dimension_numbers = #tpu.dot_dimension_numbers<[1], [0], [0], [1], [0, 0, 1, 1], [], []>} : vector<16x16xf32>, vector<16x8xf32>, vector<16x8xf32> -> vector<16x8xf32>
    %262 = vector.extract_strided_slice %194 {offsets = [16, 0], sizes = [8, 32], strides = [1, 1]} : vector<32x32xf32> to vector<8x32xf32>
    %cst_99 = arith.constant dense<0.000000e+00> : vector<16x32xf32>
    %263 = tpu.matmul %261, %262, %cst_99 {dimension_numbers = #tpu.dot_dimension_numbers<[1], [0], [0], [1], [0, 0, 1, 1], [], []>} : vector<16x8xf32>, vector<8x32xf32>, vector<16x32xf32> -> vector<16x32xf32>
    %264 = arith.addf %241, %263 : vector<16x32xf32>
    %265 = vector.extract_strided_slice %193 {offsets = [0, 24], sizes = [16, 8], strides = [1, 1]} : vector<16x96xf32> to vector<16x8xf32>
    %266 = vector.extract_strided_slice %193 {offsets = [0, 56], sizes = [16, 8], strides = [1, 1]} : vector<16x96xf32> to vector<16x8xf32>
    %267 = vector.extract_strided_slice %193 {offsets = [0, 88], sizes = [16, 8], strides = [1, 1]} : vector<16x96xf32> to vector<16x8xf32>
    %268 = tpu.transpose %266, [1, 0] : vector<16x8xf32> -> vector<8x16xf32>
    %cst_100 = arith.constant dense<0.000000e+00> : vector<16x16xf32>
    %269 = tpu.matmul %265, %268, %cst_100 {dimension_numbers = #tpu.dot_dimension_numbers<[1], [0], [0], [1], [0, 0, 1, 1], [], []>} : vector<16x8xf32>, vector<8x16xf32>, vector<16x16xf32> -> vector<16x16xf32>
    %270 = vector.broadcast %6 : f32 to vector<16x16xf32>
    %271 = arith.mulf %269, %270 : vector<16x16xf32>
    %cst_101 = arith.constant 0xFF800000 : f32
    %272 = vector.broadcast %cst_101 : f32 to vector<16x16xf32>
    %273 = arith.select %4, %271, %272 : vector<16x16xi1>, vector<16x16xf32>
    %cst_102 = arith.constant dense<0xFF800000> : vector<16xf32>
    %274 = vector.multi_reduction <maximumf>, %273, %cst_102 [1] : vector<16x16xf32> to vector<16xf32>
    %275 = vector.shape_cast %274 : vector<16xf32> to vector<16x1xf32>
    %276 = vector.broadcast %275 : vector<16x1xf32> to vector<16x16xf32>
    %277 = arith.subf %273, %276 : vector<16x16xf32>
    %278 = math.exp %277 : vector<16x16xf32>
    %cst_103 = arith.constant dense<0.000000e+00> : vector<16xf32>
    %279 = vector.multi_reduction <add>, %278, %cst_103 [1] : vector<16x16xf32> to vector<16xf32>
    %280 = vector.shape_cast %279 : vector<16xf32> to vector<16x1xf32>
    %281 = tpu.reciprocal %280 : vector<16x1xf32> -> vector<16x1xf32>
    %282 = vector.broadcast %281 : vector<16x1xf32> to vector<16x16xf32>
    %283 = arith.mulf %278, %282 : vector<16x16xf32>
    %cst_104 = arith.constant dense<0.000000e+00> : vector<16x8xf32>
    %284 = tpu.matmul %283, %267, %cst_104 {dimension_numbers = #tpu.dot_dimension_numbers<[1], [0], [0], [1], [0, 0, 1, 1], [], []>} : vector<16x16xf32>, vector<16x8xf32>, vector<16x8xf32> -> vector<16x8xf32>
    %285 = vector.extract_strided_slice %194 {offsets = [24, 0], sizes = [8, 32], strides = [1, 1]} : vector<32x32xf32> to vector<8x32xf32>
    %cst_105 = arith.constant dense<0.000000e+00> : vector<16x32xf32>
    %286 = tpu.matmul %284, %285, %cst_105 {dimension_numbers = #tpu.dot_dimension_numbers<[1], [0], [0], [1], [0, 0, 1, 1], [], []>} : vector<16x8xf32>, vector<8x32xf32>, vector<16x32xf32> -> vector<16x32xf32>
    %287 = arith.addf %264, %286 : vector<16x32xf32>
    %288 = arith.addf %167, %287 : vector<16x32xf32>
    %c0_106 = arith.constant 0 : index
    %c0_107 = arith.constant 0 : index
    %289 = vector.load %arg17[%c0_106, %c0_107] : memref<1x32xf32, #tpu.memory_space<vmem>>, vector<1x32xf32>
    %290 = vector.broadcast %289 : vector<1x32xf32> to vector<16x32xf32>
    %291 = arith.addf %288, %290 : vector<16x32xf32>
    %c0_108 = arith.constant 0 : index
    %c0_109 = arith.constant 0 : index
    %292 = vector.load %arg18[%c0_108, %c0_109] : memref<1x32xf32, #tpu.memory_space<vmem>>, vector<1x32xf32>
    %c0_110 = arith.constant 0 : index
    %c0_111 = arith.constant 0 : index
    %293 = vector.load %arg19[%c0_110, %c0_111] : memref<1x32xf32, #tpu.memory_space<vmem>>, vector<1x32xf32>
    %cst_112 = arith.constant dense<0.000000e+00> : vector<16xf32>
    %294 = vector.multi_reduction <add>, %291, %cst_112 [1] : vector<16x32xf32> to vector<16xf32>
    %295 = vector.shape_cast %294 : vector<16xf32> to vector<16x1xf32>
    %cst_113 = arith.constant 3.200000e+01 : f32
    %296 = vector.broadcast %cst_113 : f32 to vector<16x1xf32>
    %297 = arith.divf %295, %296 : vector<16x1xf32>
    %298 = vector.broadcast %297 : vector<16x1xf32> to vector<16x32xf32>
    %299 = arith.subf %291, %298 : vector<16x32xf32>
    %300 = arith.mulf %299, %299 : vector<16x32xf32>
    %cst_114 = arith.constant dense<0.000000e+00> : vector<16xf32>
    %301 = vector.multi_reduction <add>, %300, %cst_114 [1] : vector<16x32xf32> to vector<16xf32>
    %302 = vector.shape_cast %301 : vector<16xf32> to vector<16x1xf32>
    %cst_115 = arith.constant 3.200000e+01 : f32
    %303 = vector.broadcast %cst_115 : f32 to vector<16x1xf32>
    %304 = arith.divf %302, %303 : vector<16x1xf32>
    %305 = vector.broadcast %297 : vector<16x1xf32> to vector<16x32xf32>
    %306 = arith.subf %291, %305 : vector<16x32xf32>
    %cst_116 = arith.constant 9.99999974E-6 : f32
    %307 = vector.broadcast %cst_116 : f32 to vector<16x1xf32>
    %308 = arith.addf %304, %307 : vector<16x1xf32>
    %309 = math.rsqrt %308 : vector<16x1xf32>
    %310 = vector.broadcast %309 : vector<16x1xf32> to vector<16x32xf32>
    %311 = arith.mulf %306, %310 : vector<16x32xf32>
    %312 = vector.broadcast %292 : vector<1x32xf32> to vector<16x32xf32>
    %313 = arith.mulf %311, %312 : vector<16x32xf32>
    %314 = vector.broadcast %293 : vector<1x32xf32> to vector<16x32xf32>
    %315 = arith.addf %313, %314 : vector<16x32xf32>
    %c0_117 = arith.constant 0 : index
    %c0_118 = arith.constant 0 : index
    %316 = vector.load %arg20[%c0_117, %c0_118] : memref<32x128xf32, #tpu.memory_space<vmem>>, vector<32x128xf32>
    %cst_119 = arith.constant dense<0.000000e+00> : vector<16x128xf32>
    %317 = tpu.matmul %315, %316, %cst_119 {dimension_numbers = #tpu.dot_dimension_numbers<[1], [0], [0], [1], [0, 0, 1, 1], [], []>} : vector<16x32xf32>, vector<32x128xf32>, vector<16x128xf32> -> vector<16x128xf32>
    %c0_120 = arith.constant 0 : index
    %c0_121 = arith.constant 0 : index
    %318 = vector.load %arg21[%c0_120, %c0_121] : memref<1x128xf32, #tpu.memory_space<vmem>>, vector<1x128xf32>
    %319 = vector.broadcast %318 : vector<1x128xf32> to vector<16x128xf32>
    %320 = arith.addf %317, %319 : vector<16x128xf32>
    %cst_122 = arith.constant 0.000000e+00 : f32
    %321 = vector.broadcast %cst_122 : f32 to vector<16x128xf32>
    %322 = arith.maximumf %320, %321 : vector<16x128xf32>
    %c0_123 = arith.constant 0 : index
    %c0_124 = arith.constant 0 : index
    %323 = vector.load %arg22[%c0_123, %c0_124] : memref<128x32xf32, #tpu.memory_space<vmem>>, vector<128x32xf32>
    %cst_125 = arith.constant dense<0.000000e+00> : vector<16x32xf32>
    %324 = tpu.matmul %322, %323, %cst_125 {dimension_numbers = #tpu.dot_dimension_numbers<[1], [0], [0], [1], [0, 0, 1, 1], [], []>} : vector<16x128xf32>, vector<128x32xf32>, vector<16x32xf32> -> vector<16x32xf32>
    %325 = arith.addf %291, %324 : vector<16x32xf32>
    %c0_126 = arith.constant 0 : index
    %c0_127 = arith.constant 0 : index
    %326 = vector.load %arg23[%c0_126, %c0_127] : memref<1x32xf32, #tpu.memory_space<vmem>>, vector<1x32xf32>
    %327 = vector.broadcast %326 : vector<1x32xf32> to vector<16x32xf32>
    %328 = arith.addf %325, %327 : vector<16x32xf32>
    %c0_128 = arith.constant 0 : index
    %c0_129 = arith.constant 0 : index
    %329 = vector.load %arg24[%c0_128, %c0_129] : memref<1x32xf32, #tpu.memory_space<vmem>>, vector<1x32xf32>
    %c0_130 = arith.constant 0 : index
    %c0_131 = arith.constant 0 : index
    %330 = vector.load %arg25[%c0_130, %c0_131] : memref<1x32xf32, #tpu.memory_space<vmem>>, vector<1x32xf32>
    %cst_132 = arith.constant dense<0.000000e+00> : vector<16xf32>
    %331 = vector.multi_reduction <add>, %328, %cst_132 [1] : vector<16x32xf32> to vector<16xf32>
    %332 = vector.shape_cast %331 : vector<16xf32> to vector<16x1xf32>
    %cst_133 = arith.constant 3.200000e+01 : f32
    %333 = vector.broadcast %cst_133 : f32 to vector<16x1xf32>
    %334 = arith.divf %332, %333 : vector<16x1xf32>
    %335 = vector.broadcast %334 : vector<16x1xf32> to vector<16x32xf32>
    %336 = arith.subf %328, %335 : vector<16x32xf32>
    %337 = arith.mulf %336, %336 : vector<16x32xf32>
    %cst_134 = arith.constant dense<0.000000e+00> : vector<16xf32>
    %338 = vector.multi_reduction <add>, %337, %cst_134 [1] : vector<16x32xf32> to vector<16xf32>
    %339 = vector.shape_cast %338 : vector<16xf32> to vector<16x1xf32>
    %cst_135 = arith.constant 3.200000e+01 : f32
    %340 = vector.broadcast %cst_135 : f32 to vector<16x1xf32>
    %341 = arith.divf %339, %340 : vector<16x1xf32>
    %342 = vector.broadcast %334 : vector<16x1xf32> to vector<16x32xf32>
    %343 = arith.subf %328, %342 : vector<16x32xf32>
    %cst_136 = arith.constant 9.99999974E-6 : f32
    %344 = vector.broadcast %cst_136 : f32 to vector<16x1xf32>
    %345 = arith.addf %341, %344 : vector<16x1xf32>
    %346 = math.rsqrt %345 : vector<16x1xf32>
    %347 = vector.broadcast %346 : vector<16x1xf32> to vector<16x32xf32>
    %348 = arith.mulf %343, %347 : vector<16x32xf32>
    %349 = vector.broadcast %329 : vector<1x32xf32> to vector<16x32xf32>
    %350 = arith.mulf %348, %349 : vector<16x32xf32>
    %351 = vector.broadcast %330 : vector<1x32xf32> to vector<16x32xf32>
    %352 = arith.addf %350, %351 : vector<16x32xf32>
    %c0_137 = arith.constant 0 : index
    %c0_138 = arith.constant 0 : index
    %353 = vector.load %arg26[%c0_137, %c0_138] : memref<32x96xf32, #tpu.memory_space<vmem>>, vector<32x96xf32>
    %cst_139 = arith.constant dense<0.000000e+00> : vector<16x96xf32>
    %354 = tpu.matmul %352, %353, %cst_139 {dimension_numbers = #tpu.dot_dimension_numbers<[1], [0], [0], [1], [0, 0, 1, 1], [], []>} : vector<16x32xf32>, vector<32x96xf32>, vector<16x96xf32> -> vector<16x96xf32>
    %c0_140 = arith.constant 0 : index
    %c0_141 = arith.constant 0 : index
    %355 = vector.load %arg27[%c0_140, %c0_141] : memref<32x32xf32, #tpu.memory_space<vmem>>, vector<32x32xf32>
    %cst_142 = arith.constant 0.000000e+00 : f32
    %356 = vector.broadcast %cst_142 : f32 to vector<16x32xf32>
    %357 = vector.extract_strided_slice %354 {offsets = [0, 0], sizes = [16, 8], strides = [1, 1]} : vector<16x96xf32> to vector<16x8xf32>
    %358 = vector.extract_strided_slice %354 {offsets = [0, 32], sizes = [16, 8], strides = [1, 1]} : vector<16x96xf32> to vector<16x8xf32>
    %359 = vector.extract_strided_slice %354 {offsets = [0, 64], sizes = [16, 8], strides = [1, 1]} : vector<16x96xf32> to vector<16x8xf32>
    %360 = tpu.transpose %358, [1, 0] : vector<16x8xf32> -> vector<8x16xf32>
    %cst_143 = arith.constant dense<0.000000e+00> : vector<16x16xf32>
    %361 = tpu.matmul %357, %360, %cst_143 {dimension_numbers = #tpu.dot_dimension_numbers<[1], [0], [0], [1], [0, 0, 1, 1], [], []>} : vector<16x8xf32>, vector<8x16xf32>, vector<16x16xf32> -> vector<16x16xf32>
    %362 = vector.broadcast %6 : f32 to vector<16x16xf32>
    %363 = arith.mulf %361, %362 : vector<16x16xf32>
    %cst_144 = arith.constant 0xFF800000 : f32
    %364 = vector.broadcast %cst_144 : f32 to vector<16x16xf32>
    %365 = arith.select %4, %363, %364 : vector<16x16xi1>, vector<16x16xf32>
    %cst_145 = arith.constant dense<0xFF800000> : vector<16xf32>
    %366 = vector.multi_reduction <maximumf>, %365, %cst_145 [1] : vector<16x16xf32> to vector<16xf32>
    %367 = vector.shape_cast %366 : vector<16xf32> to vector<16x1xf32>
    %368 = vector.broadcast %367 : vector<16x1xf32> to vector<16x16xf32>
    %369 = arith.subf %365, %368 : vector<16x16xf32>
    %370 = math.exp %369 : vector<16x16xf32>
    %cst_146 = arith.constant dense<0.000000e+00> : vector<16xf32>
    %371 = vector.multi_reduction <add>, %370, %cst_146 [1] : vector<16x16xf32> to vector<16xf32>
    %372 = vector.shape_cast %371 : vector<16xf32> to vector<16x1xf32>
    %373 = tpu.reciprocal %372 : vector<16x1xf32> -> vector<16x1xf32>
    %374 = vector.broadcast %373 : vector<16x1xf32> to vector<16x16xf32>
    %375 = arith.mulf %370, %374 : vector<16x16xf32>
    %cst_147 = arith.constant dense<0.000000e+00> : vector<16x8xf32>
    %376 = tpu.matmul %375, %359, %cst_147 {dimension_numbers = #tpu.dot_dimension_numbers<[1], [0], [0], [1], [0, 0, 1, 1], [], []>} : vector<16x16xf32>, vector<16x8xf32>, vector<16x8xf32> -> vector<16x8xf32>
    %377 = vector.extract_strided_slice %355 {offsets = [0, 0], sizes = [8, 32], strides = [1, 1]} : vector<32x32xf32> to vector<8x32xf32>
    %cst_148 = arith.constant dense<0.000000e+00> : vector<16x32xf32>
    %378 = tpu.matmul %376, %377, %cst_148 {dimension_numbers = #tpu.dot_dimension_numbers<[1], [0], [0], [1], [0, 0, 1, 1], [], []>} : vector<16x8xf32>, vector<8x32xf32>, vector<16x32xf32> -> vector<16x32xf32>
    %379 = arith.addf %356, %378 : vector<16x32xf32>
    %380 = vector.extract_strided_slice %354 {offsets = [0, 8], sizes = [16, 8], strides = [1, 1]} : vector<16x96xf32> to vector<16x8xf32>
    %381 = vector.extract_strided_slice %354 {offsets = [0, 40], sizes = [16, 8], strides = [1, 1]} : vector<16x96xf32> to vector<16x8xf32>
    %382 = vector.extract_strided_slice %354 {offsets = [0, 72], sizes = [16, 8], strides = [1, 1]} : vector<16x96xf32> to vector<16x8xf32>
    %383 = tpu.transpose %381, [1, 0] : vector<16x8xf32> -> vector<8x16xf32>
    %cst_149 = arith.constant dense<0.000000e+00> : vector<16x16xf32>
    %384 = tpu.matmul %380, %383, %cst_149 {dimension_numbers = #tpu.dot_dimension_numbers<[1], [0], [0], [1], [0, 0, 1, 1], [], []>} : vector<16x8xf32>, vector<8x16xf32>, vector<16x16xf32> -> vector<16x16xf32>
    %385 = vector.broadcast %6 : f32 to vector<16x16xf32>
    %386 = arith.mulf %384, %385 : vector<16x16xf32>
    %cst_150 = arith.constant 0xFF800000 : f32
    %387 = vector.broadcast %cst_150 : f32 to vector<16x16xf32>
    %388 = arith.select %4, %386, %387 : vector<16x16xi1>, vector<16x16xf32>
    %cst_151 = arith.constant dense<0xFF800000> : vector<16xf32>
    %389 = vector.multi_reduction <maximumf>, %388, %cst_151 [1] : vector<16x16xf32> to vector<16xf32>
    %390 = vector.shape_cast %389 : vector<16xf32> to vector<16x1xf32>
    %391 = vector.broadcast %390 : vector<16x1xf32> to vector<16x16xf32>
    %392 = arith.subf %388, %391 : vector<16x16xf32>
    %393 = math.exp %392 : vector<16x16xf32>
    %cst_152 = arith.constant dense<0.000000e+00> : vector<16xf32>
    %394 = vector.multi_reduction <add>, %393, %cst_152 [1] : vector<16x16xf32> to vector<16xf32>
    %395 = vector.shape_cast %394 : vector<16xf32> to vector<16x1xf32>
    %396 = tpu.reciprocal %395 : vector<16x1xf32> -> vector<16x1xf32>
    %397 = vector.broadcast %396 : vector<16x1xf32> to vector<16x16xf32>
    %398 = arith.mulf %393, %397 : vector<16x16xf32>
    %cst_153 = arith.constant dense<0.000000e+00> : vector<16x8xf32>
    %399 = tpu.matmul %398, %382, %cst_153 {dimension_numbers = #tpu.dot_dimension_numbers<[1], [0], [0], [1], [0, 0, 1, 1], [], []>} : vector<16x16xf32>, vector<16x8xf32>, vector<16x8xf32> -> vector<16x8xf32>
    %400 = vector.extract_strided_slice %355 {offsets = [8, 0], sizes = [8, 32], strides = [1, 1]} : vector<32x32xf32> to vector<8x32xf32>
    %cst_154 = arith.constant dense<0.000000e+00> : vector<16x32xf32>
    %401 = tpu.matmul %399, %400, %cst_154 {dimension_numbers = #tpu.dot_dimension_numbers<[1], [0], [0], [1], [0, 0, 1, 1], [], []>} : vector<16x8xf32>, vector<8x32xf32>, vector<16x32xf32> -> vector<16x32xf32>
    %402 = arith.addf %379, %401 : vector<16x32xf32>
    %403 = vector.extract_strided_slice %354 {offsets = [0, 16], sizes = [16, 8], strides = [1, 1]} : vector<16x96xf32> to vector<16x8xf32>
    %404 = vector.extract_strided_slice %354 {offsets = [0, 48], sizes = [16, 8], strides = [1, 1]} : vector<16x96xf32> to vector<16x8xf32>
    %405 = vector.extract_strided_slice %354 {offsets = [0, 80], sizes = [16, 8], strides = [1, 1]} : vector<16x96xf32> to vector<16x8xf32>
    %406 = tpu.transpose %404, [1, 0] : vector<16x8xf32> -> vector<8x16xf32>
    %cst_155 = arith.constant dense<0.000000e+00> : vector<16x16xf32>
    %407 = tpu.matmul %403, %406, %cst_155 {dimension_numbers = #tpu.dot_dimension_numbers<[1], [0], [0], [1], [0, 0, 1, 1], [], []>} : vector<16x8xf32>, vector<8x16xf32>, vector<16x16xf32> -> vector<16x16xf32>
    %408 = vector.broadcast %6 : f32 to vector<16x16xf32>
    %409 = arith.mulf %407, %408 : vector<16x16xf32>
    %cst_156 = arith.constant 0xFF800000 : f32
    %410 = vector.broadcast %cst_156 : f32 to vector<16x16xf32>
    %411 = arith.select %4, %409, %410 : vector<16x16xi1>, vector<16x16xf32>
    %cst_157 = arith.constant dense<0xFF800000> : vector<16xf32>
    %412 = vector.multi_reduction <maximumf>, %411, %cst_157 [1] : vector<16x16xf32> to vector<16xf32>
    %413 = vector.shape_cast %412 : vector<16xf32> to vector<16x1xf32>
    %414 = vector.broadcast %413 : vector<16x1xf32> to vector<16x16xf32>
    %415 = arith.subf %411, %414 : vector<16x16xf32>
    %416 = math.exp %415 : vector<16x16xf32>
    %cst_158 = arith.constant dense<0.000000e+00> : vector<16xf32>
    %417 = vector.multi_reduction <add>, %416, %cst_158 [1] : vector<16x16xf32> to vector<16xf32>
    %418 = vector.shape_cast %417 : vector<16xf32> to vector<16x1xf32>
    %419 = tpu.reciprocal %418 : vector<16x1xf32> -> vector<16x1xf32>
    %420 = vector.broadcast %419 : vector<16x1xf32> to vector<16x16xf32>
    %421 = arith.mulf %416, %420 : vector<16x16xf32>
    %cst_159 = arith.constant dense<0.000000e+00> : vector<16x8xf32>
    %422 = tpu.matmul %421, %405, %cst_159 {dimension_numbers = #tpu.dot_dimension_numbers<[1], [0], [0], [1], [0, 0, 1, 1], [], []>} : vector<16x16xf32>, vector<16x8xf32>, vector<16x8xf32> -> vector<16x8xf32>
    %423 = vector.extract_strided_slice %355 {offsets = [16, 0], sizes = [8, 32], strides = [1, 1]} : vector<32x32xf32> to vector<8x32xf32>
    %cst_160 = arith.constant dense<0.000000e+00> : vector<16x32xf32>
    %424 = tpu.matmul %422, %423, %cst_160 {dimension_numbers = #tpu.dot_dimension_numbers<[1], [0], [0], [1], [0, 0, 1, 1], [], []>} : vector<16x8xf32>, vector<8x32xf32>, vector<16x32xf32> -> vector<16x32xf32>
    %425 = arith.addf %402, %424 : vector<16x32xf32>
    %426 = vector.extract_strided_slice %354 {offsets = [0, 24], sizes = [16, 8], strides = [1, 1]} : vector<16x96xf32> to vector<16x8xf32>
    %427 = vector.extract_strided_slice %354 {offsets = [0, 56], sizes = [16, 8], strides = [1, 1]} : vector<16x96xf32> to vector<16x8xf32>
    %428 = vector.extract_strided_slice %354 {offsets = [0, 88], sizes = [16, 8], strides = [1, 1]} : vector<16x96xf32> to vector<16x8xf32>
    %429 = tpu.transpose %427, [1, 0] : vector<16x8xf32> -> vector<8x16xf32>
    %cst_161 = arith.constant dense<0.000000e+00> : vector<16x16xf32>
    %430 = tpu.matmul %426, %429, %cst_161 {dimension_numbers = #tpu.dot_dimension_numbers<[1], [0], [0], [1], [0, 0, 1, 1], [], []>} : vector<16x8xf32>, vector<8x16xf32>, vector<16x16xf32> -> vector<16x16xf32>
    %431 = vector.broadcast %6 : f32 to vector<16x16xf32>
    %432 = arith.mulf %430, %431 : vector<16x16xf32>
    %cst_162 = arith.constant 0xFF800000 : f32
    %433 = vector.broadcast %cst_162 : f32 to vector<16x16xf32>
    %434 = arith.select %4, %432, %433 : vector<16x16xi1>, vector<16x16xf32>
    %cst_163 = arith.constant dense<0xFF800000> : vector<16xf32>
    %435 = vector.multi_reduction <maximumf>, %434, %cst_163 [1] : vector<16x16xf32> to vector<16xf32>
    %436 = vector.shape_cast %435 : vector<16xf32> to vector<16x1xf32>
    %437 = vector.broadcast %436 : vector<16x1xf32> to vector<16x16xf32>
    %438 = arith.subf %434, %437 : vector<16x16xf32>
    %439 = math.exp %438 : vector<16x16xf32>
    %cst_164 = arith.constant dense<0.000000e+00> : vector<16xf32>
    %440 = vector.multi_reduction <add>, %439, %cst_164 [1] : vector<16x16xf32> to vector<16xf32>
    %441 = vector.shape_cast %440 : vector<16xf32> to vector<16x1xf32>
    %442 = tpu.reciprocal %441 : vector<16x1xf32> -> vector<16x1xf32>
    %443 = vector.broadcast %442 : vector<16x1xf32> to vector<16x16xf32>
    %444 = arith.mulf %439, %443 : vector<16x16xf32>
    %cst_165 = arith.constant dense<0.000000e+00> : vector<16x8xf32>
    %445 = tpu.matmul %444, %428, %cst_165 {dimension_numbers = #tpu.dot_dimension_numbers<[1], [0], [0], [1], [0, 0, 1, 1], [], []>} : vector<16x16xf32>, vector<16x8xf32>, vector<16x8xf32> -> vector<16x8xf32>
    %446 = vector.extract_strided_slice %355 {offsets = [24, 0], sizes = [8, 32], strides = [1, 1]} : vector<32x32xf32> to vector<8x32xf32>
    %cst_166 = arith.constant dense<0.000000e+00> : vector<16x32xf32>
    %447 = tpu.matmul %445, %446, %cst_166 {dimension_numbers = #tpu.dot_dimension_numbers<[1], [0], [0], [1], [0, 0, 1, 1], [], []>} : vector<16x8xf32>, vector<8x32xf32>, vector<16x32xf32> -> vector<16x32xf32>
    %448 = arith.addf %425, %447 : vector<16x32xf32>
    %449 = arith.addf %328, %448 : vector<16x32xf32>
    %c0_167 = arith.constant 0 : index
    %c0_168 = arith.constant 0 : index
    %450 = vector.load %arg28[%c0_167, %c0_168] : memref<1x32xf32, #tpu.memory_space<vmem>>, vector<1x32xf32>
    %451 = vector.broadcast %450 : vector<1x32xf32> to vector<16x32xf32>
    %452 = arith.addf %449, %451 : vector<16x32xf32>
    %c0_169 = arith.constant 0 : index
    %c0_170 = arith.constant 0 : index
    %453 = vector.load %arg29[%c0_169, %c0_170] : memref<1x32xf32, #tpu.memory_space<vmem>>, vector<1x32xf32>
    %c0_171 = arith.constant 0 : index
    %c0_172 = arith.constant 0 : index
    %454 = vector.load %arg30[%c0_171, %c0_172] : memref<1x32xf32, #tpu.memory_space<vmem>>, vector<1x32xf32>
    %cst_173 = arith.constant dense<0.000000e+00> : vector<16xf32>
    %455 = vector.multi_reduction <add>, %452, %cst_173 [1] : vector<16x32xf32> to vector<16xf32>
    %456 = vector.shape_cast %455 : vector<16xf32> to vector<16x1xf32>
    %cst_174 = arith.constant 3.200000e+01 : f32
    %457 = vector.broadcast %cst_174 : f32 to vector<16x1xf32>
    %458 = arith.divf %456, %457 : vector<16x1xf32>
    %459 = vector.broadcast %458 : vector<16x1xf32> to vector<16x32xf32>
    %460 = arith.subf %452, %459 : vector<16x32xf32>
    %461 = arith.mulf %460, %460 : vector<16x32xf32>
    %cst_175 = arith.constant dense<0.000000e+00> : vector<16xf32>
    %462 = vector.multi_reduction <add>, %461, %cst_175 [1] : vector<16x32xf32> to vector<16xf32>
    %463 = vector.shape_cast %462 : vector<16xf32> to vector<16x1xf32>
    %cst_176 = arith.constant 3.200000e+01 : f32
    %464 = vector.broadcast %cst_176 : f32 to vector<16x1xf32>
    %465 = arith.divf %463, %464 : vector<16x1xf32>
    %466 = vector.broadcast %458 : vector<16x1xf32> to vector<16x32xf32>
    %467 = arith.subf %452, %466 : vector<16x32xf32>
    %cst_177 = arith.constant 9.99999974E-6 : f32
    %468 = vector.broadcast %cst_177 : f32 to vector<16x1xf32>
    %469 = arith.addf %465, %468 : vector<16x1xf32>
    %470 = math.rsqrt %469 : vector<16x1xf32>
    %471 = vector.broadcast %470 : vector<16x1xf32> to vector<16x32xf32>
    %472 = arith.mulf %467, %471 : vector<16x32xf32>
    %473 = vector.broadcast %453 : vector<1x32xf32> to vector<16x32xf32>
    %474 = arith.mulf %472, %473 : vector<16x32xf32>
    %475 = vector.broadcast %454 : vector<1x32xf32> to vector<16x32xf32>
    %476 = arith.addf %474, %475 : vector<16x32xf32>
    %c0_178 = arith.constant 0 : index
    %c0_179 = arith.constant 0 : index
    %477 = vector.load %arg31[%c0_178, %c0_179] : memref<32x128xf32, #tpu.memory_space<vmem>>, vector<32x128xf32>
    %cst_180 = arith.constant dense<0.000000e+00> : vector<16x128xf32>
    %478 = tpu.matmul %476, %477, %cst_180 {dimension_numbers = #tpu.dot_dimension_numbers<[1], [0], [0], [1], [0, 0, 1, 1], [], []>} : vector<16x32xf32>, vector<32x128xf32>, vector<16x128xf32> -> vector<16x128xf32>
    %c0_181 = arith.constant 0 : index
    %c0_182 = arith.constant 0 : index
    %479 = vector.load %arg32[%c0_181, %c0_182] : memref<1x128xf32, #tpu.memory_space<vmem>>, vector<1x128xf32>
    %480 = vector.broadcast %479 : vector<1x128xf32> to vector<16x128xf32>
    %481 = arith.addf %478, %480 : vector<16x128xf32>
    %cst_183 = arith.constant 0.000000e+00 : f32
    %482 = vector.broadcast %cst_183 : f32 to vector<16x128xf32>
    %483 = arith.maximumf %481, %482 : vector<16x128xf32>
    %c0_184 = arith.constant 0 : index
    %c0_185 = arith.constant 0 : index
    %484 = vector.load %arg33[%c0_184, %c0_185] : memref<128x32xf32, #tpu.memory_space<vmem>>, vector<128x32xf32>
    %cst_186 = arith.constant dense<0.000000e+00> : vector<16x32xf32>
    %485 = tpu.matmul %483, %484, %cst_186 {dimension_numbers = #tpu.dot_dimension_numbers<[1], [0], [0], [1], [0, 0, 1, 1], [], []>} : vector<16x128xf32>, vector<128x32xf32>, vector<16x32xf32> -> vector<16x32xf32>
    %486 = arith.addf %452, %485 : vector<16x32xf32>
    %c0_187 = arith.constant 0 : index
    %c0_188 = arith.constant 0 : index
    %487 = vector.load %arg34[%c0_187, %c0_188] : memref<1x32xf32, #tpu.memory_space<vmem>>, vector<1x32xf32>
    %488 = vector.broadcast %487 : vector<1x32xf32> to vector<16x32xf32>
    %489 = arith.addf %486, %488 : vector<16x32xf32>
    %c0_189 = arith.constant 0 : index
    %c0_190 = arith.constant 0 : index
    %490 = vector.load %arg35[%c0_189, %c0_190] : memref<1x32xf32, #tpu.memory_space<vmem>>, vector<1x32xf32>
    %c0_191 = arith.constant 0 : index
    %c0_192 = arith.constant 0 : index
    %491 = vector.load %arg36[%c0_191, %c0_192] : memref<1x32xf32, #tpu.memory_space<vmem>>, vector<1x32xf32>
    %cst_193 = arith.constant dense<0.000000e+00> : vector<16xf32>
    %492 = vector.multi_reduction <add>, %489, %cst_193 [1] : vector<16x32xf32> to vector<16xf32>
    %493 = vector.shape_cast %492 : vector<16xf32> to vector<16x1xf32>
    %cst_194 = arith.constant 3.200000e+01 : f32
    %494 = vector.broadcast %cst_194 : f32 to vector<16x1xf32>
    %495 = arith.divf %493, %494 : vector<16x1xf32>
    %496 = vector.broadcast %495 : vector<16x1xf32> to vector<16x32xf32>
    %497 = arith.subf %489, %496 : vector<16x32xf32>
    %498 = arith.mulf %497, %497 : vector<16x32xf32>
    %cst_195 = arith.constant dense<0.000000e+00> : vector<16xf32>
    %499 = vector.multi_reduction <add>, %498, %cst_195 [1] : vector<16x32xf32> to vector<16xf32>
    %500 = vector.shape_cast %499 : vector<16xf32> to vector<16x1xf32>
    %cst_196 = arith.constant 3.200000e+01 : f32
    %501 = vector.broadcast %cst_196 : f32 to vector<16x1xf32>
    %502 = arith.divf %500, %501 : vector<16x1xf32>
    %503 = vector.broadcast %495 : vector<16x1xf32> to vector<16x32xf32>
    %504 = arith.subf %489, %503 : vector<16x32xf32>
    %cst_197 = arith.constant 9.99999974E-6 : f32
    %505 = vector.broadcast %cst_197 : f32 to vector<16x1xf32>
    %506 = arith.addf %502, %505 : vector<16x1xf32>
    %507 = math.rsqrt %506 : vector<16x1xf32>
    %508 = vector.broadcast %507 : vector<16x1xf32> to vector<16x32xf32>
    %509 = arith.mulf %504, %508 : vector<16x32xf32>
    %510 = vector.broadcast %490 : vector<1x32xf32> to vector<16x32xf32>
    %511 = arith.mulf %509, %510 : vector<16x32xf32>
    %512 = vector.broadcast %491 : vector<1x32xf32> to vector<16x32xf32>
    %513 = arith.addf %511, %512 : vector<16x32xf32>
    %c0_198 = arith.constant 0 : index
    %c0_199 = arith.constant 0 : index
    %514 = vector.load %arg37[%c0_198, %c0_199] : memref<32x96xf32, #tpu.memory_space<vmem>>, vector<32x96xf32>
    %cst_200 = arith.constant dense<0.000000e+00> : vector<16x96xf32>
    %515 = tpu.matmul %513, %514, %cst_200 {dimension_numbers = #tpu.dot_dimension_numbers<[1], [0], [0], [1], [0, 0, 1, 1], [], []>} : vector<16x32xf32>, vector<32x96xf32>, vector<16x96xf32> -> vector<16x96xf32>
    %c0_201 = arith.constant 0 : index
    %c0_202 = arith.constant 0 : index
    %516 = vector.load %arg38[%c0_201, %c0_202] : memref<32x32xf32, #tpu.memory_space<vmem>>, vector<32x32xf32>
    %cst_203 = arith.constant 0.000000e+00 : f32
    %517 = vector.broadcast %cst_203 : f32 to vector<16x32xf32>
    %518 = vector.extract_strided_slice %515 {offsets = [0, 0], sizes = [16, 8], strides = [1, 1]} : vector<16x96xf32> to vector<16x8xf32>
    %519 = vector.extract_strided_slice %515 {offsets = [0, 32], sizes = [16, 8], strides = [1, 1]} : vector<16x96xf32> to vector<16x8xf32>
    %520 = vector.extract_strided_slice %515 {offsets = [0, 64], sizes = [16, 8], strides = [1, 1]} : vector<16x96xf32> to vector<16x8xf32>
    %521 = tpu.transpose %519, [1, 0] : vector<16x8xf32> -> vector<8x16xf32>
    %cst_204 = arith.constant dense<0.000000e+00> : vector<16x16xf32>
    %522 = tpu.matmul %518, %521, %cst_204 {dimension_numbers = #tpu.dot_dimension_numbers<[1], [0], [0], [1], [0, 0, 1, 1], [], []>} : vector<16x8xf32>, vector<8x16xf32>, vector<16x16xf32> -> vector<16x16xf32>
    %523 = vector.broadcast %6 : f32 to vector<16x16xf32>
    %524 = arith.mulf %522, %523 : vector<16x16xf32>
    %cst_205 = arith.constant 0xFF800000 : f32
    %525 = vector.broadcast %cst_205 : f32 to vector<16x16xf32>
    %526 = arith.select %4, %524, %525 : vector<16x16xi1>, vector<16x16xf32>
    %cst_206 = arith.constant dense<0xFF800000> : vector<16xf32>
    %527 = vector.multi_reduction <maximumf>, %526, %cst_206 [1] : vector<16x16xf32> to vector<16xf32>
    %528 = vector.shape_cast %527 : vector<16xf32> to vector<16x1xf32>
    %529 = vector.broadcast %528 : vector<16x1xf32> to vector<16x16xf32>
    %530 = arith.subf %526, %529 : vector<16x16xf32>
    %531 = math.exp %530 : vector<16x16xf32>
    %cst_207 = arith.constant dense<0.000000e+00> : vector<16xf32>
    %532 = vector.multi_reduction <add>, %531, %cst_207 [1] : vector<16x16xf32> to vector<16xf32>
    %533 = vector.shape_cast %532 : vector<16xf32> to vector<16x1xf32>
    %534 = tpu.reciprocal %533 : vector<16x1xf32> -> vector<16x1xf32>
    %535 = vector.broadcast %534 : vector<16x1xf32> to vector<16x16xf32>
    %536 = arith.mulf %531, %535 : vector<16x16xf32>
    %cst_208 = arith.constant dense<0.000000e+00> : vector<16x8xf32>
    %537 = tpu.matmul %536, %520, %cst_208 {dimension_numbers = #tpu.dot_dimension_numbers<[1], [0], [0], [1], [0, 0, 1, 1], [], []>} : vector<16x16xf32>, vector<16x8xf32>, vector<16x8xf32> -> vector<16x8xf32>
    %538 = vector.extract_strided_slice %516 {offsets = [0, 0], sizes = [8, 32], strides = [1, 1]} : vector<32x32xf32> to vector<8x32xf32>
    %cst_209 = arith.constant dense<0.000000e+00> : vector<16x32xf32>
    %539 = tpu.matmul %537, %538, %cst_209 {dimension_numbers = #tpu.dot_dimension_numbers<[1], [0], [0], [1], [0, 0, 1, 1], [], []>} : vector<16x8xf32>, vector<8x32xf32>, vector<16x32xf32> -> vector<16x32xf32>
    %540 = arith.addf %517, %539 : vector<16x32xf32>
    %541 = vector.extract_strided_slice %515 {offsets = [0, 8], sizes = [16, 8], strides = [1, 1]} : vector<16x96xf32> to vector<16x8xf32>
    %542 = vector.extract_strided_slice %515 {offsets = [0, 40], sizes = [16, 8], strides = [1, 1]} : vector<16x96xf32> to vector<16x8xf32>
    %543 = vector.extract_strided_slice %515 {offsets = [0, 72], sizes = [16, 8], strides = [1, 1]} : vector<16x96xf32> to vector<16x8xf32>
    %544 = tpu.transpose %542, [1, 0] : vector<16x8xf32> -> vector<8x16xf32>
    %cst_210 = arith.constant dense<0.000000e+00> : vector<16x16xf32>
    %545 = tpu.matmul %541, %544, %cst_210 {dimension_numbers = #tpu.dot_dimension_numbers<[1], [0], [0], [1], [0, 0, 1, 1], [], []>} : vector<16x8xf32>, vector<8x16xf32>, vector<16x16xf32> -> vector<16x16xf32>
    %546 = vector.broadcast %6 : f32 to vector<16x16xf32>
    %547 = arith.mulf %545, %546 : vector<16x16xf32>
    %cst_211 = arith.constant 0xFF800000 : f32
    %548 = vector.broadcast %cst_211 : f32 to vector<16x16xf32>
    %549 = arith.select %4, %547, %548 : vector<16x16xi1>, vector<16x16xf32>
    %cst_212 = arith.constant dense<0xFF800000> : vector<16xf32>
    %550 = vector.multi_reduction <maximumf>, %549, %cst_212 [1] : vector<16x16xf32> to vector<16xf32>
    %551 = vector.shape_cast %550 : vector<16xf32> to vector<16x1xf32>
    %552 = vector.broadcast %551 : vector<16x1xf32> to vector<16x16xf32>
    %553 = arith.subf %549, %552 : vector<16x16xf32>
    %554 = math.exp %553 : vector<16x16xf32>
    %cst_213 = arith.constant dense<0.000000e+00> : vector<16xf32>
    %555 = vector.multi_reduction <add>, %554, %cst_213 [1] : vector<16x16xf32> to vector<16xf32>
    %556 = vector.shape_cast %555 : vector<16xf32> to vector<16x1xf32>
    %557 = tpu.reciprocal %556 : vector<16x1xf32> -> vector<16x1xf32>
    %558 = vector.broadcast %557 : vector<16x1xf32> to vector<16x16xf32>
    %559 = arith.mulf %554, %558 : vector<16x16xf32>
    %cst_214 = arith.constant dense<0.000000e+00> : vector<16x8xf32>
    %560 = tpu.matmul %559, %543, %cst_214 {dimension_numbers = #tpu.dot_dimension_numbers<[1], [0], [0], [1], [0, 0, 1, 1], [], []>} : vector<16x16xf32>, vector<16x8xf32>, vector<16x8xf32> -> vector<16x8xf32>
    %561 = vector.extract_strided_slice %516 {offsets = [8, 0], sizes = [8, 32], strides = [1, 1]} : vector<32x32xf32> to vector<8x32xf32>
    %cst_215 = arith.constant dense<0.000000e+00> : vector<16x32xf32>
    %562 = tpu.matmul %560, %561, %cst_215 {dimension_numbers = #tpu.dot_dimension_numbers<[1], [0], [0], [1], [0, 0, 1, 1], [], []>} : vector<16x8xf32>, vector<8x32xf32>, vector<16x32xf32> -> vector<16x32xf32>
    %563 = arith.addf %540, %562 : vector<16x32xf32>
    %564 = vector.extract_strided_slice %515 {offsets = [0, 16], sizes = [16, 8], strides = [1, 1]} : vector<16x96xf32> to vector<16x8xf32>
    %565 = vector.extract_strided_slice %515 {offsets = [0, 48], sizes = [16, 8], strides = [1, 1]} : vector<16x96xf32> to vector<16x8xf32>
    %566 = vector.extract_strided_slice %515 {offsets = [0, 80], sizes = [16, 8], strides = [1, 1]} : vector<16x96xf32> to vector<16x8xf32>
    %567 = tpu.transpose %565, [1, 0] : vector<16x8xf32> -> vector<8x16xf32>
    %cst_216 = arith.constant dense<0.000000e+00> : vector<16x16xf32>
    %568 = tpu.matmul %564, %567, %cst_216 {dimension_numbers = #tpu.dot_dimension_numbers<[1], [0], [0], [1], [0, 0, 1, 1], [], []>} : vector<16x8xf32>, vector<8x16xf32>, vector<16x16xf32> -> vector<16x16xf32>
    %569 = vector.broadcast %6 : f32 to vector<16x16xf32>
    %570 = arith.mulf %568, %569 : vector<16x16xf32>
    %cst_217 = arith.constant 0xFF800000 : f32
    %571 = vector.broadcast %cst_217 : f32 to vector<16x16xf32>
    %572 = arith.select %4, %570, %571 : vector<16x16xi1>, vector<16x16xf32>
    %cst_218 = arith.constant dense<0xFF800000> : vector<16xf32>
    %573 = vector.multi_reduction <maximumf>, %572, %cst_218 [1] : vector<16x16xf32> to vector<16xf32>
    %574 = vector.shape_cast %573 : vector<16xf32> to vector<16x1xf32>
    %575 = vector.broadcast %574 : vector<16x1xf32> to vector<16x16xf32>
    %576 = arith.subf %572, %575 : vector<16x16xf32>
    %577 = math.exp %576 : vector<16x16xf32>
    %cst_219 = arith.constant dense<0.000000e+00> : vector<16xf32>
    %578 = vector.multi_reduction <add>, %577, %cst_219 [1] : vector<16x16xf32> to vector<16xf32>
    %579 = vector.shape_cast %578 : vector<16xf32> to vector<16x1xf32>
    %580 = tpu.reciprocal %579 : vector<16x1xf32> -> vector<16x1xf32>
    %581 = vector.broadcast %580 : vector<16x1xf32> to vector<16x16xf32>
    %582 = arith.mulf %577, %581 : vector<16x16xf32>
    %cst_220 = arith.constant dense<0.000000e+00> : vector<16x8xf32>
    %583 = tpu.matmul %582, %566, %cst_220 {dimension_numbers = #tpu.dot_dimension_numbers<[1], [0], [0], [1], [0, 0, 1, 1], [], []>} : vector<16x16xf32>, vector<16x8xf32>, vector<16x8xf32> -> vector<16x8xf32>
    %584 = vector.extract_strided_slice %516 {offsets = [16, 0], sizes = [8, 32], strides = [1, 1]} : vector<32x32xf32> to vector<8x32xf32>
    %cst_221 = arith.constant dense<0.000000e+00> : vector<16x32xf32>
    %585 = tpu.matmul %583, %584, %cst_221 {dimension_numbers = #tpu.dot_dimension_numbers<[1], [0], [0], [1], [0, 0, 1, 1], [], []>} : vector<16x8xf32>, vector<8x32xf32>, vector<16x32xf32> -> vector<16x32xf32>
    %586 = arith.addf %563, %585 : vector<16x32xf32>
    %587 = vector.extract_strided_slice %515 {offsets = [0, 24], sizes = [16, 8], strides = [1, 1]} : vector<16x96xf32> to vector<16x8xf32>
    %588 = vector.extract_strided_slice %515 {offsets = [0, 56], sizes = [16, 8], strides = [1, 1]} : vector<16x96xf32> to vector<16x8xf32>
    %589 = vector.extract_strided_slice %515 {offsets = [0, 88], sizes = [16, 8], strides = [1, 1]} : vector<16x96xf32> to vector<16x8xf32>
    %590 = tpu.transpose %588, [1, 0] : vector<16x8xf32> -> vector<8x16xf32>
    %cst_222 = arith.constant dense<0.000000e+00> : vector<16x16xf32>
    %591 = tpu.matmul %587, %590, %cst_222 {dimension_numbers = #tpu.dot_dimension_numbers<[1], [0], [0], [1], [0, 0, 1, 1], [], []>} : vector<16x8xf32>, vector<8x16xf32>, vector<16x16xf32> -> vector<16x16xf32>
    %592 = vector.broadcast %6 : f32 to vector<16x16xf32>
    %593 = arith.mulf %591, %592 : vector<16x16xf32>
    %cst_223 = arith.constant 0xFF800000 : f32
    %594 = vector.broadcast %cst_223 : f32 to vector<16x16xf32>
    %595 = arith.select %4, %593, %594 : vector<16x16xi1>, vector<16x16xf32>
    %cst_224 = arith.constant dense<0xFF800000> : vector<16xf32>
    %596 = vector.multi_reduction <maximumf>, %595, %cst_224 [1] : vector<16x16xf32> to vector<16xf32>
    %597 = vector.shape_cast %596 : vector<16xf32> to vector<16x1xf32>
    %598 = vector.broadcast %597 : vector<16x1xf32> to vector<16x16xf32>
    %599 = arith.subf %595, %598 : vector<16x16xf32>
    %600 = math.exp %599 : vector<16x16xf32>
    %cst_225 = arith.constant dense<0.000000e+00> : vector<16xf32>
    %601 = vector.multi_reduction <add>, %600, %cst_225 [1] : vector<16x16xf32> to vector<16xf32>
    %602 = vector.shape_cast %601 : vector<16xf32> to vector<16x1xf32>
    %603 = tpu.reciprocal %602 : vector<16x1xf32> -> vector<16x1xf32>
    %604 = vector.broadcast %603 : vector<16x1xf32> to vector<16x16xf32>
    %605 = arith.mulf %600, %604 : vector<16x16xf32>
    %cst_226 = arith.constant dense<0.000000e+00> : vector<16x8xf32>
    %606 = tpu.matmul %605, %589, %cst_226 {dimension_numbers = #tpu.dot_dimension_numbers<[1], [0], [0], [1], [0, 0, 1, 1], [], []>} : vector<16x16xf32>, vector<16x8xf32>, vector<16x8xf32> -> vector<16x8xf32>
    %607 = vector.extract_strided_slice %516 {offsets = [24, 0], sizes = [8, 32], strides = [1, 1]} : vector<32x32xf32> to vector<8x32xf32>
    %cst_227 = arith.constant dense<0.000000e+00> : vector<16x32xf32>
    %608 = tpu.matmul %606, %607, %cst_227 {dimension_numbers = #tpu.dot_dimension_numbers<[1], [0], [0], [1], [0, 0, 1, 1], [], []>} : vector<16x8xf32>, vector<8x32xf32>, vector<16x32xf32> -> vector<16x32xf32>
    %609 = arith.addf %586, %608 : vector<16x32xf32>
    %610 = arith.addf %489, %609 : vector<16x32xf32>
    %c0_228 = arith.constant 0 : index
    %c0_229 = arith.constant 0 : index
    %611 = vector.load %arg39[%c0_228, %c0_229] : memref<1x32xf32, #tpu.memory_space<vmem>>, vector<1x32xf32>
    %612 = vector.broadcast %611 : vector<1x32xf32> to vector<16x32xf32>
    %613 = arith.addf %610, %612 : vector<16x32xf32>
    %c0_230 = arith.constant 0 : index
    %c0_231 = arith.constant 0 : index
    %614 = vector.load %arg40[%c0_230, %c0_231] : memref<1x32xf32, #tpu.memory_space<vmem>>, vector<1x32xf32>
    %c0_232 = arith.constant 0 : index
    %c0_233 = arith.constant 0 : index
    %615 = vector.load %arg41[%c0_232, %c0_233] : memref<1x32xf32, #tpu.memory_space<vmem>>, vector<1x32xf32>
    %cst_234 = arith.constant dense<0.000000e+00> : vector<16xf32>
    %616 = vector.multi_reduction <add>, %613, %cst_234 [1] : vector<16x32xf32> to vector<16xf32>
    %617 = vector.shape_cast %616 : vector<16xf32> to vector<16x1xf32>
    %cst_235 = arith.constant 3.200000e+01 : f32
    %618 = vector.broadcast %cst_235 : f32 to vector<16x1xf32>
    %619 = arith.divf %617, %618 : vector<16x1xf32>
    %620 = vector.broadcast %619 : vector<16x1xf32> to vector<16x32xf32>
    %621 = arith.subf %613, %620 : vector<16x32xf32>
    %622 = arith.mulf %621, %621 : vector<16x32xf32>
    %cst_236 = arith.constant dense<0.000000e+00> : vector<16xf32>
    %623 = vector.multi_reduction <add>, %622, %cst_236 [1] : vector<16x32xf32> to vector<16xf32>
    %624 = vector.shape_cast %623 : vector<16xf32> to vector<16x1xf32>
    %cst_237 = arith.constant 3.200000e+01 : f32
    %625 = vector.broadcast %cst_237 : f32 to vector<16x1xf32>
    %626 = arith.divf %624, %625 : vector<16x1xf32>
    %627 = vector.broadcast %619 : vector<16x1xf32> to vector<16x32xf32>
    %628 = arith.subf %613, %627 : vector<16x32xf32>
    %cst_238 = arith.constant 9.99999974E-6 : f32
    %629 = vector.broadcast %cst_238 : f32 to vector<16x1xf32>
    %630 = arith.addf %626, %629 : vector<16x1xf32>
    %631 = math.rsqrt %630 : vector<16x1xf32>
    %632 = vector.broadcast %631 : vector<16x1xf32> to vector<16x32xf32>
    %633 = arith.mulf %628, %632 : vector<16x32xf32>
    %634 = vector.broadcast %614 : vector<1x32xf32> to vector<16x32xf32>
    %635 = arith.mulf %633, %634 : vector<16x32xf32>
    %636 = vector.broadcast %615 : vector<1x32xf32> to vector<16x32xf32>
    %637 = arith.addf %635, %636 : vector<16x32xf32>
    %c0_239 = arith.constant 0 : index
    %c0_240 = arith.constant 0 : index
    %638 = vector.load %arg42[%c0_239, %c0_240] : memref<32x128xf32, #tpu.memory_space<vmem>>, vector<32x128xf32>
    %cst_241 = arith.constant dense<0.000000e+00> : vector<16x128xf32>
    %639 = tpu.matmul %637, %638, %cst_241 {dimension_numbers = #tpu.dot_dimension_numbers<[1], [0], [0], [1], [0, 0, 1, 1], [], []>} : vector<16x32xf32>, vector<32x128xf32>, vector<16x128xf32> -> vector<16x128xf32>
    %c0_242 = arith.constant 0 : index
    %c0_243 = arith.constant 0 : index
    %640 = vector.load %arg43[%c0_242, %c0_243] : memref<1x128xf32, #tpu.memory_space<vmem>>, vector<1x128xf32>
    %641 = vector.broadcast %640 : vector<1x128xf32> to vector<16x128xf32>
    %642 = arith.addf %639, %641 : vector<16x128xf32>
    %cst_244 = arith.constant 0.000000e+00 : f32
    %643 = vector.broadcast %cst_244 : f32 to vector<16x128xf32>
    %644 = arith.maximumf %642, %643 : vector<16x128xf32>
    %c0_245 = arith.constant 0 : index
    %c0_246 = arith.constant 0 : index
    %645 = vector.load %arg44[%c0_245, %c0_246] : memref<128x32xf32, #tpu.memory_space<vmem>>, vector<128x32xf32>
    %cst_247 = arith.constant dense<0.000000e+00> : vector<16x32xf32>
    %646 = tpu.matmul %644, %645, %cst_247 {dimension_numbers = #tpu.dot_dimension_numbers<[1], [0], [0], [1], [0, 0, 1, 1], [], []>} : vector<16x128xf32>, vector<128x32xf32>, vector<16x32xf32> -> vector<16x32xf32>
    %647 = arith.addf %613, %646 : vector<16x32xf32>
    %c0_248 = arith.constant 0 : index
    %c0_249 = arith.constant 0 : index
    %648 = vector.load %arg45[%c0_248, %c0_249] : memref<1x32xf32, #tpu.memory_space<vmem>>, vector<1x32xf32>
    %649 = vector.broadcast %648 : vector<1x32xf32> to vector<16x32xf32>
    %650 = arith.addf %647, %649 : vector<16x32xf32>
    %c0_250 = arith.constant 0 : index
    %c0_251 = arith.constant 0 : index
    %651 = vector.load %arg46[%c0_250, %c0_251] : memref<1x32xf32, #tpu.memory_space<vmem>>, vector<1x32xf32>
    %c0_252 = arith.constant 0 : index
    %c0_253 = arith.constant 0 : index
    %652 = vector.load %arg47[%c0_252, %c0_253] : memref<1x32xf32, #tpu.memory_space<vmem>>, vector<1x32xf32>
    %cst_254 = arith.constant dense<0.000000e+00> : vector<16xf32>
    %653 = vector.multi_reduction <add>, %650, %cst_254 [1] : vector<16x32xf32> to vector<16xf32>
    %654 = vector.shape_cast %653 : vector<16xf32> to vector<16x1xf32>
    %cst_255 = arith.constant 3.200000e+01 : f32
    %655 = vector.broadcast %cst_255 : f32 to vector<16x1xf32>
    %656 = arith.divf %654, %655 : vector<16x1xf32>
    %657 = vector.broadcast %656 : vector<16x1xf32> to vector<16x32xf32>
    %658 = arith.subf %650, %657 : vector<16x32xf32>
    %659 = arith.mulf %658, %658 : vector<16x32xf32>
    %cst_256 = arith.constant dense<0.000000e+00> : vector<16xf32>
    %660 = vector.multi_reduction <add>, %659, %cst_256 [1] : vector<16x32xf32> to vector<16xf32>
    %661 = vector.shape_cast %660 : vector<16xf32> to vector<16x1xf32>
    %cst_257 = arith.constant 3.200000e+01 : f32
    %662 = vector.broadcast %cst_257 : f32 to vector<16x1xf32>
    %663 = arith.divf %661, %662 : vector<16x1xf32>
    %664 = vector.broadcast %656 : vector<16x1xf32> to vector<16x32xf32>
    %665 = arith.subf %650, %664 : vector<16x32xf32>
    %cst_258 = arith.constant 9.99999974E-6 : f32
    %666 = vector.broadcast %cst_258 : f32 to vector<16x1xf32>
    %667 = arith.addf %663, %666 : vector<16x1xf32>
    %668 = math.rsqrt %667 : vector<16x1xf32>
    %669 = vector.broadcast %668 : vector<16x1xf32> to vector<16x32xf32>
    %670 = arith.mulf %665, %669 : vector<16x32xf32>
    %671 = vector.broadcast %651 : vector<1x32xf32> to vector<16x32xf32>
    %672 = arith.mulf %670, %671 : vector<16x32xf32>
    %673 = vector.broadcast %652 : vector<1x32xf32> to vector<16x32xf32>
    %674 = arith.addf %672, %673 : vector<16x32xf32>
    %c0_259 = arith.constant 0 : index
    %c0_260 = arith.constant 0 : index
    %675 = vector.load %arg48[%c0_259, %c0_260] : memref<32x128xf32, #tpu.memory_space<vmem>>, vector<32x128xf32>
    %cst_261 = arith.constant dense<0.000000e+00> : vector<16x128xf32>
    %676 = tpu.matmul %674, %675, %cst_261 {dimension_numbers = #tpu.dot_dimension_numbers<[1], [0], [0], [1], [0, 0, 1, 1], [], []>} : vector<16x32xf32>, vector<32x128xf32>, vector<16x128xf32> -> vector<16x128xf32>
    %c0_262 = arith.constant 0 : index
    %c0_263 = arith.constant 0 : index
    %677 = vector.load %arg49[%c0_262, %c0_263] : memref<1x128xf32, #tpu.memory_space<vmem>>, vector<1x128xf32>
    %678 = vector.broadcast %677 : vector<1x128xf32> to vector<16x128xf32>
    %679 = arith.addf %676, %678 : vector<16x128xf32>
    %680 = vector.shape_cast %679 : vector<16x128xf32> to vector<2x8x128xf32>
    %c0_264 = arith.constant 0 : index
    %c0_265 = arith.constant 0 : index
    %c0_266 = arith.constant 0 : index
    %681 = vector.load %arg50[%c0_264, %c0_265, %c0_266] : memref<2x8x128xf32, #tpu.memory_space<vmem>>, vector<2x8x128xf32>
    tpu.vector_store %arg50[%c0_264, %c0_265, %c0_266], %680 {strides = array<i32>} : memref<2x8x128xf32, #tpu.memory_space<vmem>>, vector<2x8x128xf32>,
    return
  }
}

</mosaic_0001>

<llo_original>
// kernel: tpu_custom_call.1
$region0: #{tpu_custom_call.1}
  #allocation0 [shape = 'u32[]', space=smem, size = 0x4, offset = 0x4, fixed_abs, tag = 'smem constant byte address 0x4 - core index']
  #allocation1 [shape = 'u32[72,128]{1,0:T(1,128)}', space=vmem, size = 0x9000, scoped, tag = 'internal scratch']
  %s0 = inlined_call_operand.smem [shape: u32[51], index: -1, kind: input, shape index: {}]
  %s1 = sld [smem:[%s0]]
  %s2 = scalar_lea.smem %s0, 1
  %s3 = sld [smem:[%s2]]
  %s4 = scalar_lea.smem %s0, 2
  %s5 = sld [smem:[%s4]]
  %s6 = scalar_lea.smem %s0, 3
  %s7 = sld [smem:[%s6]]
  %s8 = scalar_lea.smem %s0, 4
  %s9 = sld [smem:[%s8]]
  %s10 = scalar_lea.smem %s0, 5
  %s11 = sld [smem:[%s10]]
  %s12 = scalar_lea.smem %s0, 6
  %s13 = sld [smem:[%s12]]
  %s14 = scalar_lea.smem %s0, 7
  %s15 = sld [smem:[%s14]]
  %s16 = scalar_lea.smem %s0, 8
  %s17 = sld [smem:[%s16]]
  %s18 = scalar_lea.smem %s0, 9
  %s19 = sld [smem:[%s18]]
  %s20 = scalar_lea.smem %s0, 10
  %s21 = sld [smem:[%s20]]
  %s22 = scalar_lea.smem %s0, 11
  %s23 = sld [smem:[%s22]]
  %s24 = scalar_lea.smem %s0, 12
  %s25 = sld [smem:[%s24]]
  %s26 = scalar_lea.smem %s0, 13
  %s27 = sld [smem:[%s26]]
  %s28 = scalar_lea.smem %s0, 14
  %s29 = sld [smem:[%s28]]
  %s30 = scalar_lea.smem %s0, 15
  %s31 = sld [smem:[%s30]]
  %s32 = scalar_lea.smem %s0, 16
  %s33 = sld [smem:[%s32]]
  %s34 = scalar_lea.smem %s0, 17
  %s35 = sld [smem:[%s34]]
  %s36 = scalar_lea.smem %s0, 18
  %s37 = sld [smem:[%s36]]
  %s38 = scalar_lea.smem %s0, 19
  %s39 = sld [smem:[%s38]]
  %s40 = scalar_lea.smem %s0, 20
  %s41 = sld [smem:[%s40]]
  %s42 = scalar_lea.smem %s0, 21
  %s43 = sld [smem:[%s42]]
  %s44 = scalar_lea.smem %s0, 22
  %s45 = sld [smem:[%s44]]
  %s46 = scalar_lea.smem %s0, 23
  %s47 = sld [smem:[%s46]]
  %s48 = scalar_lea.smem %s0, 24
  %s49 = sld [smem:[%s48]]
  %s50 = scalar_lea.smem %s0, 25
  %s51 = sld [smem:[%s50]]
  %s52 = scalar_lea.smem %s0, 26
  %s53 = sld [smem:[%s52]]
  %s54 = scalar_lea.smem %s0, 27
  %s55 = sld [smem:[%s54]]
  %s56 = scalar_lea.smem %s0, 28
  %s57 = sld [smem:[%s56]]
  %s58 = scalar_lea.smem %s0, 29
  %s59 = sld [smem:[%s58]]
  %s60 = scalar_lea.smem %s0, 30
  %s61 = sld [smem:[%s60]]
  %s62 = scalar_lea.smem %s0, 31
  %s63 = sld [smem:[%s62]]
  %s64 = scalar_lea.smem %s0, 32
  %s65 = sld [smem:[%s64]]
  %s66 = scalar_lea.smem %s0, 33
  %s67 = sld [smem:[%s66]]
  %s68 = scalar_lea.smem %s0, 34
  %s69 = sld [smem:[%s68]]
  %s70 = scalar_lea.smem %s0, 35
  %s71 = sld [smem:[%s70]]
  %s72 = scalar_lea.smem %s0, 36
  %s73 = sld [smem:[%s72]]
  %s74 = scalar_lea.smem %s0, 37
  %s75 = sld [smem:[%s74]]
  %s76 = scalar_lea.smem %s0, 38
  %s77 = sld [smem:[%s76]]
  %s78 = scalar_lea.smem %s0, 39
  %s79 = sld [smem:[%s78]]
  %s80 = scalar_lea.smem %s0, 40
  %s81 = sld [smem:[%s80]]
  %s82 = scalar_lea.smem %s0, 41
  %s83 = sld [smem:[%s82]]
  %s84 = scalar_lea.smem %s0, 42
  %s85 = sld [smem:[%s84]]
  %s86 = scalar_lea.smem %s0, 43
  %s87 = sld [smem:[%s86]]
  %s88 = scalar_lea.smem %s0, 44
  %s89 = sld [smem:[%s88]]
  %s90 = scalar_lea.smem %s0, 45
  %s91 = sld [smem:[%s90]]
  %s92 = scalar_lea.smem %s0, 46
  %s93 = sld [smem:[%s92]]
  %s94 = scalar_lea.smem %s0, 47
  %s95 = sld [smem:[%s94]]
  %s96 = scalar_lea.smem %s0, 48
  %s97 = sld [smem:[%s96]]
  %s98 = scalar_lea.smem %s0, 49
  %s99 = sld [smem:[%s98]]
  %s100 = scalar_lea.smem %s0, 50
  %s101 = sld [smem:[%s100]]
  %s102 = sld [smem:[#allocation0]]
  $region246: #{tpu_custom_call.1} parent=0
    _
  %s104 = ssub.s32 1, %s102
  %s105 = scalar_select 0, %s104, %s102
  $region1: #{tpu_custom_call.1} parent=0
    #allocation2 [shape = 'u8[512]{0}', space=vmem, size = 0x400, scoped, tag = 'input window, operand 36, single buffered']
    #allocation3 [shape = 's32[1]{0}', space=sflag, size = 0x4, scoped, tag = 'scoped memory for tpu_custom_call.1']
    #allocation4 [shape = 's32[1]{0}', space=sflag, size = 0x4, scoped, tag = 'scoped memory for tpu_custom_call.1']
    #allocation5 [shape = 'u8[512]{0}', space=vmem, size = 0x400, scoped, tag = 'input window, operand 39, single buffered']
    #allocation6 [shape = 's32[1]{0}', space=sflag, size = 0x4, scoped, tag = 'scoped memory for tpu_custom_call.1']
    #allocation7 [shape = 'u8[512]{0}', space=vmem, size = 0x400, scoped, tag = 'input window, operand 40, single buffered']
    #allocation8 [shape = 'u8[512]{0}', space=vmem, size = 0x400, scoped, tag = 'input window, operand 41, single buffered']
    #allocation9 [shape = 's32[1]{0}', space=sflag, size = 0x4, scoped, tag = 'scoped memory for tpu_custom_call.1']
    #allocation10 [shape = 'u8[512]{0}', space=vmem, size = 0x400, scoped, tag = 'input window, operand 43, single buffered']
    #allocation11 [shape = 'u8[512]{0}', space=vmem, size = 0x400, scoped, tag = 'input window, operand 45, single buffered']
    #allocation12 [shape = 's32[1]{0}', space=sflag, size = 0x4, scoped, tag = 'scoped memory for tpu_custom_call.1']
    #allocation13 [shape = 'u8[512]{0}', space=vmem, size = 0x400, scoped, tag = 'input window, operand 46, single buffered']
    #allocation14 [shape = 'u8[512]{0}', space=vmem, size = 0x400, scoped, tag = 'input window, operand 47, single buffered']
    #allocation15 [shape = 's32[1]{0}', space=sflag, size = 0x4, scoped, tag = 'scoped memory for tpu_custom_call.1']
    #allocation16 [shape = 'u8[512]{0}', space=vmem, size = 0x400, scoped, tag = 'input window, operand 49, single buffered']
    #allocation17 [shape = 'u8[8192]{0}', space=vmem, size = 0x2000, scoped, tag = 'output window, operand 0, single buffered']
    %106 = vsyncpa [#allocation3], 0
    %107 = vsyncpa [#allocation6], 0
    %108 = vsyncpa [#allocation9], 0
    %109 = vsyncpa [#allocation12], 0
    %110 = vsyncpa [#allocation15], 0
    %111 = vsyncpa [#allocation4], 0
    // Predicated region
    $region2: #{tpu_custom_call.1} parent=1 // pred_check
      _
    $region3: #{tpu_custom_call.1} parent=1 // pred_check_branch
      %113 = sbr.rel (0) target = $region5
    $region4: #{tpu_custom_call.1} parent=1 // pred_region
      _
    $region5: #{tpu_custom_call.1} parent=1 // pred_fallthru
      _
    // Predicated region
    $region6: #{tpu_custom_call.1} parent=1 // pred_check
      _
    $region7: #{tpu_custom_call.1} parent=1 // pred_check_branch
      %115 = sbr.rel (0) target = $region9
    $region8: #{tpu_custom_call.1} parent=1 // pred_region
      _
    $region9: #{tpu_custom_call.1} parent=1 // pred_fallthru
      _
    // Predicated region
    $region10: #{tpu_custom_call.1} parent=1 // pred_check
      _
    $region11: #{tpu_custom_call.1} parent=1 // pred_check_branch
      %117 = sbr.rel (0) target = $region13
    $region12: #{tpu_custom_call.1} parent=1 // pred_region
      _
    $region13: #{tpu_custom_call.1} parent=1 // pred_fallthru
      _
    // Predicated region
    $region14: #{tpu_custom_call.1} parent=1 // pred_check
      _
    $region15: #{tpu_custom_call.1} parent=1 // pred_check_branch
      %119 = sbr.rel (0) target = $region17
    $region16: #{tpu_custom_call.1} parent=1 // pred_region
      _
    $region17: #{tpu_custom_call.1} parent=1 // pred_fallthru
      _
    // Predicated region
    $region18: #{tpu_custom_call.1} parent=1 // pred_check
      _
    $region19: #{tpu_custom_call.1} parent=1 // pred_check_branch
      %121 = sbr.rel (0) target = $region21
    $region20: #{tpu_custom_call.1} parent=1 // pred_region
      _
    $region21: #{tpu_custom_call.1} parent=1 // pred_fallthru
      _
    // Predicated region
    $region22: #{tpu_custom_call.1} parent=1 // pred_check
      _
    $region23: #{tpu_custom_call.1} parent=1 // pred_check_branch
      %123 = sbr.rel (0) target = $region25
    $region24: #{tpu_custom_call.1} parent=1 // pred_region
      _
    $region25: #{tpu_custom_call.1} parent=1 // pred_fallthru
      _
    // Predicated region
    $region26: #{tpu_custom_call.1} parent=1 // pred_check
      _
    $region27: #{tpu_custom_call.1} parent=1 // pred_check_branch
      %125 = sbr.rel (0) target = $region29
    $region28: #{tpu_custom_call.1} parent=1 // pred_region
      _
    $region29: #{tpu_custom_call.1} parent=1 // pred_fallthru
      _
    // Predicated region
    $region30: #{tpu_custom_call.1} parent=1 // pred_check
      _
    $region31: #{tpu_custom_call.1} parent=1 // pred_check_branch
      %127 = sbr.rel (0) target = $region33
    $region32: #{tpu_custom_call.1} parent=1 // pred_region
      _
    $region33: #{tpu_custom_call.1} parent=1 // pred_fallthru
      _
    // Predicated region
    $region34: #{tpu_custom_call.1} parent=1 // pred_check
      _
    $region35: #{tpu_custom_call.1} parent=1 // pred_check_branch
      %129 = sbr.rel (0) target = $region37
    $region36: #{tpu_custom_call.1} parent=1 // pred_region
      _
    $region37: #{tpu_custom_call.1} parent=1 // pred_fallthru
      _
    // Predicated region
    $region38: #{tpu_custom_call.1} parent=1 // pred_check
      _
    $region39: #{tpu_custom_call.1} parent=1 // pred_check_branch
      %131 = sbr.rel (0) target = $region41
    $region40: #{tpu_custom_call.1} parent=1 // pred_region
      _
    $region41: #{tpu_custom_call.1} parent=1 // pred_fallthru
      _
    // Predicated region
    $region42: #{tpu_custom_call.1} parent=1 // pred_check
      _
    $region43: #{tpu_custom_call.1} parent=1 // pred_check_branch
      %133 = sbr.rel (0) target = $region45
    $region44: #{tpu_custom_call.1} parent=1 // pred_region
      _
    $region45: #{tpu_custom_call.1} parent=1 // pred_fallthru
      _
    // Predicated region
    $region46: #{tpu_custom_call.1} parent=1 // pred_check
      _
    $region47: #{tpu_custom_call.1} parent=1 // pred_check_branch
      %135 = sbr.rel (0) target = $region49
    $region48: #{tpu_custom_call.1} parent=1 // pred_region
      _
    $region49: #{tpu_custom_call.1} parent=1 // pred_fallthru
      _
    // Predicated region
    $region50: #{tpu_custom_call.1} parent=1 // pred_check
      _
    $region51: #{tpu_custom_call.1} parent=1 // pred_check_branch
      %137 = sbr.rel (0) target = $region53
    $region52: #{tpu_custom_call.1} parent=1 // pred_region
      _
    $region53: #{tpu_custom_call.1} parent=1 // pred_fallthru
      _
    // Predicated region
    $region54: #{tpu_custom_call.1} parent=1 // pred_check
      _
    $region55: #{tpu_custom_call.1} parent=1 // pred_check_branch
      %139 = sbr.rel (0) target = $region57
    $region56: #{tpu_custom_call.1} parent=1 // pred_region
      _
    $region57: #{tpu_custom_call.1} parent=1 // pred_fallthru
      _
    // Predicated region
    $region58: #{tpu_custom_call.1} parent=1 // pred_check
      _
    $region59: #{tpu_custom_call.1} parent=1 // pred_check_branch
      %141 = sbr.rel (0) target = $region61
    $region60: #{tpu_custom_call.1} parent=1 // pred_region
      _
    $region61: #{tpu_custom_call.1} parent=1 // pred_fallthru
      _
    // Predicated region
    $region62: #{tpu_custom_call.1} parent=1 // pred_check
      _
    $region63: #{tpu_custom_call.1} parent=1 // pred_check_branch
      %143 = sbr.rel (0) target = $region65
    $region64: #{tpu_custom_call.1} parent=1 // pred_region
      _
    $region65: #{tpu_custom_call.1} parent=1 // pred_fallthru
      _
    // Predicated region
    $region66: #{tpu_custom_call.1} parent=1 // pred_check
      _
    $region67: #{tpu_custom_call.1} parent=1 // pred_check_branch
      %145 = sbr.rel (0) target = $region69
    $region68: #{tpu_custom_call.1} parent=1 // pred_region
      _
    $region69: #{tpu_custom_call.1} parent=1 // pred_fallthru
      _
    // Predicated region
    $region70: #{tpu_custom_call.1} parent=1 // pred_check
      _
    $region71: #{tpu_custom_call.1} parent=1 // pred_check_branch
      %147 = sbr.rel (0) target = $region73
    $region72: #{tpu_custom_call.1} parent=1 // pred_region
      _
    $region73: #{tpu_custom_call.1} parent=1 // pred_fallthru
      _
    // Predicated region
    $region74: #{tpu_custom_call.1} parent=1 // pred_check
      _
    $region75: #{tpu_custom_call.1} parent=1 // pred_check_branch
      %149 = sbr.rel (0) target = $region77
    $region76: #{tpu_custom_call.1} parent=1 // pred_region
      _
    $region77: #{tpu_custom_call.1} parent=1 // pred_fallthru
      _
    // Predicated region
    $region78: #{tpu_custom_call.1} parent=1 // pred_check
      _
    $region79: #{tpu_custom_call.1} parent=1 // pred_check_branch
      %151 = sbr.rel (0) target = $region81
    $region80: #{tpu_custom_call.1} parent=1 // pred_region
      _
    $region81: #{tpu_custom_call.1} parent=1 // pred_fallthru
      _
    // Predicated region
    $region82: #{tpu_custom_call.1} parent=1 // pred_check
      _
    $region83: #{tpu_custom_call.1} parent=1 // pred_check_branch
      %153 = sbr.rel (0) target = $region85
    $region84: #{tpu_custom_call.1} parent=1 // pred_region
      _
    $region85: #{tpu_custom_call.1} parent=1 // pred_fallthru
      _
    // Predicated region
    $region86: #{tpu_custom_call.1} parent=1 // pred_check
      _
    $region87: #{tpu_custom_call.1} parent=1 // pred_check_branch
      %155 = sbr.rel (0) target = $region89
    $region88: #{tpu_custom_call.1} parent=1 // pred_region
      _
    $region89: #{tpu_custom_call.1} parent=1 // pred_fallthru
      _
    // Predicated region
    $region90: #{tpu_custom_call.1} parent=1 // pred_check
      _
    $region91: #{tpu_custom_call.1} parent=1 // pred_check_branch
      %157 = sbr.rel (0) target = $region93
    $region92: #{tpu_custom_call.1} parent=1 // pred_region
      _
    $region93: #{tpu_custom_call.1} parent=1 // pred_fallthru
      _
    // Predicated region
    $region94: #{tpu_custom_call.1} parent=1 // pred_check
      _
    $region95: #{tpu_custom_call.1} parent=1 // pred_check_branch
      %159 = sbr.rel (0) target = $region97
    $region96: #{tpu_custom_call.1} parent=1 // pred_region
      _
    $region97: #{tpu_custom_call.1} parent=1 // pred_fallthru
      _
    // Predicated region
    $region98: #{tpu_custom_call.1} parent=1 // pred_check
      _
    $region99: #{tpu_custom_call.1} parent=1 // pred_check_branch
      %161 = sbr.rel (0) target = $region101
    $region100: #{tpu_custom_call.1} parent=1 // pred_region
      _
    $region101: #{tpu_custom_call.1} parent=1 // pred_fallthru
      _
    // Predicated region
    $region102: #{tpu_custom_call.1} parent=1 // pred_check
      _
    $region103: #{tpu_custom_call.1} parent=1 // pred_check_branch
      %163 = sbr.rel (0) target = $region105
    $region104: #{tpu_custom_call.1} parent=1 // pred_region
      _
    $region105: #{tpu_custom_call.1} parent=1 // pred_fallthru
      _
    // Predicated region
    $region106: #{tpu_custom_call.1} parent=1 // pred_check
      _
    $region107: #{tpu_custom_call.1} parent=1 // pred_check_branch
      %165 = sbr.rel (0) target = $region109
    $region108: #{tpu_custom_call.1} parent=1 // pred_region
      _
    $region109: #{tpu_custom_call.1} parent=1 // pred_fallthru
      _
    // Predicated region
    $region110: #{tpu_custom_call.1} parent=1 // pred_check
      _
    $region111: #{tpu_custom_call.1} parent=1 // pred_check_branch
      %167 = sbr.rel (0) target = $region113
    $region112: #{tpu_custom_call.1} parent=1 // pred_region
      _
    $region113: #{tpu_custom_call.1} parent=1 // pred_fallthru
      _
    // Predicated region
    $region114: #{tpu_custom_call.1} parent=1 // pred_check
      _
    $region115: #{tpu_custom_call.1} parent=1 // pred_check_branch
      %169 = sbr.rel (0) target = $region117
    $region116: #{tpu_custom_call.1} parent=1 // pred_region
      _
    $region117: #{tpu_custom_call.1} parent=1 // pred_fallthru
      _
    // Predicated region
    $region118: #{tpu_custom_call.1} parent=1 // pred_check
      _
    $region119: #{tpu_custom_call.1} parent=1 // pred_check_branch
      %171 = sbr.rel (0) target = $region121
    $region120: #{tpu_custom_call.1} parent=1 // pred_region
      _
    $region121: #{tpu_custom_call.1} parent=1 // pred_fallthru
      _
    // Predicated region
    $region122: #{tpu_custom_call.1} parent=1 // pred_check
      _
    $region123: #{tpu_custom_call.1} parent=1 // pred_check_branch
      %173 = sbr.rel (0) target = $region125
    $region124: #{tpu_custom_call.1} parent=1 // pred_region
      _
    $region125: #{tpu_custom_call.1} parent=1 // pred_fallthru
      _
    // Predicated region
    $region126: #{tpu_custom_call.1} parent=1 // pred_check
      _
    $region127: #{tpu_custom_call.1} parent=1 // pred_check_branch
      %175 = sbr.rel (0) target = $region129
    $region128: #{tpu_custom_call.1} parent=1 // pred_region
      _
    $region129: #{tpu_custom_call.1} parent=1 // pred_fallthru
      _
    // Predicated region
    $region130: #{tpu_custom_call.1} parent=1 // pred_check
      _
    $region131: #{tpu_custom_call.1} parent=1 // pred_check_branch
      %177 = sbr.rel (0) target = $region133
    $region132: #{tpu_custom_call.1} parent=1 // pred_region
      _
    $region133: #{tpu_custom_call.1} parent=1 // pred_fallthru
      _
    // Predicated region
    $region134: #{tpu_custom_call.1} parent=1 // pred_check
      _
    $region135: #{tpu_custom_call.1} parent=1 // pred_check_branch
      %179 = sbr.rel (0) target = $region137
    $region136: #{tpu_custom_call.1} parent=1 // pred_region
      _
    $region137: #{tpu_custom_call.1} parent=1 // pred_fallthru
      _
    // Predicated region
    $region138: #{tpu_custom_call.1} parent=1 // pred_check
      _
    $region139: #{tpu_custom_call.1} parent=1 // pred_check_branch
      %181 = sbr.rel (0) target = $region141
    $region140: #{tpu_custom_call.1} parent=1 // pred_region
      _
    $region141: #{tpu_custom_call.1} parent=1 // pred_fallthru
      _
    // Predicated region
    $region142: #{tpu_custom_call.1} parent=1 // pred_check
      _
    $region143: #{tpu_custom_call.1} parent=1 // pred_check_branch
      %183 = sbr.rel (0) target = $region145
    $region144: #{tpu_custom_call.1} parent=1 // pred_region
      _
    $region145: #{tpu_custom_call.1} parent=1 // pred_fallthru
      _
    // Predicated region
    $region146: #{tpu_custom_call.1} parent=1 // pred_check
      _
    $region147: #{tpu_custom_call.1} parent=1 // pred_check_branch
      %185 = sbr.rel (0) target = $region149
    $region148: #{tpu_custom_call.1} parent=1 // pred_region
      %187 = vsyncadd [#allocation3], 0
      %s189 = sshll.u32 %s73, 4
      %s190 = int_to_ptr.hbm [resolvable:$true] %s189
      %s191 = sshll.u32 [#allocation2], 4
      %s192 = int_to_ptr.vmem [resolvable:$true] %s191
      %194 = dma.hbm_to_vmem [thread:$0]  %s190, 16, %s192, [#allocation3]
    $region149: #{tpu_custom_call.1} parent=1 // pred_fallthru
      _
    // Predicated region
    $region150: #{tpu_custom_call.1} parent=1 // pred_check
      _
    $region151: #{tpu_custom_call.1} parent=1 // pred_check_branch
      %196 = sbr.rel (0) target = $region153
    $region152: #{tpu_custom_call.1} parent=1 // pred_region
      _
    $region153: #{tpu_custom_call.1} parent=1 // pred_fallthru
      _
    // Predicated region
    $region154: #{tpu_custom_call.1} parent=1 // pred_check
      _
    $region155: #{tpu_custom_call.1} parent=1 // pred_check_branch
      %198 = sbr.rel (0) target = $region157
    $region156: #{tpu_custom_call.1} parent=1 // pred_region
      _
    $region157: #{tpu_custom_call.1} parent=1 // pred_fallthru
      _
    // Predicated region
    $region158: #{tpu_custom_call.1} parent=1 // pred_check
      _
    $region159: #{tpu_custom_call.1} parent=1 // pred_check_branch
      %200 = sbr.rel (0) target = $region161
    $region160: #{tpu_custom_call.1} parent=1 // pred_region
      %202 = vsyncadd [#allocation6], 0
      %s204 = sshll.u32 %s79, 4
      %s205 = int_to_ptr.hbm [resolvable:$true] %s204
      %s206 = sshll.u32 [#allocation5], 4
      %s207 = int_to_ptr.vmem [resolvable:$true] %s206
      %209 = dma.hbm_to_vmem [thread:$0]  %s205, 16, %s207, [#allocation6]
    $region161: #{tpu_custom_call.1} parent=1 // pred_fallthru
      _
    // Predicated region
    $region162: #{tpu_custom_call.1} parent=1 // pred_check
      _
    $region163: #{tpu_custom_call.1} parent=1 // pred_check_branch
      %211 = sbr.rel (0) target = $region165
    $region164: #{tpu_custom_call.1} parent=1 // pred_region
      %213 = vsyncadd [#allocation6], 0
      %s215 = sshll.u32 %s81, 4
      %s216 = int_to_ptr.hbm [resolvable:$true] %s215
      %s217 = sshll.u32 [#allocation7], 4
      %s218 = int_to_ptr.vmem [resolvable:$true] %s217
      %220 = dma.hbm_to_vmem [thread:$0]  %s216, 16, %s218, [#allocation6]
    $region165: #{tpu_custom_call.1} parent=1 // pred_fallthru
      _
    // Predicated region
    $region166: #{tpu_custom_call.1} parent=1 // pred_check
      _
    $region167: #{tpu_custom_call.1} parent=1 // pred_check_branch
      %222 = sbr.rel (0) target = $region169
    $region168: #{tpu_custom_call.1} parent=1 // pred_region
      %224 = vsyncadd [#allocation9], 0
      %s226 = sshll.u32 %s83, 4
      %s227 = int_to_ptr.hbm [resolvable:$true] %s226
      %s228 = sshll.u32 [#allocation8], 4
      %s229 = int_to_ptr.vmem [resolvable:$true] %s228
      %231 = dma.hbm_to_vmem [thread:$0]  %s227, 16, %s229, [#allocation9]
    $region169: #{tpu_custom_call.1} parent=1 // pred_fallthru
      _
    // Predicated region
    $region170: #{tpu_custom_call.1} parent=1 // pred_check
      _
    $region171: #{tpu_custom_call.1} parent=1 // pred_check_branch
      %233 = sbr.rel (0) target = $region173
    $region172: #{tpu_custom_call.1} parent=1 // pred_region
      _
    $region173: #{tpu_custom_call.1} parent=1 // pred_fallthru
      _
    // Predicated region
    $region174: #{tpu_custom_call.1} parent=1 // pred_check
      _
    $region175: #{tpu_custom_call.1} parent=1 // pred_check_branch
      %235 = sbr.rel (0) target = $region177
    $region176: #{tpu_custom_call.1} parent=1 // pred_region
      %237 = vsyncadd [#allocation9], 0
      %s239 = sshll.u32 %s87, 4
      %s240 = int_to_ptr.hbm [resolvable:$true] %s239
      %s241 = sshll.u32 [#allocation10], 4
      %s242 = int_to_ptr.vmem [resolvable:$true] %s241
      %244 = dma.hbm_to_vmem [thread:$0]  %s240, 16, %s242, [#allocation9]
    $region177: #{tpu_custom_call.1} parent=1 // pred_fallthru
      _
    // Predicated region
    $region178: #{tpu_custom_call.1} parent=1 // pred_check
      _
    $region179: #{tpu_custom_call.1} parent=1 // pred_check_branch
      %246 = sbr.rel (0) target = $region181
    $region180: #{tpu_custom_call.1} parent=1 // pred_region
      _
    $region181: #{tpu_custom_call.1} parent=1 // pred_fallthru
      _
    // Predicated region
    $region182: #{tpu_custom_call.1} parent=1 // pred_check
      _
    $region183: #{tpu_custom_call.1} parent=1 // pred_check_branch
      %248 = sbr.rel (0) target = $region185
    $region184: #{tpu_custom_call.1} parent=1 // pred_region
      %250 = vsyncadd [#allocation12], 0
      %s252 = sshll.u32 %s91, 4
      %s253 = int_to_ptr.hbm [resolvable:$true] %s252
      %s254 = sshll.u32 [#allocation11], 4
      %s255 = int_to_ptr.vmem [resolvable:$true] %s254
      %257 = dma.hbm_to_vmem [thread:$0]  %s253, 16, %s255, [#allocation12]
    $region185: #{tpu_custom_call.1} parent=1 // pred_fallthru
      _
    // Predicated region
    $region186: #{tpu_custom_call.1} parent=1 // pred_check
      _
    $region187: #{tpu_custom_call.1} parent=1 // pred_check_branch
      %259 = sbr.rel (0) target = $region189
    $region188: #{tpu_custom_call.1} parent=1 // pred_region
      %261 = vsyncadd [#allocation12], 0
      %s263 = sshll.u32 %s93, 4
      %s264 = int_to_ptr.hbm [resolvable:$true] %s263
      %s265 = sshll.u32 [#allocation13], 4
      %s266 = int_to_ptr.vmem [resolvable:$true] %s265
      %268 = dma.hbm_to_vmem [thread:$0]  %s264, 16, %s266, [#allocation12]
    $region189: #{tpu_custom_call.1} parent=1 // pred_fallthru
      _
    // Predicated region
    $region190: #{tpu_custom_call.1} parent=1 // pred_check
      _
    $region191: #{tpu_custom_call.1} parent=1 // pred_check_branch
      %270 = sbr.rel (0) target = $region193
    $region192: #{tpu_custom_call.1} parent=1 // pred_region
      %272 = vsyncadd [#allocation15], 0
      %s274 = sshll.u32 %s95, 4
      %s275 = int_to_ptr.hbm [resolvable:$true] %s274
      %s276 = sshll.u32 [#allocation14], 4
      %s277 = int_to_ptr.vmem [resolvable:$true] %s276
      %279 = dma.hbm_to_vmem [thread:$0]  %s275, 16, %s277, [#allocation15]
    $region193: #{tpu_custom_call.1} parent=1 // pred_fallthru
      _
    // Predicated region
    $region194: #{tpu_custom_call.1} parent=1 // pred_check
      _
    $region195: #{tpu_custom_call.1} parent=1 // pred_check_branch
      %281 = sbr.rel (0) target = $region197
    $region196: #{tpu_custom_call.1} parent=1 // pred_region
      _
    $region197: #{tpu_custom_call.1} parent=1 // pred_fallthru
      _
    // Predicated region
    $region198: #{tpu_custom_call.1} parent=1 // pred_check
      _
    $region199: #{tpu_custom_call.1} parent=1 // pred_check_branch
      %283 = sbr.rel (0) target = $region201
    $region200: #{tpu_custom_call.1} parent=1 // pred_region
      %285 = vsyncadd [#allocation15], 0
      %s287 = sshll.u32 %s99, 4
      %s288 = int_to_ptr.hbm [resolvable:$true] %s287
      %s289 = sshll.u32 [#allocation16], 4
      %s290 = int_to_ptr.vmem [resolvable:$true] %s289
      %292 = dma.hbm_to_vmem [thread:$0]  %s288, 16, %s290, [#allocation15]
    $region201: #{tpu_custom_call.1} parent=1 // pred_fallthru
      _
    // Predicated region
    $region202: #{tpu_custom_call.1} parent=1 // pred_check
      _
    $region203: #{tpu_custom_call.1} parent=1 // pred_check_branch
      %294 = sbr.rel (0) target = $region205
    $region204: #{tpu_custom_call.1} parent=1 // pred_region
      %296 = dma.done [#allocation3], 16
    $region205: #{tpu_custom_call.1} parent=1 // pred_fallthru
      _
    // Predicated region
    $region206: #{tpu_custom_call.1} parent=1 // pred_check
      _
    $region207: #{tpu_custom_call.1} parent=1 // pred_check_branch
      %298 = sbr.rel (0) target = $region209
    $region208: #{tpu_custom_call.1} parent=1 // pred_region
      %300 = dma.done [#allocation6], 16
    $region209: #{tpu_custom_call.1} parent=1 // pred_fallthru
      _
    // Predicated region
    $region210: #{tpu_custom_call.1} parent=1 // pred_check
      _
    $region211: #{tpu_custom_call.1} parent=1 // pred_check_branch
      %302 = sbr.rel (0) target = $region213
    $region212: #{tpu_custom_call.1} parent=1 // pred_region
      %304 = dma.done [#allocation6], 16
    $region213: #{tpu_custom_call.1} parent=1 // pred_fallthru
      _
    // Predicated region
    $region214: #{tpu_custom_call.1} parent=1 // pred_check
      _
    $region215: #{tpu_custom_call.1} parent=1 // pred_check_branch
      %306 = sbr.rel (0) target = $region217
    $region216: #{tpu_custom_call.1} parent=1 // pred_region
      %308 = dma.done [#allocation9], 16
    $region217: #{tpu_custom_call.1} parent=1 // pred_fallthru
      _
    // Predicated region
    $region218: #{tpu_custom_call.1} parent=1 // pred_check
      _
    $region219: #{tpu_custom_call.1} parent=1 // pred_check_branch
      %310 = sbr.rel (0) target = $region221
    $region220: #{tpu_custom_call.1} parent=1 // pred_region
      %312 = dma.done [#allocation9], 16
    $region221: #{tpu_custom_call.1} parent=1 // pred_fallthru
      _
    // Predicated region
    $region222: #{tpu_custom_call.1} parent=1 // pred_check
      _
    $region223: #{tpu_custom_call.1} parent=1 // pred_check_branch
      %314 = sbr.rel (0) target = $region225
    $region224: #{tpu_custom_call.1} parent=1 // pred_region
      %316 = dma.done [#allocation12], 16
    $region225: #{tpu_custom_call.1} parent=1 // pred_fallthru
      _
    // Predicated region
    $region226: #{tpu_custom_call.1} parent=1 // pred_check
      _
    $region227: #{tpu_custom_call.1} parent=1 // pred_check_branch
      %318 = sbr.rel (0) target = $region229
    $region228: #{tpu_custom_call.1} parent=1 // pred_region
      %320 = dma.done [#allocation12], 16
    $region229: #{tpu_custom_call.1} parent=1 // pred_fallthru
      _
    // Predicated region
    $region230: #{tpu_custom_call.1} parent=1 // pred_check
      _
    $region231: #{tpu_custom_call.1} parent=1 // pred_check_branch
      %322 = sbr.rel (0) target = $region233
    $region232: #{tpu_custom_call.1} parent=1 // pred_region
      %324 = dma.done [#allocation15], 16
    $region233: #{tpu_custom_call.1} parent=1 // pred_fallthru
      _
    // Predicated region
    $region234: #{tpu_custom_call.1} parent=1 // pred_check
      _
    $region235: #{tpu_custom_call.1} parent=1 // pred_check_branch
      %326 = sbr.rel (0) target = $region237
    $region236: #{tpu_custom_call.1} parent=1 // pred_region
      %328 = dma.done [#allocation15], 16
    $region237: #{tpu_custom_call.1} parent=1 // pred_fallthru
      _
    %v329 = vld [vmem:[%s1] sm:$0xff]
    %v330 = vld [vmem:[%s1 + $0x8] sm:$0xff]
    %v331 = vld [vmem:[%s3] sm:$0xff]
    %v332 = vld [vmem:[%s3 + $0x8] sm:$0xff]
    %vm333 = vcmp.ne.f32.partialorder %v331, 0.0
    %vm334 = vcmp.ne.f32.partialorder %v332, 0.0
    %v335 = vld [vmem:[%s5] sm:$0x1]
    %v336 = vld [vmem:[%s7] sm:$0x1]
    %vm337 = vcmask 261120
    %v338 = vsel %vm337, %v329, 0.0
    %339 = vadd.xlane.f32.xlu0 %v338
    %v340 = vpop.xlane.xlu0 %339
    %v341 = vsel %vm337, %v330, 0.0
    %342 = vadd.xlane.f32.xlu0 %v341
    %v343 = vpop.xlane.xlu0 %342
    %v344 = vrcp.pop 32.0
    %v345 = vmul.f32 32.0, %v344
    %v346 = vsub.f32 1.0, %v345
    %v347 = vmul.f32 %v344, %v346
    %v348 = vadd.f32 %v344, %v347
    %vm349 = vweird.f32 %v344
    %v350 = vsel %vm349, %v344, %v348
    %v351 = vmul.f32 %v340, %v350
    %v352 = vmul.f32 %v343, %v350
    %v353 = vsub.f32 %v329, %v351
    %v354 = vsub.f32 %v330, %v352
    %v355 = vmul.f32 %v353, %v353
    %v356 = vmul.f32 %v354, %v354
    %v357 = vsel %vm337, %v355, 0.0
    %358 = vadd.xlane.f32.xlu0 %v357
    %v359 = vpop.xlane.xlu0 %358
    %v360 = vsel %vm337, %v356, 0.0
    %361 = vadd.xlane.f32.xlu0 %v360
    %v362 = vpop.xlane.xlu0 %361
    %v363 = vmul.f32 %v359, %v350
    %v364 = vmul.f32 %v362, %v350
    %v365 = vadd.f32 %v363, 1e-05
    %v366 = vadd.f32 %v364, 1e-05
    %v367 = vrsqrt.pop %v365
    %v368 = vmul.f32 %v367, %v365
    %v369 = vmul.f32 %v368, %v367
    %v370 = vmul.f32 0.5, %v369
    %v371 = vsub.f32 1.5, %v370
    %v372 = vmul.f32 %v367, %v371
    %vm373 = vweird.f32 %v365
    %vm374 = vweird.f32 %v367
    %vm375 = vmor %vm373, %vm374
    %v376 = vsel %vm375, %v367, %v372
    %v377 = vrsqrt.pop %v366
    %v378 = vmul.f32 %v377, %v366
    %v379 = vmul.f32 %v378, %v377
    %v380 = vmul.f32 0.5, %v379
    %v381 = vsub.f32 1.5, %v380
    %v382 = vmul.f32 %v377, %v381
    %vm383 = vweird.f32 %v366
    %vm384 = vweird.f32 %v377
    %vm385 = vmor %vm383, %vm384
    %v386 = vsel %vm385, %v377, %v382
    %v387 = vmul.f32 %v353, %v376
    %v388 = vmul.f32 %v354, %v386
    %v390 = vperm.slane %v335, 0
    %v392 = vmul.f32 %v387, %v390
    %v393 = vmul.f32 %v388, %v390
    %v395 = vperm.slane %v336, 0
    %v397 = vadd.f32 %v392, %v395
    %v398 = vadd.f32 %v393, %v395
    %v399 = vld [vmem:[%s9] sm:$0xff]
    %v400 = vld [vmem:[%s9 + $0x8] sm:$0xff]
    %v401 = vld [vmem:[%s9 + $0x10] sm:$0xff]
    %v402 = vld [vmem:[%s9 + $0x18] sm:$0xff]
    %v404 = vsel %vm337, %v397, 0
    %v407 = vsel %vm337, %v398, 0
    %409 = vmatpush.msra.mxu0 0.0
    %410 = vmatpush.msra.mxu0 0.0
    %411 = vmatpush.msra.mxu0 0.0
    %412 = vmatpush.msra.mxu0 0.0
    %413 = vmatpush.msra.mxu0 0.0
    %414 = vmatpush.msra.mxu0 0.0
    %415 = vmatpush.msra.mxu0 0.0
    %416 = vmatpush.msra.mxu0 0.0
    %417 = vmatpush.msra.mxu0 0.0
    %418 = vmatpush.msra.mxu0 0.0
    %419 = vmatpush.msra.mxu0 0.0
    %420 = vmatpush.msra.mxu0 0.0
    %421 = vmatpush.msra.mxu0 %v402
    %422 = vmatpush.msra.mxu0 %v401
    %423 = vmatpush.msra.mxu0 %v400
    %424 = vmatpush.msra.mxu0 %v399
    %425 = vmatmul.f32.gmra.mxu0 %v404
    %v426 = vpop.f32.mrf.mxu0
    %v427 = vadd.f32 0.0, %v426
    %428 = vmatmul.f32.gmra.mxu0 %v407
    %v429 = vpop.f32.mrf.mxu0
    %v430 = vadd.f32 0.0, %v429
    %431 = vdwg.mxu0
    %v432 = vld [vmem:[%s11] sm:$0xff]
    %v433 = vld [vmem:[%s11 + $0x8] sm:$0xff]
    %v434 = vld [vmem:[%s11 + $0x10] sm:$0xff]
    %v435 = vld [vmem:[%s11 + $0x18] sm:$0xff]
    %438 = vrot.lane.b32.xlu0 %v427, 96
    %v439 = vpop.permute.xlu0 %438
    %440 = vrot.lane.b32.xlu0 %v430, 96
    %v441 = vpop.permute.xlu0 %440
    %vm442 = vcmask 64512
    %v443 = vsel %vm442, %v427, 0
    %v445 = vsel %vm442, %v430, 0
    %v447 = vsel %vm442, %v439, 0
    %v449 = vsel %vm442, %v441, 0
    %451 = vmatpush.xpose.msra.mxu0 0.0
    %452 = vmatpush.xpose.msra.mxu0 0.0
    %453 = vmatpush.xpose.msra.mxu0 0.0
    %454 = vmatpush.xpose.msra.mxu0 0.0
    %455 = vmatpush.xpose.msra.mxu0 0.0
    %456 = vmatpush.xpose.msra.mxu0 0.0
    %457 = vmatpush.xpose.msra.mxu0 0.0
    %458 = vmatpush.xpose.msra.mxu0 0.0
    %459 = vmatpush.xpose.msra.mxu0 0.0
    %460 = vmatpush.xpose.msra.mxu0 0.0
    %461 = vmatpush.xpose.msra.mxu0 0.0
    %462 = vmatpush.xpose.msra.mxu0 0.0
    %463 = vmatpush.xpose.msra.mxu0 0.0
    %464 = vmatpush.xpose.msra.mxu0 0.0
    %465 = vmatpush.xpose.msra.mxu0 %v449
    %466 = vmatpush.xpose.msra.mxu0 %v447
    %467 = vmatmul.f32.gmra.mxu0 %v443
    %v468 = vpop.f32.mrf.mxu0
    %v469 = vadd.f32 0.0, %v468
    %470 = vmatmul.f32.gmra.mxu0 %v445
    %v471 = vpop.f32.mrf.mxu0
    %v472 = vadd.f32 0.0, %v471
    %473 = vdwg.mxu0
    %v474 = vmul.f32 %v469, 0.17677669
    %v475 = vmul.f32 %v472, 0.17677669
    %v476 = vsel %vm333, %v474, -inf
    %v477 = vsel %vm334, %v475, -inf
    %vm478 = vcmask 130048
    %v479 = vsel %vm478, %v476, -inf
    %480 = vmax.xlane.f32.xlu0 %v479
    %v481 = vpop.xlane.xlu0 %480
    %v482 = vsel %vm478, %v477, -inf
    %483 = vmax.xlane.f32.xlu0 %v482
    %v484 = vpop.xlane.xlu0 %483
    %v485 = vsub.f32 %v476, %v481
    %v486 = vsub.f32 %v477, %v484
    %v487 = vmul.f32 %v485, 1.442695
    %v488 = vpow.pop %v487
    %v489 = vmul.f32 %v486, 1.442695
    %v490 = vpow.pop %v489
    %v491 = vsel %vm478, %v488, 0.0
    %492 = vadd.xlane.f32.xlu0 %v491
    %v493 = vpop.xlane.xlu0 %492
    %v494 = vsel %vm478, %v490, 0.0
    %495 = vadd.xlane.f32.xlu0 %v494
    %v496 = vpop.xlane.xlu0 %495
    %v497 = vrcp.pop %v493
    %v498 = vmul.f32 %v493, %v497
    %v499 = vsub.f32 1.0, %v498
    %v500 = vmul.f32 %v497, %v499
    %v501 = vadd.f32 %v497, %v500
    %vm502 = vweird.f32 %v493
    %vm503 = vweird.f32 %v497
    %vm504 = vmor %vm502, %vm503
    %v505 = vsel %vm504, %v497, %v501
    %v506 = vand.u32 2147483647, %v493
    %vm507 = vcmp.eq.f32.partialorder %v506, 8.507059e+37
    %v508 = vand.u32 %v493, 2147483648
    %v509 = vor.u32 1.1754944e-38, %v508
    %v510 = vsel %vm507, %v509, %v505
    %v511 = vrcp.pop %v496
    %v512 = vmul.f32 %v496, %v511
    %v513 = vsub.f32 1.0, %v512
    %v514 = vmul.f32 %v511, %v513
    %v515 = vadd.f32 %v511, %v514
    %vm516 = vweird.f32 %v496
    %vm517 = vweird.f32 %v511
    %vm518 = vmor %vm516, %vm517
    %v519 = vsel %vm518, %v511, %v515
    %v520 = vand.u32 2147483647, %v496
    %vm521 = vcmp.eq.f32.partialorder %v520, 8.507059e+37
    %v522 = vand.u32 %v496, 2147483648
    %v523 = vor.u32 1.1754944e-38, %v522
    %v524 = vsel %vm521, %v523, %v519
    %v525 = vmul.f32 %v488, %v510
    %v526 = vmul.f32 %v490, %v524
    %527 = vrot.lane.b32.xlu0 %v427, 64
    %v528 = vpop.permute.xlu0 %527
    %529 = vrot.lane.b32.xlu0 %v430, 64
    %v530 = vpop.permute.xlu0 %529
    %v534 = vsel %vm478, %v525, 0
    %v537 = vsel %vm478, %v526, 0
    %539 = vmatpush.msra.mxu0 0.0
    %540 = vmatpush.msra.mxu0 0.0
    %541 = vmatpush.msra.mxu0 0.0
    %542 = vmatpush.msra.mxu0 0.0
    %543 = vmatpush.msra.mxu0 0.0
    %544 = vmatpush.msra.mxu0 0.0
    %545 = vmatpush.msra.mxu0 0.0
    %546 = vmatpush.msra.mxu0 0.0
    %547 = vmatpush.msra.mxu0 0.0
    %548 = vmatpush.msra.mxu0 0.0
    %549 = vmatpush.msra.mxu0 0.0
    %550 = vmatpush.msra.mxu0 0.0
    %551 = vmatpush.msra.mxu0 0.0
    %552 = vmatpush.msra.mxu0 0.0
    %553 = vmatpush.msra.mxu0 %v530
    %554 = vmatpush.msra.mxu0 %v528
    %555 = vmatmul.f32.gmra.mxu0 %v534
    %v556 = vpop.f32.mrf.mxu0
    %v557 = vadd.f32 0.0, %v556
    %558 = vmatmul.f32.gmra.mxu0 %v537
    %v559 = vpop.f32.mrf.mxu0
    %v560 = vadd.f32 0.0, %v559
    %561 = vdwg.mxu0
    %562 = vrot.lane.b32.xlu0 %v427, 120
    %v563 = vpop.permute.xlu0 %562
    %564 = vrot.lane.b32.xlu0 %v430, 120
    %v565 = vpop.permute.xlu0 %564
    %566 = vrot.lane.b32.xlu0 %v427, 88
    %v567 = vpop.permute.xlu0 %566
    %568 = vrot.lane.b32.xlu0 %v430, 88
    %v569 = vpop.permute.xlu0 %568
    %v570 = vsel %vm442, %v563, 0
    %v572 = vsel %vm442, %v565, 0
    %v574 = vsel %vm442, %v567, 0
    %v576 = vsel %vm442, %v569, 0
    %578 = vmatpush.xpose.msra.mxu0 0.0
    %579 = vmatpush.xpose.msra.mxu0 0.0
    %580 = vmatpush.xpose.msra.mxu0 0.0
    %581 = vmatpush.xpose.msra.mxu0 0.0
    %582 = vmatpush.xpose.msra.mxu0 0.0
    %583 = vmatpush.xpose.msra.mxu0 0.0
    %584 = vmatpush.xpose.msra.mxu0 0.0
    %585 = vmatpush.xpose.msra.mxu0 0.0
    %586 = vmatpush.xpose.msra.mxu0 0.0
    %587 = vmatpush.xpose.msra.mxu0 0.0
    %588 = vmatpush.xpose.msra.mxu0 0.0
    %589 = vmatpush.xpose.msra.mxu0 0.0
    %590 = vmatpush.xpose.msra.mxu0 0.0
    %591 = vmatpush.xpose.msra.mxu0 0.0
    %592 = vmatpush.xpose.msra.mxu0 %v576
    %593 = vmatpush.xpose.msra.mxu0 %v574
    %594 = vmatmul.f32.gmra.mxu0 %v570
    %v595 = vpop.f32.mrf.mxu0
    %v596 = vadd.f32 0.0, %v595
    %597 = vmatmul.f32.gmra.mxu0 %v572
    %v598 = vpop.f32.mrf.mxu0
    %v599 = vadd.f32 0.0, %v598
    %600 = vdwg.mxu0
    %v601 = vmul.f32 %v596, 0.17677669
    %v602 = vmul.f32 %v599, 0.17677669
    %v603 = vsel %vm333, %v601, -inf
    %v604 = vsel %vm334, %v602, -inf
    %v605 = vsel %vm478, %v603, -inf
    %606 = vmax.xlane.f32.xlu0 %v605
    %v607 = vpop.xlane.xlu0 %606
    %v608 = vsel %vm478, %v604, -inf
    %609 = vmax.xlane.f32.xlu0 %v608
    %v610 = vpop.xlane.xlu0 %609
    %v611 = vsub.f32 %v603, %v607
    %v612 = vsub.f32 %v604, %v610
    %v613 = vmul.f32 %v611, 1.442695
    %v614 = vpow.pop %v613
    %v615 = vmul.f32 %v612, 1.442695
    %v616 = vpow.pop %v615
    %v617 = vsel %vm478, %v614, 0.0
    %618 = vadd.xlane.f32.xlu0 %v617
    %v619 = vpop.xlane.xlu0 %618
    %v620 = vsel %vm478, %v616, 0.0
    %621 = vadd.xlane.f32.xlu0 %v620
    %v622 = vpop.xlane.xlu0 %621
    %v623 = vrcp.pop %v619
    %v624 = vmul.f32 %v619, %v623
    %v625 = vsub.f32 1.0, %v624
    %v626 = vmul.f32 %v623, %v625
    %v627 = vadd.f32 %v623, %v626
    %vm628 = vweird.f32 %v619
    %vm629 = vweird.f32 %v623
    %vm630 = vmor %vm628, %vm629
    %v631 = vsel %vm630, %v623, %v627
    %v632 = vand.u32 2147483647, %v619
    %vm633 = vcmp.eq.f32.partialorder %v632, 8.507059e+37
    %v634 = vand.u32 %v619, 2147483648
    %v635 = vor.u32 1.1754944e-38, %v634
    %v636 = vsel %vm633, %v635, %v631
    %v637 = vrcp.pop %v622
    %v638 = vmul.f32 %v622, %v637
    %v639 = vsub.f32 1.0, %v638
    %v640 = vmul.f32 %v637, %v639
    %v641 = vadd.f32 %v637, %v640
    %vm642 = vweird.f32 %v622
    %vm643 = vweird.f32 %v637
    %vm644 = vmor %vm642, %vm643
    %v645 = vsel %vm644, %v637, %v641
    %v646 = vand.u32 2147483647, %v622
    %vm647 = vcmp.eq.f32.partialorder %v646, 8.507059e+37
    %v648 = vand.u32 %v622, 2147483648
    %v649 = vor.u32 1.1754944e-38, %v648
    %v650 = vsel %vm647, %v649, %v645
    %v651 = vmul.f32 %v614, %v636
    %v652 = vmul.f32 %v616, %v650
    %653 = vrot.lane.b32.xlu0 %v427, 56
    %v654 = vpop.permute.xlu0 %653
    %655 = vrot.lane.b32.xlu0 %v430, 56
    %v656 = vpop.permute.xlu0 %655
    %v660 = vsel %vm478, %v651, 0
    %v663 = vsel %vm478, %v652, 0
    %665 = vmatpush.msra.mxu0 0.0
    %666 = vmatpush.msra.mxu0 0.0
    %667 = vmatpush.msra.mxu0 0.0
    %668 = vmatpush.msra.mxu0 0.0
    %669 = vmatpush.msra.mxu0 0.0
    %670 = vmatpush.msra.mxu0 0.0
    %671 = vmatpush.msra.mxu0 0.0
    %672 = vmatpush.msra.mxu0 0.0
    %673 = vmatpush.msra.mxu0 0.0
    %674 = vmatpush.msra.mxu0 0.0
    %675 = vmatpush.msra.mxu0 0.0
    %676 = vmatpush.msra.mxu0 0.0
    %677 = vmatpush.msra.mxu0 0.0
    %678 = vmatpush.msra.mxu0 0.0
    %679 = vmatpush.msra.mxu0 %v656
    %680 = vmatpush.msra.mxu0 %v654
    %681 = vmatmul.f32.gmra.mxu0 %v660
    %v682 = vpop.f32.mrf.mxu0
    %v683 = vadd.f32 0.0, %v682
    %684 = vmatmul.f32.gmra.mxu0 %v663
    %v685 = vpop.f32.mrf.mxu0
    %v686 = vadd.f32 0.0, %v685
    %687 = vdwg.mxu0
    %v689 = vsel %vm442, %v683, 0
    %v692 = vsel %vm442, %v686, 0
    %694 = vmatpush.msra.mxu0 0.0
    %695 = vmatpush.msra.mxu0 0.0
    %696 = vmatpush.msra.mxu0 0.0
    %697 = vmatpush.msra.mxu0 0.0
    %698 = vmatpush.msra.mxu0 0.0
    %699 = vmatpush.msra.mxu0 0.0
    %700 = vmatpush.msra.mxu0 0.0
    %701 = vmatpush.msra.mxu0 0.0
    %702 = vmatpush.msra.mxu0 0.0
    %703 = vmatpush.msra.mxu0 0.0
    %704 = vmatpush.msra.mxu0 0.0
    %705 = vmatpush.msra.mxu0 0.0
    %706 = vmatpush.msra.mxu0 0.0
    %707 = vmatpush.msra.mxu0 0.0
    %708 = vmatpush.msra.mxu0 0.0
    %709 = vmatpush.msra.mxu0 %v433
    %710 = vmatmul.f32.gmra.mxu0 %v689
    %v711 = vpop.f32.mrf.mxu0
    %v712 = vadd.f32 0.0, %v711
    %713 = vmatmul.f32.gmra.mxu0 %v692
    %v714 = vpop.f32.mrf.mxu0
    %v715 = vadd.f32 0.0, %v714
    %716 = vdwg.mxu0
    %v718 = vsel %vm442, %v557, 0
    %v721 = vsel %vm442, %v560, 0
    %723 = vmatpush.msra.mxu0 0.0
    %724 = vmatpush.msra.mxu0 0.0
    %725 = vmatpush.msra.mxu0 0.0
    %726 = vmatpush.msra.mxu0 0.0
    %727 = vmatpush.msra.mxu0 0.0
    %728 = vmatpush.msra.mxu0 0.0
    %729 = vmatpush.msra.mxu0 0.0
    %730 = vmatpush.msra.mxu0 0.0
    %731 = vmatpush.msra.mxu0 0.0
    %732 = vmatpush.msra.mxu0 0.0
    %733 = vmatpush.msra.mxu0 0.0
    %734 = vmatpush.msra.mxu0 0.0
    %735 = vmatpush.msra.mxu0 0.0
    %736 = vmatpush.msra.mxu0 0.0
    %737 = vmatpush.msra.mxu0 0.0
    %738 = vmatpush.msra.mxu0 %v432
    %739 = vmatmul.f32.gmra.mxu0 %v718
    %v740 = vpop.f32.mrf.mxu0
    %v741 = vadd.f32 %v712, %v740
    %742 = vmatmul.f32.gmra.mxu0 %v721
    %v743 = vpop.f32.mrf.mxu0
    %v744 = vadd.f32 %v715, %v743
    %745 = vdwg.mxu0
    %746 = vrot.lane.b32.xlu0 %v427, 112
    %v747 = vpop.permute.xlu0 %746
    %748 = vrot.lane.b32.xlu0 %v430, 112
    %v749 = vpop.permute.xlu0 %748
    %750 = vrot.lane.b32.xlu0 %v427, 80
    %v751 = vpop.permute.xlu0 %750
    %752 = vrot.lane.b32.xlu0 %v430, 80
    %v753 = vpop.permute.xlu0 %752
    %v754 = vsel %vm442, %v747, 0
    %v756 = vsel %vm442, %v749, 0
    %v758 = vsel %vm442, %v751, 0
    %v760 = vsel %vm442, %v753, 0
    %762 = vmatpush.xpose.msra.mxu0 0.0
    %763 = vmatpush.xpose.msra.mxu0 0.0
    %764 = vmatpush.xpose.msra.mxu0 0.0
    %765 = vmatpush.xpose.msra.mxu0 0.0
    %766 = vmatpush.xpose.msra.mxu0 0.0
    %767 = vmatpush.xpose.msra.mxu0 0.0
    %768 = vmatpush.xpose.msra.mxu0 0.0
    %769 = vmatpush.xpose.msra.mxu0 0.0
    %770 = vmatpush.xpose.msra.mxu0 0.0
    %771 = vmatpush.xpose.msra.mxu0 0.0
    %772 = vmatpush.xpose.msra.mxu0 0.0
    %773 = vmatpush.xpose.msra.mxu0 0.0
    %774 = vmatpush.xpose.msra.mxu0 0.0
    %775 = vmatpush.xpose.msra.mxu0 0.0
    %776 = vmatpush.xpose.msra.mxu0 %v760
    %777 = vmatpush.xpose.msra.mxu0 %v758
    %778 = vmatmul.f32.gmra.mxu0 %v754
    %v779 = vpop.f32.mrf.mxu0
    %v780 = vadd.f32 0.0, %v779
    %781 = vmatmul.f32.gmra.mxu0 %v756
    %v782 = vpop.f32.mrf.mxu0
    %v783 = vadd.f32 0.0, %v782
    %784 = vdwg.mxu0
    %v785 = vmul.f32 %v780, 0.17677669
    %v786 = vmul.f32 %v783, 0.17677669
    %v787 = vsel %vm333, %v785, -inf
    %v788 = vsel %vm334, %v786, -inf
    %v789 = vsel %vm478, %v787, -inf
    %790 = vmax.xlane.f32.xlu0 %v789
    %v791 = vpop.xlane.xlu0 %790
    %v792 = vsel %vm478, %v788, -inf
    %793 = vmax.xlane.f32.xlu0 %v792
    %v794 = vpop.xlane.xlu0 %793
    %v795 = vsub.f32 %v787, %v791
    %v796 = vsub.f32 %v788, %v794
    %v797 = vmul.f32 %v795, 1.442695
    %v798 = vpow.pop %v797
    %v799 = vmul.f32 %v796, 1.442695
    %v800 = vpow.pop %v799
    %v801 = vsel %vm478, %v798, 0.0
    %802 = vadd.xlane.f32.xlu0 %v801
    %v803 = vpop.xlane.xlu0 %802
    %v804 = vsel %vm478, %v800, 0.0
    %805 = vadd.xlane.f32.xlu0 %v804
    %v806 = vpop.xlane.xlu0 %805
    %v807 = vrcp.pop %v803
    %v808 = vmul.f32 %v803, %v807
    %v809 = vsub.f32 1.0, %v808
    %v810 = vmul.f32 %v807, %v809
    %v811 = vadd.f32 %v807, %v810
    %vm812 = vweird.f32 %v803
    %vm813 = vweird.f32 %v807
    %vm814 = vmor %vm812, %vm813
    %v815 = vsel %vm814, %v807, %v811
    %v816 = vand.u32 2147483647, %v803
    %vm817 = vcmp.eq.f32.partialorder %v816, 8.507059e+37
    %v818 = vand.u32 %v803, 2147483648
    %v819 = vor.u32 1.1754944e-38, %v818
    %v820 = vsel %vm817, %v819, %v815
    %v821 = vrcp.pop %v806
    %v822 = vmul.f32 %v806, %v821
    %v823 = vsub.f32 1.0, %v822
    %v824 = vmul.f32 %v821, %v823
    %v825 = vadd.f32 %v821, %v824
    %vm826 = vweird.f32 %v806
    %vm827 = vweird.f32 %v821
    %vm828 = vmor %vm826, %vm827
    %v829 = vsel %vm828, %v821, %v825
    %v830 = vand.u32 2147483647, %v806
    %vm831 = vcmp.eq.f32.partialorder %v830, 8.507059e+37
    %v832 = vand.u32 %v806, 2147483648
    %v833 = vor.u32 1.1754944e-38, %v832
    %v834 = vsel %vm831, %v833, %v829
    %v835 = vmul.f32 %v798, %v820
    %v836 = vmul.f32 %v800, %v834
    %837 = vrot.lane.b32.xlu0 %v427, 48
    %v838 = vpop.permute.xlu0 %837
    %839 = vrot.lane.b32.xlu0 %v430, 48
    %v840 = vpop.permute.xlu0 %839
    %v844 = vsel %vm478, %v835, 0
    %v847 = vsel %vm478, %v836, 0
    %849 = vmatpush.msra.mxu0 0.0
    %850 = vmatpush.msra.mxu0 0.0
    %851 = vmatpush.msra.mxu0 0.0
    %852 = vmatpush.msra.mxu0 0.0
    %853 = vmatpush.msra.mxu0 0.0
    %854 = vmatpush.msra.mxu0 0.0
    %855 = vmatpush.msra.mxu0 0.0
    %856 = vmatpush.msra.mxu0 0.0
    %857 = vmatpush.msra.mxu0 0.0
    %858 = vmatpush.msra.mxu0 0.0
    %859 = vmatpush.msra.mxu0 0.0
    %860 = vmatpush.msra.mxu0 0.0
    %861 = vmatpush.msra.mxu0 0.0
    %862 = vmatpush.msra.mxu0 0.0
    %863 = vmatpush.msra.mxu0 %v840
    %864 = vmatpush.msra.mxu0 %v838
    %865 = vmatmul.f32.gmra.mxu0 %v844
    %v866 = vpop.f32.mrf.mxu0
    %v867 = vadd.f32 0.0, %v866
    %868 = vmatmul.f32.gmra.mxu0 %v847
    %v869 = vpop.f32.mrf.mxu0
    %v870 = vadd.f32 0.0, %v869
    %871 = vdwg.mxu0
    %v873 = vsel %vm442, %v867, 0
    %v876 = vsel %vm442, %v870, 0
    %878 = vmatpush.msra.mxu0 0.0
    %879 = vmatpush.msra.mxu0 0.0
    %880 = vmatpush.msra.mxu0 0.0
    %881 = vmatpush.msra.mxu0 0.0
    %882 = vmatpush.msra.mxu0 0.0
    %883 = vmatpush.msra.mxu0 0.0
    %884 = vmatpush.msra.mxu0 0.0
    %885 = vmatpush.msra.mxu0 0.0
    %886 = vmatpush.msra.mxu0 0.0
    %887 = vmatpush.msra.mxu0 0.0
    %888 = vmatpush.msra.mxu0 0.0
    %889 = vmatpush.msra.mxu0 0.0
    %890 = vmatpush.msra.mxu0 0.0
    %891 = vmatpush.msra.mxu0 0.0
    %892 = vmatpush.msra.mxu0 0.0
    %893 = vmatpush.msra.mxu0 %v434
    %894 = vmatmul.f32.gmra.mxu0 %v873
    %v895 = vpop.f32.mrf.mxu0
    %v896 = vadd.f32 0.0, %v895
    %897 = vmatmul.f32.gmra.mxu0 %v876
    %v898 = vpop.f32.mrf.mxu0
    %v899 = vadd.f32 0.0, %v898
    %900 = vdwg.mxu0
    %v901 = vadd.f32 %v741, %v896
    %v902 = vadd.f32 %v744, %v899
    %903 = vrot.lane.b32.xlu0 %v427, 104
    %v904 = vpop.permute.xlu0 %903
    %905 = vrot.lane.b32.xlu0 %v430, 104
    %v906 = vpop.permute.xlu0 %905
    %907 = vrot.lane.b32.xlu0 %v427, 72
    %v908 = vpop.permute.xlu0 %907
    %909 = vrot.lane.b32.xlu0 %v430, 72
    %v910 = vpop.permute.xlu0 %909
    %v911 = vsel %vm442, %v904, 0
    %v913 = vsel %vm442, %v906, 0
    %v915 = vsel %vm442, %v908, 0
    %v917 = vsel %vm442, %v910, 0
    %919 = vmatpush.xpose.msra.mxu0 0.0
    %920 = vmatpush.xpose.msra.mxu0 0.0
    %921 = vmatpush.xpose.msra.mxu0 0.0
    %922 = vmatpush.xpose.msra.mxu0 0.0
    %923 = vmatpush.xpose.msra.mxu0 0.0
    %924 = vmatpush.xpose.msra.mxu0 0.0
    %925 = vmatpush.xpose.msra.mxu0 0.0
    %926 = vmatpush.xpose.msra.mxu0 0.0
    %927 = vmatpush.xpose.msra.mxu0 0.0
    %928 = vmatpush.xpose.msra.mxu0 0.0
    %929 = vmatpush.xpose.msra.mxu0 0.0
    %930 = vmatpush.xpose.msra.mxu0 0.0
    %931 = vmatpush.xpose.msra.mxu0 0.0
    %932 = vmatpush.xpose.msra.mxu0 0.0
    %933 = vmatpush.xpose.msra.mxu0 %v917
    %934 = vmatpush.xpose.msra.mxu0 %v915
    %935 = vmatmul.f32.gmra.mxu0 %v911
    %v936 = vpop.f32.mrf.mxu0
    %v937 = vadd.f32 0.0, %v936
    %938 = vmatmul.f32.gmra.mxu0 %v913
    %v939 = vpop.f32.mrf.mxu0
    %v940 = vadd.f32 0.0, %v939
    %941 = vdwg.mxu0
    %v942 = vmul.f32 %v937, 0.17677669
    %v943 = vmul.f32 %v940, 0.17677669
    %v944 = vsel %vm333, %v942, -inf
    %v945 = vsel %vm334, %v943, -inf
    %v946 = vsel %vm478, %v944, -inf
    %947 = vmax.xlane.f32.xlu0 %v946
    %v948 = vpop.xlane.xlu0 %947
    %v949 = vsel %vm478, %v945, -inf
    %950 = vmax.xlane.f32.xlu0 %v949
    %v951 = vpop.xlane.xlu0 %950
    %v952 = vsub.f32 %v944, %v948
    %v953 = vsub.f32 %v945, %v951
    %v954 = vmul.f32 %v952, 1.442695
    %v955 = vpow.pop %v954
    %v956 = vmul.f32 %v953, 1.442695
    %v957 = vpow.pop %v956
    %v958 = vsel %vm478, %v955, 0.0
    %959 = vadd.xlane.f32.xlu0 %v958
    %v960 = vpop.xlane.xlu0 %959
    %v961 = vsel %vm478, %v957, 0.0
    %962 = vadd.xlane.f32.xlu0 %v961
    %v963 = vpop.xlane.xlu0 %962
    %v964 = vrcp.pop %v960
    %v965 = vmul.f32 %v960, %v964
    %v966 = vsub.f32 1.0, %v965
    %v967 = vmul.f32 %v964, %v966
    %v968 = vadd.f32 %v964, %v967
    %vm969 = vweird.f32 %v960
    %vm970 = vweird.f32 %v964
    %vm971 = vmor %vm969, %vm970
    %v972 = vsel %vm971, %v964, %v968
    %v973 = vand.u32 2147483647, %v960
    %vm974 = vcmp.eq.f32.partialorder %v973, 8.507059e+37
    %v975 = vand.u32 %v960, 2147483648
    %v976 = vor.u32 1.1754944e-38, %v975
    %v977 = vsel %vm974, %v976, %v972
    %v978 = vrcp.pop %v963
    %v979 = vmul.f32 %v963, %v978
    %v980 = vsub.f32 1.0, %v979
    %v981 = vmul.f32 %v978, %v980
    %v982 = vadd.f32 %v978, %v981
    %vm983 = vweird.f32 %v963
    %vm984 = vweird.f32 %v978
    %vm985 = vmor %vm983, %vm984
    %v986 = vsel %vm985, %v978, %v982
    %v987 = vand.u32 2147483647, %v963
    %vm988 = vcmp.eq.f32.partialorder %v987, 8.507059e+37
    %v989 = vand.u32 %v963, 2147483648
    %v990 = vor.u32 1.1754944e-38, %v989
    %v991 = vsel %vm988, %v990, %v986
    %v992 = vmul.f32 %v955, %v977
    %v993 = vmul.f32 %v957, %v991
    %994 = vrot.lane.b32.xlu0 %v427, 40
    %v995 = vpop.permute.xlu0 %994
    %996 = vrot.lane.b32.xlu0 %v430, 40
    %v997 = vpop.permute.xlu0 %996
    %v1001 = vsel %vm478, %v992, 0
    %v1004 = vsel %vm478, %v993, 0
    %1006 = vmatpush.msra.mxu0 0.0
    %1007 = vmatpush.msra.mxu0 0.0
    %1008 = vmatpush.msra.mxu0 0.0
    %1009 = vmatpush.msra.mxu0 0.0
    %1010 = vmatpush.msra.mxu0 0.0
    %1011 = vmatpush.msra.mxu0 0.0
    %1012 = vmatpush.msra.mxu0 0.0
    %1013 = vmatpush.msra.mxu0 0.0
    %1014 = vmatpush.msra.mxu0 0.0
    %1015 = vmatpush.msra.mxu0 0.0
    %1016 = vmatpush.msra.mxu0 0.0
    %1017 = vmatpush.msra.mxu0 0.0
    %1018 = vmatpush.msra.mxu0 0.0
    %1019 = vmatpush.msra.mxu0 0.0
    %1020 = vmatpush.msra.mxu0 %v997
    %1021 = vmatpush.msra.mxu0 %v995
    %1022 = vmatmul.f32.gmra.mxu0 %v1001
    %v1023 = vpop.f32.mrf.mxu0
    %v1024 = vadd.f32 0.0, %v1023
    %1025 = vmatmul.f32.gmra.mxu0 %v1004
    %v1026 = vpop.f32.mrf.mxu0
    %v1027 = vadd.f32 0.0, %v1026
    %1028 = vdwg.mxu0
    %v1030 = vsel %vm442, %v1024, 0
    %v1033 = vsel %vm442, %v1027, 0
    %1035 = vmatpush.msra.mxu0 0.0
    %1036 = vmatpush.msra.mxu0 0.0
    %1037 = vmatpush.msra.mxu0 0.0
    %1038 = vmatpush.msra.mxu0 0.0
    %1039 = vmatpush.msra.mxu0 0.0
    %1040 = vmatpush.msra.mxu0 0.0
    %1041 = vmatpush.msra.mxu0 0.0
    %1042 = vmatpush.msra.mxu0 0.0
    %1043 = vmatpush.msra.mxu0 0.0
    %1044 = vmatpush.msra.mxu0 0.0
    %1045 = vmatpush.msra.mxu0 0.0
    %1046 = vmatpush.msra.mxu0 0.0
    %1047 = vmatpush.msra.mxu0 0.0
    %1048 = vmatpush.msra.mxu0 0.0
    %1049 = vmatpush.msra.mxu0 0.0
    %1050 = vmatpush.msra.mxu0 %v435
    %1051 = vmatmul.f32.gmra.mxu0 %v1030
    %v1052 = vpop.f32.mrf.mxu0
    %v1053 = vadd.f32 0.0, %v1052
    %1054 = vmatmul.f32.gmra.mxu0 %v1033
    %v1055 = vpop.f32.mrf.mxu0
    %v1056 = vadd.f32 0.0, %v1055
    %1057 = vdwg.mxu0
    %v1058 = vadd.f32 %v901, %v1053
    %v1059 = vadd.f32 %v902, %v1056
    %v1060 = vadd.f32 %v329, %v1058
    %v1061 = vadd.f32 %v330, %v1059
    %v1062 = vld [vmem:[%s13] sm:$0x1]
    %v1064 = vperm.slane %v1062, 0
    %v1066 = vadd.f32 %v1060, %v1064
    %v1067 = vadd.f32 %v1061, %v1064
    %v1068 = vld [vmem:[%s15] sm:$0x1]
    %v1069 = vld [vmem:[%s17] sm:$0x1]
    %v1070 = vsel %vm337, %v1066, 0.0
    %1071 = vadd.xlane.f32.xlu0 %v1070
    %v1072 = vpop.xlane.xlu0 %1071
    %v1073 = vsel %vm337, %v1067, 0.0
    %1074 = vadd.xlane.f32.xlu0 %v1073
    %v1075 = vpop.xlane.xlu0 %1074
    %v1076 = vmul.f32 %v1072, %v350
    %v1077 = vmul.f32 %v1075, %v350
    %v1078 = vsub.f32 %v1066, %v1076
    %v1079 = vsub.f32 %v1067, %v1077
    %v1080 = vmul.f32 %v1078, %v1078
    %v1081 = vmul.f32 %v1079, %v1079
    %v1082 = vsel %vm337, %v1080, 0.0
    %1083 = vadd.xlane.f32.xlu0 %v1082
    %v1084 = vpop.xlane.xlu0 %1083
    %v1085 = vsel %vm337, %v1081, 0.0
    %1086 = vadd.xlane.f32.xlu0 %v1085
    %v1087 = vpop.xlane.xlu0 %1086
    %v1088 = vmul.f32 %v1084, %v350
    %v1089 = vmul.f32 %v1087, %v350
    %v1090 = vadd.f32 %v1088, 1e-05
    %v1091 = vadd.f32 %v1089, 1e-05
    %v1092 = vrsqrt.pop %v1090
    %v1093 = vmul.f32 %v1092, %v1090
    %v1094 = vmul.f32 %v1093, %v1092
    %v1095 = vmul.f32 0.5, %v1094
    %v1096 = vsub.f32 1.5, %v1095
    %v1097 = vmul.f32 %v1092, %v1096
    %vm1098 = vweird.f32 %v1090
    %vm1099 = vweird.f32 %v1092
    %vm1100 = vmor %vm1098, %vm1099
    %v1101 = vsel %vm1100, %v1092, %v1097
    %v1102 = vrsqrt.pop %v1091
    %v1103 = vmul.f32 %v1102, %v1091
    %v1104 = vmul.f32 %v1103, %v1102
    %v1105 = vmul.f32 0.5, %v1104
    %v1106 = vsub.f32 1.5, %v1105
    %v1107 = vmul.f32 %v1102, %v1106
    %vm1108 = vweird.f32 %v1091
    %vm1109 = vweird.f32 %v1102
    %vm1110 = vmor %vm1108, %vm1109
    %v1111 = vsel %vm1110, %v1102, %v1107
    %v1112 = vmul.f32 %v1078, %v1101
    %v1113 = vmul.f32 %v1079, %v1111
    %v1115 = vperm.slane %v1068, 0
    %v1117 = vmul.f32 %v1112, %v1115
    %v1118 = vmul.f32 %v1113, %v1115
    %v1120 = vperm.slane %v1069, 0
    %v1122 = vadd.f32 %v1117, %v1120
    %v1123 = vadd.f32 %v1118, %v1120
    %v1124 = vld [vmem:[%s19] sm:$0xff]
    %v1125 = vld [vmem:[%s19 + $0x8] sm:$0xff]
    %v1126 = vld [vmem:[%s19 + $0x10] sm:$0xff]
    %v1127 = vld [vmem:[%s19 + $0x18] sm:$0xff]
    %v1128 = vld [vmem:[%s21] sm:$0x1]
    %v1130 = vperm.slane %v1128, 0
    %v1133 = vsel %vm337, %v1122, 0
    %v1136 = vsel %vm337, %v1123, 0
    %1138 = vmatpush.msra.mxu0 0.0
    %1139 = vmatpush.msra.mxu0 0.0
    %1140 = vmatpush.msra.mxu0 0.0
    %1141 = vmatpush.msra.mxu0 0.0
    %1142 = vmatpush.msra.mxu0 0.0
    %1143 = vmatpush.msra.mxu0 0.0
    %1144 = vmatpush.msra.mxu0 0.0
    %1145 = vmatpush.msra.mxu0 0.0
    %1146 = vmatpush.msra.mxu0 0.0
    %1147 = vmatpush.msra.mxu0 0.0
    %1148 = vmatpush.msra.mxu0 0.0
    %1149 = vmatpush.msra.mxu0 0.0
    %1150 = vmatpush.msra.mxu0 %v1127
    %1151 = vmatpush.msra.mxu0 %v1126
    %1152 = vmatpush.msra.mxu0 %v1125
    %1153 = vmatpush.msra.mxu0 %v1124
    %1154 = vmatmul.f32.gmra.mxu0 %v1133
    %v1155 = vpop.f32.mrf.mxu0
    %v1156 = vadd.f32 %v1130, %v1155
    %1157 = vmatmul.f32.gmra.mxu0 %v1136
    %v1158 = vpop.f32.mrf.mxu0
    %v1159 = vadd.f32 %v1130, %v1158
    %1160 = vdwg.mxu0
    %v1161 = vmax.f32 %v1156, 0.0
    %v1162 = vmax.f32 %v1159, 0.0
    %v1163 = vld [vmem:[%s23] sm:$0xff]
    %v1164 = vld [vmem:[%s23 + $0x8] sm:$0xff]
    %v1165 = vld [vmem:[%s23 + $0x10] sm:$0xff]
    %v1166 = vld [vmem:[%s23 + $0x18] sm:$0xff]
    %v1167 = vld [vmem:[%s23 + $0x20] sm:$0xff]
    %v1168 = vld [vmem:[%s23 + $0x28] sm:$0xff]
    %v1169 = vld [vmem:[%s23 + $0x30] sm:$0xff]
    %v1170 = vld [vmem:[%s23 + $0x38] sm:$0xff]
    %v1171 = vld [vmem:[%s23 + $0x40] sm:$0xff]
    %v1172 = vld [vmem:[%s23 + $0x48] sm:$0xff]
    %v1173 = vld [vmem:[%s23 + $0x50] sm:$0xff]
    %v1174 = vld [vmem:[%s23 + $0x58] sm:$0xff]
    %v1175 = vld [vmem:[%s23 + $0x60] sm:$0xff]
    %v1176 = vld [vmem:[%s23 + $0x68] sm:$0xff]
    %v1177 = vld [vmem:[%s23 + $0x70] sm:$0xff]
    %v1178 = vld [vmem:[%s23 + $0x78] sm:$0xff]
    %1179 = vmatpush.msra.mxu0 %v1178
    %1180 = vmatpush.msra.mxu0 %v1177
    %1181 = vmatpush.msra.mxu0 %v1176
    %1182 = vmatpush.msra.mxu0 %v1175
    %1183 = vmatpush.msra.mxu0 %v1174
    %1184 = vmatpush.msra.mxu0 %v1173
    %1185 = vmatpush.msra.mxu0 %v1172
    %1186 = vmatpush.msra.mxu0 %v1171
    %1187 = vmatpush.msra.mxu0 %v1170
    %1188 = vmatpush.msra.mxu0 %v1169
    %1189 = vmatpush.msra.mxu0 %v1168
    %1190 = vmatpush.msra.mxu0 %v1167
    %1191 = vmatpush.msra.mxu0 %v1166
    %1192 = vmatpush.msra.mxu0 %v1165
    %1193 = vmatpush.msra.mxu0 %v1164
    %1194 = vmatpush.msra.mxu0 %v1163
    %1195 = vmatmul.f32.gmra.mxu0 %v1161
    %v1196 = vpop.f32.mrf.mxu0
    %v1197 = vadd.f32 0.0, %v1196
    %1198 = vmatmul.f32.gmra.mxu0 %v1162
    %v1199 = vpop.f32.mrf.mxu0
    %v1200 = vadd.f32 0.0, %v1199
    %1201 = vdwg.mxu0
    %v1202 = vadd.f32 %v1066, %v1197
    %v1203 = vadd.f32 %v1067, %v1200
    %v1204 = vld [vmem:[%s25] sm:$0x1]
    %v1206 = vperm.slane %v1204, 0
    %v1208 = vadd.f32 %v1202, %v1206
    %v1209 = vadd.f32 %v1203, %v1206
    %v1210 = vld [vmem:[%s27] sm:$0x1]
    %v1211 = vld [vmem:[%s29] sm:$0x1]
    %v1212 = vsel %vm337, %v1208, 0.0
    %1213 = vadd.xlane.f32.xlu0 %v1212
    %v1214 = vpop.xlane.xlu0 %1213
    %v1215 = vsel %vm337, %v1209, 0.0
    %1216 = vadd.xlane.f32.xlu0 %v1215
    %v1217 = vpop.xlane.xlu0 %1216
    %v1218 = vmul.f32 %v1214, %v350
    %v1219 = vmul.f32 %v1217, %v350
    %v1220 = vsub.f32 %v1208, %v1218
    %v1221 = vsub.f32 %v1209, %v1219
    %v1222 = vmul.f32 %v1220, %v1220
    %v1223 = vmul.f32 %v1221, %v1221
    %v1224 = vsel %vm337, %v1222, 0.0
    %1225 = vadd.xlane.f32.xlu0 %v1224
    %v1226 = vpop.xlane.xlu0 %1225
    %v1227 = vsel %vm337, %v1223, 0.0
    %1228 = vadd.xlane.f32.xlu0 %v1227
    %v1229 = vpop.xlane.xlu0 %1228
    %v1230 = vmul.f32 %v1226, %v350
    %v1231 = vmul.f32 %v1229, %v350
    %v1232 = vadd.f32 %v1230, 1e-05
    %v1233 = vadd.f32 %v1231, 1e-05
    %v1234 = vrsqrt.pop %v1232
    %v1235 = vmul.f32 %v1234, %v1232
    %v1236 = vmul.f32 %v1235, %v1234
    %v1237 = vmul.f32 0.5, %v1236
    %v1238 = vsub.f32 1.5, %v1237
    %v1239 = vmul.f32 %v1234, %v1238
    %vm1240 = vweird.f32 %v1232
    %vm1241 = vweird.f32 %v1234
    %vm1242 = vmor %vm1240, %vm1241
    %v1243 = vsel %vm1242, %v1234, %v1239
    %v1244 = vrsqrt.pop %v1233
    %v1245 = vmul.f32 %v1244, %v1233
    %v1246 = vmul.f32 %v1245, %v1244
    %v1247 = vmul.f32 0.5, %v1246
    %v1248 = vsub.f32 1.5, %v1247
    %v1249 = vmul.f32 %v1244, %v1248
    %vm1250 = vweird.f32 %v1233
    %vm1251 = vweird.f32 %v1244
    %vm1252 = vmor %vm1250, %vm1251
    %v1253 = vsel %vm1252, %v1244, %v1249
    %v1254 = vmul.f32 %v1220, %v1243
    %v1255 = vmul.f32 %v1221, %v1253
    %v1257 = vperm.slane %v1210, 0
    %v1259 = vmul.f32 %v1254, %v1257
    %v1260 = vmul.f32 %v1255, %v1257
    %v1262 = vperm.slane %v1211, 0
    %v1264 = vadd.f32 %v1259, %v1262
    %v1265 = vadd.f32 %v1260, %v1262
    %v1266 = vld [vmem:[%s31] sm:$0xff]
    %v1267 = vld [vmem:[%s31 + $0x8] sm:$0xff]
    %v1268 = vld [vmem:[%s31 + $0x10] sm:$0xff]
    %v1269 = vld [vmem:[%s31 + $0x18] sm:$0xff]
    %v1271 = vsel %vm337, %v1264, 0
    %v1274 = vsel %vm337, %v1265, 0
    %1276 = vmatpush.msra.mxu0 0.0
    %1277 = vmatpush.msra.mxu0 0.0
    %1278 = vmatpush.msra.mxu0 0.0
    %1279 = vmatpush.msra.mxu0 0.0
    %1280 = vmatpush.msra.mxu0 0.0
    %1281 = vmatpush.msra.mxu0 0.0
    %1282 = vmatpush.msra.mxu0 0.0
    %1283 = vmatpush.msra.mxu0 0.0
    %1284 = vmatpush.msra.mxu0 0.0
    %1285 = vmatpush.msra.mxu0 0.0
    %1286 = vmatpush.msra.mxu0 0.0
    %1287 = vmatpush.msra.mxu0 0.0
    %1288 = vmatpush.msra.mxu0 %v1269
    %1289 = vmatpush.msra.mxu0 %v1268
    %1290 = vmatpush.msra.mxu0 %v1267
    %1291 = vmatpush.msra.mxu0 %v1266
    %1292 = vmatmul.f32.gmra.mxu0 %v1271
    %v1293 = vpop.f32.mrf.mxu0
    %v1294 = vadd.f32 0.0, %v1293
    %1295 = vmatmul.f32.gmra.mxu0 %v1274
    %v1296 = vpop.f32.mrf.mxu0
    %v1297 = vadd.f32 0.0, %v1296
    %1298 = vdwg.mxu0
    %v1299 = vld [vmem:[%s33] sm:$0xff]
    %v1300 = vld [vmem:[%s33 + $0x8] sm:$0xff]
    %v1301 = vld [vmem:[%s33 + $0x10] sm:$0xff]
    %v1302 = vld [vmem:[%s33 + $0x18] sm:$0xff]
    %1305 = vrot.lane.b32.xlu0 %v1294, 96
    %v1306 = vpop.permute.xlu0 %1305
    %1307 = vrot.lane.b32.xlu0 %v1297, 96
    %v1308 = vpop.permute.xlu0 %1307
    %v1309 = vsel %vm442, %v1294, 0
    %v1311 = vsel %vm442, %v1297, 0
    %v1313 = vsel %vm442, %v1306, 0
    %v1315 = vsel %vm442, %v1308, 0
    %1317 = vmatpush.xpose.msra.mxu0 0.0
    %1318 = vmatpush.xpose.msra.mxu0 0.0
    %1319 = vmatpush.xpose.msra.mxu0 0.0
    %1320 = vmatpush.xpose.msra.mxu0 0.0
    %1321 = vmatpush.xpose.msra.mxu0 0.0
    %1322 = vmatpush.xpose.msra.mxu0 0.0
    %1323 = vmatpush.xpose.msra.mxu0 0.0
    %1324 = vmatpush.xpose.msra.mxu0 0.0
    %1325 = vmatpush.xpose.msra.mxu0 0.0
    %1326 = vmatpush.xpose.msra.mxu0 0.0
    %1327 = vmatpush.xpose.msra.mxu0 0.0
    %1328 = vmatpush.xpose.msra.mxu0 0.0
    %1329 = vmatpush.xpose.msra.mxu0 0.0
    %1330 = vmatpush.xpose.msra.mxu0 0.0
    %1331 = vmatpush.xpose.msra.mxu0 %v1315
    %1332 = vmatpush.xpose.msra.mxu0 %v1313
    %1333 = vmatmul.f32.gmra.mxu0 %v1309
    %v1334 = vpop.f32.mrf.mxu0
    %v1335 = vadd.f32 0.0, %v1334
    %1336 = vmatmul.f32.gmra.mxu0 %v1311
    %v1337 = vpop.f32.mrf.mxu0
    %v1338 = vadd.f32 0.0, %v1337
    %1339 = vdwg.mxu0
    %v1340 = vmul.f32 %v1335, 0.17677669
    %v1341 = vmul.f32 %v1338, 0.17677669
    %v1342 = vsel %vm333, %v1340, -inf
    %v1343 = vsel %vm334, %v1341, -inf
    %v1344 = vsel %vm478, %v1342, -inf
    %1345 = vmax.xlane.f32.xlu0 %v1344
    %v1346 = vpop.xlane.xlu0 %1345
    %v1347 = vsel %vm478, %v1343, -inf
    %1348 = vmax.xlane.f32.xlu0 %v1347
    %v1349 = vpop.xlane.xlu0 %1348
    %v1350 = vsub.f32 %v1342, %v1346
    %v1351 = vsub.f32 %v1343, %v1349
    %v1352 = vmul.f32 %v1350, 1.442695
    %v1353 = vpow.pop %v1352
    %v1354 = vmul.f32 %v1351, 1.442695
    %v1355 = vpow.pop %v1354
    %v1356 = vsel %vm478, %v1353, 0.0
    %1357 = vadd.xlane.f32.xlu0 %v1356
    %v1358 = vpop.xlane.xlu0 %1357
    %v1359 = vsel %vm478, %v1355, 0.0
    %1360 = vadd.xlane.f32.xlu0 %v1359
    %v1361 = vpop.xlane.xlu0 %1360
    %v1362 = vrcp.pop %v1358
    %v1363 = vmul.f32 %v1358, %v1362
    %v1364 = vsub.f32 1.0, %v1363
    %v1365 = vmul.f32 %v1362, %v1364
    %v1366 = vadd.f32 %v1362, %v1365
    %vm1367 = vweird.f32 %v1358
    %vm1368 = vweird.f32 %v1362
    %vm1369 = vmor %vm1367, %vm1368
    %v1370 = vsel %vm1369, %v1362, %v1366
    %v1371 = vand.u32 2147483647, %v1358
    %vm1372 = vcmp.eq.f32.partialorder %v1371, 8.507059e+37
    %v1373 = vand.u32 %v1358, 2147483648
    %v1374 = vor.u32 1.1754944e-38, %v1373
    %v1375 = vsel %vm1372, %v1374, %v1370
    %v1376 = vrcp.pop %v1361
    %v1377 = vmul.f32 %v1361, %v1376
    %v1378 = vsub.f32 1.0, %v1377
    %v1379 = vmul.f32 %v1376, %v1378
    %v1380 = vadd.f32 %v1376, %v1379
    %vm1381 = vweird.f32 %v1361
    %vm1382 = vweird.f32 %v1376
    %vm1383 = vmor %vm1381, %vm1382
    %v1384 = vsel %vm1383, %v1376, %v1380
    %v1385 = vand.u32 2147483647, %v1361
    %vm1386 = vcmp.eq.f32.partialorder %v1385, 8.507059e+37
    %v1387 = vand.u32 %v1361, 2147483648
    %v1388 = vor.u32 1.1754944e-38, %v1387
    %v1389 = vsel %vm1386, %v1388, %v1384
    %v1390 = vmul.f32 %v1353, %v1375
    %v1391 = vmul.f32 %v1355, %v1389
    %1392 = vrot.lane.b32.xlu0 %v1294, 64
    %v1393 = vpop.permute.xlu0 %1392
    %1394 = vrot.lane.b32.xlu0 %v1297, 64
    %v1395 = vpop.permute.xlu0 %1394
    %v1399 = vsel %vm478, %v1390, 0
    %v1402 = vsel %vm478, %v1391, 0
    %1404 = vmatpush.msra.mxu0 0.0
    %1405 = vmatpush.msra.mxu0 0.0
    %1406 = vmatpush.msra.mxu0 0.0
    %1407 = vmatpush.msra.mxu0 0.0
    %1408 = vmatpush.msra.mxu0 0.0
    %1409 = vmatpush.msra.mxu0 0.0
    %1410 = vmatpush.msra.mxu0 0.0
    %1411 = vmatpush.msra.mxu0 0.0
    %1412 = vmatpush.msra.mxu0 0.0
    %1413 = vmatpush.msra.mxu0 0.0
    %1414 = vmatpush.msra.mxu0 0.0
    %1415 = vmatpush.msra.mxu0 0.0
    %1416 = vmatpush.msra.mxu0 0.0
    %1417 = vmatpush.msra.mxu0 0.0
    %1418 = vmatpush.msra.mxu0 %v1395
    %1419 = vmatpush.msra.mxu0 %v1393
    %1420 = vmatmul.f32.gmra.mxu0 %v1399
    %v1421 = vpop.f32.mrf.mxu0
    %v1422 = vadd.f32 0.0, %v1421
    %1423 = vmatmul.f32.gmra.mxu0 %v1402
    %v1424 = vpop.f32.mrf.mxu0
    %v1425 = vadd.f32 0.0, %v1424
    %1426 = vdwg.mxu0
    %1427 = vrot.lane.b32.xlu0 %v1294, 120
    %v1428 = vpop.permute.xlu0 %1427
    %1429 = vrot.lane.b32.xlu0 %v1297, 120
    %v1430 = vpop.permute.xlu0 %1429
    %1431 = vrot.lane.b32.xlu0 %v1294, 88
    %v1432 = vpop.permute.xlu0 %1431
    %1433 = vrot.lane.b32.xlu0 %v1297, 88
    %v1434 = vpop.permute.xlu0 %1433
    %v1435 = vsel %vm442, %v1428, 0
    %v1437 = vsel %vm442, %v1430, 0
    %v1439 = vsel %vm442, %v1432, 0
    %v1441 = vsel %vm442, %v1434, 0
    %1443 = vmatpush.xpose.msra.mxu0 0.0
    %1444 = vmatpush.xpose.msra.mxu0 0.0
    %1445 = vmatpush.xpose.msra.mxu0 0.0
    %1446 = vmatpush.xpose.msra.mxu0 0.0
    %1447 = vmatpush.xpose.msra.mxu0 0.0
    %1448 = vmatpush.xpose.msra.mxu0 0.0
    %1449 = vmatpush.xpose.msra.mxu0 0.0
    %1450 = vmatpush.xpose.msra.mxu0 0.0
    %1451 = vmatpush.xpose.msra.mxu0 0.0
    %1452 = vmatpush.xpose.msra.mxu0 0.0
    %1453 = vmatpush.xpose.msra.mxu0 0.0
    %1454 = vmatpush.xpose.msra.mxu0 0.0
    %1455 = vmatpush.xpose.msra.mxu0 0.0
    %1456 = vmatpush.xpose.msra.mxu0 0.0
    %1457 = vmatpush.xpose.msra.mxu0 %v1441
    %1458 = vmatpush.xpose.msra.mxu0 %v1439
    %1459 = vmatmul.f32.gmra.mxu0 %v1435
    %v1460 = vpop.f32.mrf.mxu0
    %v1461 = vadd.f32 0.0, %v1460
    %1462 = vmatmul.f32.gmra.mxu0 %v1437
    %v1463 = vpop.f32.mrf.mxu0
    %v1464 = vadd.f32 0.0, %v1463
    %1465 = vdwg.mxu0
    %v1466 = vmul.f32 %v1461, 0.17677669
    %v1467 = vmul.f32 %v1464, 0.17677669
    %v1468 = vsel %vm333, %v1466, -inf
    %v1469 = vsel %vm334, %v1467, -inf
    %v1470 = vsel %vm478, %v1468, -inf
    %1471 = vmax.xlane.f32.xlu0 %v1470
    %v1472 = vpop.xlane.xlu0 %1471
    %v1473 = vsel %vm478, %v1469, -inf
    %1474 = vmax.xlane.f32.xlu0 %v1473
    %v1475 = vpop.xlane.xlu0 %1474
    %v1476 = vsub.f32 %v1468, %v1472
    %v1477 = vsub.f32 %v1469, %v1475
    %v1478 = vmul.f32 %v1476, 1.442695
    %v1479 = vpow.pop %v1478
    %v1480 = vmul.f32 %v1477, 1.442695
    %v1481 = vpow.pop %v1480
    %v1482 = vsel %vm478, %v1479, 0.0
    %1483 = vadd.xlane.f32.xlu0 %v1482
    %v1484 = vpop.xlane.xlu0 %1483
    %v1485 = vsel %vm478, %v1481, 0.0
    %1486 = vadd.xlane.f32.xlu0 %v1485
    %v1487 = vpop.xlane.xlu0 %1486
    %v1488 = vrcp.pop %v1484
    %v1489 = vmul.f32 %v1484, %v1488
    %v1490 = vsub.f32 1.0, %v1489
    %v1491 = vmul.f32 %v1488, %v1490
    %v1492 = vadd.f32 %v1488, %v1491
    %vm1493 = vweird.f32 %v1484
    %vm1494 = vweird.f32 %v1488
    %vm1495 = vmor %vm1493, %vm1494
    %v1496 = vsel %vm1495, %v1488, %v1492
    %v1497 = vand.u32 2147483647, %v1484
    %vm1498 = vcmp.eq.f32.partialorder %v1497, 8.507059e+37
    %v1499 = vand.u32 %v1484, 2147483648
    %v1500 = vor.u32 1.1754944e-38, %v1499
    %v1501 = vsel %vm1498, %v1500, %v1496
    %v1502 = vrcp.pop %v1487
    %v1503 = vmul.f32 %v1487, %v1502
    %v1504 = vsub.f32 1.0, %v1503
    %v1505 = vmul.f32 %v1502, %v1504
    %v1506 = vadd.f32 %v1502, %v1505
    %vm1507 = vweird.f32 %v1487
    %vm1508 = vweird.f32 %v1502
    %vm1509 = vmor %vm1507, %vm1508
    %v1510 = vsel %vm1509, %v1502, %v1506
    %v1511 = vand.u32 2147483647, %v1487
    %vm1512 = vcmp.eq.f32.partialorder %v1511, 8.507059e+37
    %v1513 = vand.u32 %v1487, 2147483648
    %v1514 = vor.u32 1.1754944e-38, %v1513
    %v1515 = vsel %vm1512, %v1514, %v1510
    %v1516 = vmul.f32 %v1479, %v1501
    %v1517 = vmul.f32 %v1481, %v1515
    %1518 = vrot.lane.b32.xlu0 %v1294, 56
    %v1519 = vpop.permute.xlu0 %1518
    %1520 = vrot.lane.b32.xlu0 %v1297, 56
    %v1521 = vpop.permute.xlu0 %1520
    %v1525 = vsel %vm478, %v1516, 0
    %v1528 = vsel %vm478, %v1517, 0
    %1530 = vmatpush.msra.mxu0 0.0
    %1531 = vmatpush.msra.mxu0 0.0
    %1532 = vmatpush.msra.mxu0 0.0
    %1533 = vmatpush.msra.mxu0 0.0
    %1534 = vmatpush.msra.mxu0 0.0
    %1535 = vmatpush.msra.mxu0 0.0
    %1536 = vmatpush.msra.mxu0 0.0
    %1537 = vmatpush.msra.mxu0 0.0
    %1538 = vmatpush.msra.mxu0 0.0
    %1539 = vmatpush.msra.mxu0 0.0
    %1540 = vmatpush.msra.mxu0 0.0
    %1541 = vmatpush.msra.mxu0 0.0
    %1542 = vmatpush.msra.mxu0 0.0
    %1543 = vmatpush.msra.mxu0 0.0
    %1544 = vmatpush.msra.mxu0 %v1521
    %1545 = vmatpush.msra.mxu0 %v1519
    %1546 = vmatmul.f32.gmra.mxu0 %v1525
    %v1547 = vpop.f32.mrf.mxu0
    %v1548 = vadd.f32 0.0, %v1547
    %1549 = vmatmul.f32.gmra.mxu0 %v1528
    %v1550 = vpop.f32.mrf.mxu0
    %v1551 = vadd.f32 0.0, %v1550
    %1552 = vdwg.mxu0
    %v1554 = vsel %vm442, %v1548, 0
    %v1557 = vsel %vm442, %v1551, 0
    %1559 = vmatpush.msra.mxu0 0.0
    %1560 = vmatpush.msra.mxu0 0.0
    %1561 = vmatpush.msra.mxu0 0.0
    %1562 = vmatpush.msra.mxu0 0.0
    %1563 = vmatpush.msra.mxu0 0.0
    %1564 = vmatpush.msra.mxu0 0.0
    %1565 = vmatpush.msra.mxu0 0.0
    %1566 = vmatpush.msra.mxu0 0.0
    %1567 = vmatpush.msra.mxu0 0.0
    %1568 = vmatpush.msra.mxu0 0.0
    %1569 = vmatpush.msra.mxu0 0.0
    %1570 = vmatpush.msra.mxu0 0.0
    %1571 = vmatpush.msra.mxu0 0.0
    %1572 = vmatpush.msra.mxu0 0.0
    %1573 = vmatpush.msra.mxu0 0.0
    %1574 = vmatpush.msra.mxu0 %v1300
    %1575 = vmatmul.f32.gmra.mxu0 %v1554
    %v1576 = vpop.f32.mrf.mxu0
    %v1577 = vadd.f32 0.0, %v1576
    %1578 = vmatmul.f32.gmra.mxu0 %v1557
    %v1579 = vpop.f32.mrf.mxu0
    %v1580 = vadd.f32 0.0, %v1579
    %1581 = vdwg.mxu0
    %v1583 = vsel %vm442, %v1422, 0
    %v1586 = vsel %vm442, %v1425, 0
    %1588 = vmatpush.msra.mxu0 0.0
    %1589 = vmatpush.msra.mxu0 0.0
    %1590 = vmatpush.msra.mxu0 0.0
    %1591 = vmatpush.msra.mxu0 0.0
    %1592 = vmatpush.msra.mxu0 0.0
    %1593 = vmatpush.msra.mxu0 0.0
    %1594 = vmatpush.msra.mxu0 0.0
    %1595 = vmatpush.msra.mxu0 0.0
    %1596 = vmatpush.msra.mxu0 0.0
    %1597 = vmatpush.msra.mxu0 0.0
    %1598 = vmatpush.msra.mxu0 0.0
    %1599 = vmatpush.msra.mxu0 0.0
    %1600 = vmatpush.msra.mxu0 0.0
    %1601 = vmatpush.msra.mxu0 0.0
    %1602 = vmatpush.msra.mxu0 0.0
    %1603 = vmatpush.msra.mxu0 %v1299
    %1604 = vmatmul.f32.gmra.mxu0 %v1583
    %v1605 = vpop.f32.mrf.mxu0
    %v1606 = vadd.f32 %v1577, %v1605
    %1607 = vmatmul.f32.gmra.mxu0 %v1586
    %v1608 = vpop.f32.mrf.mxu0
    %v1609 = vadd.f32 %v1580, %v1608
    %1610 = vdwg.mxu0
    %1611 = vrot.lane.b32.xlu0 %v1294, 112
    %v1612 = vpop.permute.xlu0 %1611
    %1613 = vrot.lane.b32.xlu0 %v1297, 112
    %v1614 = vpop.permute.xlu0 %1613
    %1615 = vrot.lane.b32.xlu0 %v1294, 80
    %v1616 = vpop.permute.xlu0 %1615
    %1617 = vrot.lane.b32.xlu0 %v1297, 80
    %v1618 = vpop.permute.xlu0 %1617
    %v1619 = vsel %vm442, %v1612, 0
    %v1621 = vsel %vm442, %v1614, 0
    %v1623 = vsel %vm442, %v1616, 0
    %v1625 = vsel %vm442, %v1618, 0
    %1627 = vmatpush.xpose.msra.mxu0 0.0
    %1628 = vmatpush.xpose.msra.mxu0 0.0
    %1629 = vmatpush.xpose.msra.mxu0 0.0
    %1630 = vmatpush.xpose.msra.mxu0 0.0
    %1631 = vmatpush.xpose.msra.mxu0 0.0
    %1632 = vmatpush.xpose.msra.mxu0 0.0
    %1633 = vmatpush.xpose.msra.mxu0 0.0
    %1634 = vmatpush.xpose.msra.mxu0 0.0
    %1635 = vmatpush.xpose.msra.mxu0 0.0
    %1636 = vmatpush.xpose.msra.mxu0 0.0
    %1637 = vmatpush.xpose.msra.mxu0 0.0
    %1638 = vmatpush.xpose.msra.mxu0 0.0
    %1639 = vmatpush.xpose.msra.mxu0 0.0
    %1640 = vmatpush.xpose.msra.mxu0 0.0
    %1641 = vmatpush.xpose.msra.mxu0 %v1625
    %1642 = vmatpush.xpose.msra.mxu0 %v1623
    %1643 = vmatmul.f32.gmra.mxu0 %v1619
    %v1644 = vpop.f32.mrf.mxu0
    %v1645 = vadd.f32 0.0, %v1644
    %1646 = vmatmul.f32.gmra.mxu0 %v1621
    %v1647 = vpop.f32.mrf.mxu0
    %v1648 = vadd.f32 0.0, %v1647
    %1649 = vdwg.mxu0
    %v1650 = vmul.f32 %v1645, 0.17677669
    %v1651 = vmul.f32 %v1648, 0.17677669
    %v1652 = vsel %vm333, %v1650, -inf
    %v1653 = vsel %vm334, %v1651, -inf
    %v1654 = vsel %vm478, %v1652, -inf
    %1655 = vmax.xlane.f32.xlu0 %v1654
    %v1656 = vpop.xlane.xlu0 %1655
    %v1657 = vsel %vm478, %v1653, -inf
    %1658 = vmax.xlane.f32.xlu0 %v1657
    %v1659 = vpop.xlane.xlu0 %1658
    %v1660 = vsub.f32 %v1652, %v1656
    %v1661 = vsub.f32 %v1653, %v1659
    %v1662 = vmul.f32 %v1660, 1.442695
    %v1663 = vpow.pop %v1662
    %v1664 = vmul.f32 %v1661, 1.442695
    %v1665 = vpow.pop %v1664
    %v1666 = vsel %vm478, %v1663, 0.0
    %1667 = vadd.xlane.f32.xlu0 %v1666
    %v1668 = vpop.xlane.xlu0 %1667
    %v1669 = vsel %vm478, %v1665, 0.0
    %1670 = vadd.xlane.f32.xlu0 %v1669
    %v1671 = vpop.xlane.xlu0 %1670
    %v1672 = vrcp.pop %v1668
    %v1673 = vmul.f32 %v1668, %v1672
    %v1674 = vsub.f32 1.0, %v1673
    %v1675 = vmul.f32 %v1672, %v1674
    %v1676 = vadd.f32 %v1672, %v1675
    %vm1677 = vweird.f32 %v1668
    %vm1678 = vweird.f32 %v1672
    %vm1679 = vmor %vm1677, %vm1678
    %v1680 = vsel %vm1679, %v1672, %v1676
    %v1681 = vand.u32 2147483647, %v1668
    %vm1682 = vcmp.eq.f32.partialorder %v1681, 8.507059e+37
    %v1683 = vand.u32 %v1668, 2147483648
    %v1684 = vor.u32 1.1754944e-38, %v1683
    %v1685 = vsel %vm1682, %v1684, %v1680
    %v1686 = vrcp.pop %v1671
    %v1687 = vmul.f32 %v1671, %v1686
    %v1688 = vsub.f32 1.0, %v1687
    %v1689 = vmul.f32 %v1686, %v1688
    %v1690 = vadd.f32 %v1686, %v1689
    %vm1691 = vweird.f32 %v1671
    %vm1692 = vweird.f32 %v1686
    %vm1693 = vmor %vm1691, %vm1692
    %v1694 = vsel %vm1693, %v1686, %v1690
    %v1695 = vand.u32 2147483647, %v1671
    %vm1696 = vcmp.eq.f32.partialorder %v1695, 8.507059e+37
    %v1697 = vand.u32 %v1671, 2147483648
    %v1698 = vor.u32 1.1754944e-38, %v1697
    %v1699 = vsel %vm1696, %v1698, %v1694
    %v1700 = vmul.f32 %v1663, %v1685
    %v1701 = vmul.f32 %v1665, %v1699
    %1702 = vrot.lane.b32.xlu0 %v1294, 48
    %v1703 = vpop.permute.xlu0 %1702
    %1704 = vrot.lane.b32.xlu0 %v1297, 48
    %v1705 = vpop.permute.xlu0 %1704
    %v1709 = vsel %vm478, %v1700, 0
    %v1712 = vsel %vm478, %v1701, 0
    %1714 = vmatpush.msra.mxu0 0.0
    %1715 = vmatpush.msra.mxu0 0.0
    %1716 = vmatpush.msra.mxu0 0.0
    %1717 = vmatpush.msra.mxu0 0.0
    %1718 = vmatpush.msra.mxu0 0.0
    %1719 = vmatpush.msra.mxu0 0.0
    %1720 = vmatpush.msra.mxu0 0.0
    %1721 = vmatpush.msra.mxu0 0.0
    %1722 = vmatpush.msra.mxu0 0.0
    %1723 = vmatpush.msra.mxu0 0.0
    %1724 = vmatpush.msra.mxu0 0.0
    %1725 = vmatpush.msra.mxu0 0.0
    %1726 = vmatpush.msra.mxu0 0.0
    %1727 = vmatpush.msra.mxu0 0.0
    %1728 = vmatpush.msra.mxu0 %v1705
    %1729 = vmatpush.msra.mxu0 %v1703
    %1730 = vmatmul.f32.gmra.mxu0 %v1709
    %v1731 = vpop.f32.mrf.mxu0
    %v1732 = vadd.f32 0.0, %v1731
    %1733 = vmatmul.f32.gmra.mxu0 %v1712
    %v1734 = vpop.f32.mrf.mxu0
    %v1735 = vadd.f32 0.0, %v1734
    %1736 = vdwg.mxu0
    %v1738 = vsel %vm442, %v1732, 0
    %v1741 = vsel %vm442, %v1735, 0
    %1743 = vmatpush.msra.mxu0 0.0
    %1744 = vmatpush.msra.mxu0 0.0
    %1745 = vmatpush.msra.mxu0 0.0
    %1746 = vmatpush.msra.mxu0 0.0
    %1747 = vmatpush.msra.mxu0 0.0
    %1748 = vmatpush.msra.mxu0 0.0
    %1749 = vmatpush.msra.mxu0 0.0
    %1750 = vmatpush.msra.mxu0 0.0
    %1751 = vmatpush.msra.mxu0 0.0
    %1752 = vmatpush.msra.mxu0 0.0
    %1753 = vmatpush.msra.mxu0 0.0
    %1754 = vmatpush.msra.mxu0 0.0
    %1755 = vmatpush.msra.mxu0 0.0
    %1756 = vmatpush.msra.mxu0 0.0
    %1757 = vmatpush.msra.mxu0 0.0
    %1758 = vmatpush.msra.mxu0 %v1301
    %1759 = vmatmul.f32.gmra.mxu0 %v1738
    %v1760 = vpop.f32.mrf.mxu0
    %v1761 = vadd.f32 0.0, %v1760
    %1762 = vmatmul.f32.gmra.mxu0 %v1741
    %v1763 = vpop.f32.mrf.mxu0
    %v1764 = vadd.f32 0.0, %v1763
    %1765 = vdwg.mxu0
    %v1766 = vadd.f32 %v1606, %v1761
    %v1767 = vadd.f32 %v1609, %v1764
    %1768 = vrot.lane.b32.xlu0 %v1294, 104
    %v1769 = vpop.permute.xlu0 %1768
    %1770 = vrot.lane.b32.xlu0 %v1297, 104
    %v1771 = vpop.permute.xlu0 %1770
    %1772 = vrot.lane.b32.xlu0 %v1294, 72
    %v1773 = vpop.permute.xlu0 %1772
    %1774 = vrot.lane.b32.xlu0 %v1297, 72
    %v1775 = vpop.permute.xlu0 %1774
    %v1776 = vsel %vm442, %v1769, 0
    %v1778 = vsel %vm442, %v1771, 0
    %v1780 = vsel %vm442, %v1773, 0
    %v1782 = vsel %vm442, %v1775, 0
    %1784 = vmatpush.xpose.msra.mxu0 0.0
    %1785 = vmatpush.xpose.msra.mxu0 0.0
    %1786 = vmatpush.xpose.msra.mxu0 0.0
    %1787 = vmatpush.xpose.msra.mxu0 0.0
    %1788 = vmatpush.xpose.msra.mxu0 0.0
    %1789 = vmatpush.xpose.msra.mxu0 0.0
    %1790 = vmatpush.xpose.msra.mxu0 0.0
    %1791 = vmatpush.xpose.msra.mxu0 0.0
    %1792 = vmatpush.xpose.msra.mxu0 0.0
    %1793 = vmatpush.xpose.msra.mxu0 0.0
    %1794 = vmatpush.xpose.msra.mxu0 0.0
    %1795 = vmatpush.xpose.msra.mxu0 0.0
    %1796 = vmatpush.xpose.msra.mxu0 0.0
    %1797 = vmatpush.xpose.msra.mxu0 0.0
    %1798 = vmatpush.xpose.msra.mxu0 %v1782
    %1799 = vmatpush.xpose.msra.mxu0 %v1780
    %1800 = vmatmul.f32.gmra.mxu0 %v1776
    %v1801 = vpop.f32.mrf.mxu0
    %v1802 = vadd.f32 0.0, %v1801
    %1803 = vmatmul.f32.gmra.mxu0 %v1778
    %v1804 = vpop.f32.mrf.mxu0
    %v1805 = vadd.f32 0.0, %v1804
    %1806 = vdwg.mxu0
    %v1807 = vmul.f32 %v1802, 0.17677669
    %v1808 = vmul.f32 %v1805, 0.17677669
    %v1809 = vsel %vm333, %v1807, -inf
    %v1810 = vsel %vm334, %v1808, -inf
    %v1811 = vsel %vm478, %v1809, -inf
    %1812 = vmax.xlane.f32.xlu0 %v1811
    %v1813 = vpop.xlane.xlu0 %1812
    %v1814 = vsel %vm478, %v1810, -inf
    %1815 = vmax.xlane.f32.xlu0 %v1814
    %v1816 = vpop.xlane.xlu0 %1815
    %v1817 = vsub.f32 %v1809, %v1813
    %v1818 = vsub.f32 %v1810, %v1816
    %v1819 = vmul.f32 %v1817, 1.442695
    %v1820 = vpow.pop %v1819
    %v1821 = vmul.f32 %v1818, 1.442695
    %v1822 = vpow.pop %v1821
    %v1823 = vsel %vm478, %v1820, 0.0
    %1824 = vadd.xlane.f32.xlu0 %v1823
    %v1825 = vpop.xlane.xlu0 %1824
    %v1826 = vsel %vm478, %v1822, 0.0
    %1827 = vadd.xlane.f32.xlu0 %v1826
    %v1828 = vpop.xlane.xlu0 %1827
    %v1829 = vrcp.pop %v1825
    %v1830 = vmul.f32 %v1825, %v1829
    %v1831 = vsub.f32 1.0, %v1830
    %v1832 = vmul.f32 %v1829, %v1831
    %v1833 = vadd.f32 %v1829, %v1832
    %vm1834 = vweird.f32 %v1825
    %vm1835 = vweird.f32 %v1829
    %vm1836 = vmor %vm1834, %vm1835
    %v1837 = vsel %vm1836, %v1829, %v1833
    %v1838 = vand.u32 2147483647, %v1825
    %vm1839 = vcmp.eq.f32.partialorder %v1838, 8.507059e+37
    %v1840 = vand.u32 %v1825, 2147483648
    %v1841 = vor.u32 1.1754944e-38, %v1840
    %v1842 = vsel %vm1839, %v1841, %v1837
    %v1843 = vrcp.pop %v1828
    %v1844 = vmul.f32 %v1828, %v1843
    %v1845 = vsub.f32 1.0, %v1844
    %v1846 = vmul.f32 %v1843, %v1845
    %v1847 = vadd.f32 %v1843, %v1846
    %vm1848 = vweird.f32 %v1828
    %vm1849 = vweird.f32 %v1843
    %vm1850 = vmor %vm1848, %vm1849
    %v1851 = vsel %vm1850, %v1843, %v1847
    %v1852 = vand.u32 2147483647, %v1828
    %vm1853 = vcmp.eq.f32.partialorder %v1852, 8.507059e+37
    %v1854 = vand.u32 %v1828, 2147483648
    %v1855 = vor.u32 1.1754944e-38, %v1854
    %v1856 = vsel %vm1853, %v1855, %v1851
    %v1857 = vmul.f32 %v1820, %v1842
    %v1858 = vmul.f32 %v1822, %v1856
    %1859 = vrot.lane.b32.xlu0 %v1294, 40
    %v1860 = vpop.permute.xlu0 %1859
    %1861 = vrot.lane.b32.xlu0 %v1297, 40
    %v1862 = vpop.permute.xlu0 %1861
    %v1866 = vsel %vm478, %v1857, 0
    %v1869 = vsel %vm478, %v1858, 0
    %1871 = vmatpush.msra.mxu0 0.0
    %1872 = vmatpush.msra.mxu0 0.0
    %1873 = vmatpush.msra.mxu0 0.0
    %1874 = vmatpush.msra.mxu0 0.0
    %1875 = vmatpush.msra.mxu0 0.0
    %1876 = vmatpush.msra.mxu0 0.0
    %1877 = vmatpush.msra.mxu0 0.0
    %1878 = vmatpush.msra.mxu0 0.0
    %1879 = vmatpush.msra.mxu0 0.0
    %1880 = vmatpush.msra.mxu0 0.0
    %1881 = vmatpush.msra.mxu0 0.0
    %1882 = vmatpush.msra.mxu0 0.0
    %1883 = vmatpush.msra.mxu0 0.0
    %1884 = vmatpush.msra.mxu0 0.0
    %1885 = vmatpush.msra.mxu0 %v1862
    %1886 = vmatpush.msra.mxu0 %v1860
    %1887 = vmatmul.f32.gmra.mxu0 %v1866
    %v1888 = vpop.f32.mrf.mxu0
    %v1889 = vadd.f32 0.0, %v1888
    %1890 = vmatmul.f32.gmra.mxu0 %v1869
    %v1891 = vpop.f32.mrf.mxu0
    %v1892 = vadd.f32 0.0, %v1891
    %1893 = vdwg.mxu0
    %v1895 = vsel %vm442, %v1889, 0
    %v1898 = vsel %vm442, %v1892, 0
    %1900 = vmatpush.msra.mxu0 0.0
    %1901 = vmatpush.msra.mxu0 0.0
    %1902 = vmatpush.msra.mxu0 0.0
    %1903 = vmatpush.msra.mxu0 0.0
    %1904 = vmatpush.msra.mxu0 0.0
    %1905 = vmatpush.msra.mxu0 0.0
    %1906 = vmatpush.msra.mxu0 0.0
    %1907 = vmatpush.msra.mxu0 0.0
    %1908 = vmatpush.msra.mxu0 0.0
    %1909 = vmatpush.msra.mxu0 0.0
    %1910 = vmatpush.msra.mxu0 0.0
    %1911 = vmatpush.msra.mxu0 0.0
    %1912 = vmatpush.msra.mxu0 0.0
    %1913 = vmatpush.msra.mxu0 0.0
    %1914 = vmatpush.msra.mxu0 0.0
    %1915 = vmatpush.msra.mxu0 %v1302
    %1916 = vmatmul.f32.gmra.mxu0 %v1895
    %v1917 = vpop.f32.mrf.mxu0
    %v1918 = vadd.f32 0.0, %v1917
    %1919 = vmatmul.f32.gmra.mxu0 %v1898
    %v1920 = vpop.f32.mrf.mxu0
    %v1921 = vadd.f32 0.0, %v1920
    %1922 = vdwg.mxu0
    %v1923 = vadd.f32 %v1766, %v1918
    %v1924 = vadd.f32 %v1767, %v1921
    %v1925 = vadd.f32 %v1208, %v1923
    %v1926 = vadd.f32 %v1209, %v1924
    %v1927 = vld [vmem:[%s35] sm:$0x1]
    %v1929 = vperm.slane %v1927, 0
    %v1931 = vadd.f32 %v1925, %v1929
    %v1932 = vadd.f32 %v1926, %v1929
    %v1933 = vld [vmem:[%s37] sm:$0x1]
    %v1934 = vld [vmem:[%s39] sm:$0x1]
    %v1935 = vsel %vm337, %v1931, 0.0
    %1936 = vadd.xlane.f32.xlu0 %v1935
    %v1937 = vpop.xlane.xlu0 %1936
    %v1938 = vsel %vm337, %v1932, 0.0
    %1939 = vadd.xlane.f32.xlu0 %v1938
    %v1940 = vpop.xlane.xlu0 %1939
    %v1941 = vmul.f32 %v1937, %v350
    %v1942 = vmul.f32 %v1940, %v350
    %v1943 = vsub.f32 %v1931, %v1941
    %v1944 = vsub.f32 %v1932, %v1942
    %v1945 = vmul.f32 %v1943, %v1943
    %v1946 = vmul.f32 %v1944, %v1944
    %v1947 = vsel %vm337, %v1945, 0.0
    %1948 = vadd.xlane.f32.xlu0 %v1947
    %v1949 = vpop.xlane.xlu0 %1948
    %v1950 = vsel %vm337, %v1946, 0.0
    %1951 = vadd.xlane.f32.xlu0 %v1950
    %v1952 = vpop.xlane.xlu0 %1951
    %v1953 = vmul.f32 %v1949, %v350
    %v1954 = vmul.f32 %v1952, %v350
    %v1955 = vadd.f32 %v1953, 1e-05
    %v1956 = vadd.f32 %v1954, 1e-05
    %v1957 = vrsqrt.pop %v1955
    %v1958 = vmul.f32 %v1957, %v1955
    %v1959 = vmul.f32 %v1958, %v1957
    %v1960 = vmul.f32 0.5, %v1959
    %v1961 = vsub.f32 1.5, %v1960
    %v1962 = vmul.f32 %v1957, %v1961
    %vm1963 = vweird.f32 %v1955
    %vm1964 = vweird.f32 %v1957
    %vm1965 = vmor %vm1963, %vm1964
    %v1966 = vsel %vm1965, %v1957, %v1962
    %v1967 = vrsqrt.pop %v1956
    %v1968 = vmul.f32 %v1967, %v1956
    %v1969 = vmul.f32 %v1968, %v1967
    %v1970 = vmul.f32 0.5, %v1969
    %v1971 = vsub.f32 1.5, %v1970
    %v1972 = vmul.f32 %v1967, %v1971
    %vm1973 = vweird.f32 %v1956
    %vm1974 = vweird.f32 %v1967
    %vm1975 = vmor %vm1973, %vm1974
    %v1976 = vsel %vm1975, %v1967, %v1972
    %v1977 = vmul.f32 %v1943, %v1966
    %v1978 = vmul.f32 %v1944, %v1976
    %v1980 = vperm.slane %v1933, 0
    %v1982 = vmul.f32 %v1977, %v1980
    %v1983 = vmul.f32 %v1978, %v1980
    %v1985 = vperm.slane %v1934, 0
    %v1987 = vadd.f32 %v1982, %v1985
    %v1988 = vadd.f32 %v1983, %v1985
    %v1989 = vld [vmem:[%s41] sm:$0xff]
    %v1990 = vld [vmem:[%s41 + $0x8] sm:$0xff]
    %v1991 = vld [vmem:[%s41 + $0x10] sm:$0xff]
    %v1992 = vld [vmem:[%s41 + $0x18] sm:$0xff]
    %v1993 = vld [vmem:[%s43] sm:$0x1]
    %v1995 = vperm.slane %v1993, 0
    %v1998 = vsel %vm337, %v1987, 0
    %v2001 = vsel %vm337, %v1988, 0
    %2003 = vmatpush.msra.mxu0 0.0
    %2004 = vmatpush.msra.mxu0 0.0
    %2005 = vmatpush.msra.mxu0 0.0
    %2006 = vmatpush.msra.mxu0 0.0
    %2007 = vmatpush.msra.mxu0 0.0
    %2008 = vmatpush.msra.mxu0 0.0
    %2009 = vmatpush.msra.mxu0 0.0
    %2010 = vmatpush.msra.mxu0 0.0
    %2011 = vmatpush.msra.mxu0 0.0
    %2012 = vmatpush.msra.mxu0 0.0
    %2013 = vmatpush.msra.mxu0 0.0
    %2014 = vmatpush.msra.mxu0 0.0
    %2015 = vmatpush.msra.mxu0 %v1992
    %2016 = vmatpush.msra.mxu0 %v1991
    %2017 = vmatpush.msra.mxu0 %v1990
    %2018 = vmatpush.msra.mxu0 %v1989
    %2019 = vmatmul.f32.gmra.mxu0 %v1998
    %v2020 = vpop.f32.mrf.mxu0
    %v2021 = vadd.f32 %v1995, %v2020
    %2022 = vmatmul.f32.gmra.mxu0 %v2001
    %v2023 = vpop.f32.mrf.mxu0
    %v2024 = vadd.f32 %v1995, %v2023
    %2025 = vdwg.mxu0
    %v2026 = vmax.f32 %v2021, 0.0
    %v2027 = vmax.f32 %v2024, 0.0
    %v2028 = vld [vmem:[%s45] sm:$0xff]
    %v2029 = vld [vmem:[%s45 + $0x8] sm:$0xff]
    %v2030 = vld [vmem:[%s45 + $0x10] sm:$0xff]
    %v2031 = vld [vmem:[%s45 + $0x18] sm:$0xff]
    %v2032 = vld [vmem:[%s45 + $0x20] sm:$0xff]
    %v2033 = vld [vmem:[%s45 + $0x28] sm:$0xff]
    %v2034 = vld [vmem:[%s45 + $0x30] sm:$0xff]
    %v2035 = vld [vmem:[%s45 + $0x38] sm:$0xff]
    %v2036 = vld [vmem:[%s45 + $0x40] sm:$0xff]
    %v2037 = vld [vmem:[%s45 + $0x48] sm:$0xff]
    %v2038 = vld [vmem:[%s45 + $0x50] sm:$0xff]
    %v2039 = vld [vmem:[%s45 + $0x58] sm:$0xff]
    %v2040 = vld [vmem:[%s45 + $0x60] sm:$0xff]
    %v2041 = vld [vmem:[%s45 + $0x68] sm:$0xff]
    %v2042 = vld [vmem:[%s45 + $0x70] sm:$0xff]
    %v2043 = vld [vmem:[%s45 + $0x78] sm:$0xff]
    %2044 = vmatpush.msra.mxu0 %v2043
    %2045 = vmatpush.msra.mxu0 %v2042
    %2046 = vmatpush.msra.mxu0 %v2041
    %2047 = vmatpush.msra.mxu0 %v2040
    %2048 = vmatpush.msra.mxu0 %v2039
    %2049 = vmatpush.msra.mxu0 %v2038
    %2050 = vmatpush.msra.mxu0 %v2037
    %2051 = vmatpush.msra.mxu0 %v2036
    %2052 = vmatpush.msra.mxu0 %v2035
    %2053 = vmatpush.msra.mxu0 %v2034
    %2054 = vmatpush.msra.mxu0 %v2033
    %2055 = vmatpush.msra.mxu0 %v2032
    %2056 = vmatpush.msra.mxu0 %v2031
    %2057 = vmatpush.msra.mxu0 %v2030
    %2058 = vmatpush.msra.mxu0 %v2029
    %2059 = vmatpush.msra.mxu0 %v2028
    %2060 = vmatmul.f32.gmra.mxu0 %v2026
    %v2061 = vpop.f32.mrf.mxu0
    %v2062 = vadd.f32 0.0, %v2061
    %2063 = vmatmul.f32.gmra.mxu0 %v2027
    %v2064 = vpop.f32.mrf.mxu0
    %v2065 = vadd.f32 0.0, %v2064
    %2066 = vdwg.mxu0
    %v2067 = vadd.f32 %v1931, %v2062
    %v2068 = vadd.f32 %v1932, %v2065
    %v2069 = vld [vmem:[%s47] sm:$0x1]
    %v2071 = vperm.slane %v2069, 0
    %v2073 = vadd.f32 %v2067, %v2071
    %v2074 = vadd.f32 %v2068, %v2071
    %v2075 = vld [vmem:[%s49] sm:$0x1]
    %v2076 = vld [vmem:[%s51] sm:$0x1]
    %v2077 = vsel %vm337, %v2073, 0.0
    %2078 = vadd.xlane.f32.xlu0 %v2077
    %v2079 = vpop.xlane.xlu0 %2078
    %v2080 = vsel %vm337, %v2074, 0.0
    %2081 = vadd.xlane.f32.xlu0 %v2080
    %v2082 = vpop.xlane.xlu0 %2081
    %v2083 = vmul.f32 %v2079, %v350
    %v2084 = vmul.f32 %v2082, %v350
    %v2085 = vsub.f32 %v2073, %v2083
    %v2086 = vsub.f32 %v2074, %v2084
    %v2087 = vmul.f32 %v2085, %v2085
    %v2088 = vmul.f32 %v2086, %v2086
    %v2089 = vsel %vm337, %v2087, 0.0
    %2090 = vadd.xlane.f32.xlu0 %v2089
    %v2091 = vpop.xlane.xlu0 %2090
    %v2092 = vsel %vm337, %v2088, 0.0
    %2093 = vadd.xlane.f32.xlu0 %v2092
    %v2094 = vpop.xlane.xlu0 %2093
    %v2095 = vmul.f32 %v2091, %v350
    %v2096 = vmul.f32 %v2094, %v350
    %v2097 = vadd.f32 %v2095, 1e-05
    %v2098 = vadd.f32 %v2096, 1e-05
    %v2099 = vrsqrt.pop %v2097
    %v2100 = vmul.f32 %v2099, %v2097
    %v2101 = vmul.f32 %v2100, %v2099
    %v2102 = vmul.f32 0.5, %v2101
    %v2103 = vsub.f32 1.5, %v2102
    %v2104 = vmul.f32 %v2099, %v2103
    %vm2105 = vweird.f32 %v2097
    %vm2106 = vweird.f32 %v2099
    %vm2107 = vmor %vm2105, %vm2106
    %v2108 = vsel %vm2107, %v2099, %v2104
    %v2109 = vrsqrt.pop %v2098
    %v2110 = vmul.f32 %v2109, %v2098
    %v2111 = vmul.f32 %v2110, %v2109
    %v2112 = vmul.f32 0.5, %v2111
    %v2113 = vsub.f32 1.5, %v2112
    %v2114 = vmul.f32 %v2109, %v2113
    %vm2115 = vweird.f32 %v2098
    %vm2116 = vweird.f32 %v2109
    %vm2117 = vmor %vm2115, %vm2116
    %v2118 = vsel %vm2117, %v2109, %v2114
    %v2119 = vmul.f32 %v2085, %v2108
    %v2120 = vmul.f32 %v2086, %v2118
    %v2122 = vperm.slane %v2075, 0
    %v2124 = vmul.f32 %v2119, %v2122
    %v2125 = vmul.f32 %v2120, %v2122
    %v2127 = vperm.slane %v2076, 0
    %v2129 = vadd.f32 %v2124, %v2127
    %v2130 = vadd.f32 %v2125, %v2127
    %v2131 = vld [vmem:[%s53] sm:$0xff]
    %v2132 = vld [vmem:[%s53 + $0x8] sm:$0xff]
    %v2133 = vld [vmem:[%s53 + $0x10] sm:$0xff]
    %v2134 = vld [vmem:[%s53 + $0x18] sm:$0xff]
    %v2136 = vsel %vm337, %v2129, 0
    %v2139 = vsel %vm337, %v2130, 0
    %2141 = vmatpush.msra.mxu0 0.0
    %2142 = vmatpush.msra.mxu0 0.0
    %2143 = vmatpush.msra.mxu0 0.0
    %2144 = vmatpush.msra.mxu0 0.0
    %2145 = vmatpush.msra.mxu0 0.0
    %2146 = vmatpush.msra.mxu0 0.0
    %2147 = vmatpush.msra.mxu0 0.0
    %2148 = vmatpush.msra.mxu0 0.0
    %2149 = vmatpush.msra.mxu0 0.0
    %2150 = vmatpush.msra.mxu0 0.0
    %2151 = vmatpush.msra.mxu0 0.0
    %2152 = vmatpush.msra.mxu0 0.0
    %2153 = vmatpush.msra.mxu0 %v2134
    %2154 = vmatpush.msra.mxu0 %v2133
    %2155 = vmatpush.msra.mxu0 %v2132
    %2156 = vmatpush.msra.mxu0 %v2131
    %2157 = vmatmul.f32.gmra.mxu0 %v2136
    %v2158 = vpop.f32.mrf.mxu0
    %v2159 = vadd.f32 0.0, %v2158
    %2160 = vmatmul.f32.gmra.mxu0 %v2139
    %v2161 = vpop.f32.mrf.mxu0
    %v2162 = vadd.f32 0.0, %v2161
    %2163 = vdwg.mxu0
    %v2164 = vld [vmem:[%s55] sm:$0xff]
    %v2165 = vld [vmem:[%s55 + $0x8] sm:$0xff]
    %v2166 = vld [vmem:[%s55 + $0x10] sm:$0xff]
    %v2167 = vld [vmem:[%s55 + $0x18] sm:$0xff]
    %2170 = vrot.lane.b32.xlu0 %v2159, 96
    %v2171 = vpop.permute.xlu0 %2170
    %2172 = vrot.lane.b32.xlu0 %v2162, 96
    %v2173 = vpop.permute.xlu0 %2172
    %v2174 = vsel %vm442, %v2159, 0
    %v2176 = vsel %vm442, %v2162, 0
    %v2178 = vsel %vm442, %v2171, 0
    %v2180 = vsel %vm442, %v2173, 0
    %2182 = vmatpush.xpose.msra.mxu0 0.0
    %2183 = vmatpush.xpose.msra.mxu0 0.0
    %2184 = vmatpush.xpose.msra.mxu0 0.0
    %2185 = vmatpush.xpose.msra.mxu0 0.0
    %2186 = vmatpush.xpose.msra.mxu0 0.0
    %2187 = vmatpush.xpose.msra.mxu0 0.0
    %2188 = vmatpush.xpose.msra.mxu0 0.0
    %2189 = vmatpush.xpose.msra.mxu0 0.0
    %2190 = vmatpush.xpose.msra.mxu0 0.0
    %2191 = vmatpush.xpose.msra.mxu0 0.0
    %2192 = vmatpush.xpose.msra.mxu0 0.0
    %2193 = vmatpush.xpose.msra.mxu0 0.0
    %2194 = vmatpush.xpose.msra.mxu0 0.0
    %2195 = vmatpush.xpose.msra.mxu0 0.0
    %2196 = vmatpush.xpose.msra.mxu0 %v2180
    %2197 = vmatpush.xpose.msra.mxu0 %v2178
    %2198 = vmatmul.f32.gmra.mxu0 %v2174
    %v2199 = vpop.f32.mrf.mxu0
    %v2200 = vadd.f32 0.0, %v2199
    %2201 = vmatmul.f32.gmra.mxu0 %v2176
    %v2202 = vpop.f32.mrf.mxu0
    %v2203 = vadd.f32 0.0, %v2202
    %2204 = vdwg.mxu0
    %v2205 = vmul.f32 %v2200, 0.17677669
    %v2206 = vmul.f32 %v2203, 0.17677669
    %v2207 = vsel %vm333, %v2205, -inf
    %v2208 = vsel %vm334, %v2206, -inf
    %v2209 = vsel %vm478, %v2207, -inf
    %2210 = vmax.xlane.f32.xlu0 %v2209
    %v2211 = vpop.xlane.xlu0 %2210
    %v2212 = vsel %vm478, %v2208, -inf
    %2213 = vmax.xlane.f32.xlu0 %v2212
    %v2214 = vpop.xlane.xlu0 %2213
    %v2215 = vsub.f32 %v2207, %v2211
    %v2216 = vsub.f32 %v2208, %v2214
    %v2217 = vmul.f32 %v2215, 1.442695
    %v2218 = vpow.pop %v2217
    %v2219 = vmul.f32 %v2216, 1.442695
    %v2220 = vpow.pop %v2219
    %v2221 = vsel %vm478, %v2218, 0.0
    %2222 = vadd.xlane.f32.xlu0 %v2221
    %v2223 = vpop.xlane.xlu0 %2222
    %v2224 = vsel %vm478, %v2220, 0.0
    %2225 = vadd.xlane.f32.xlu0 %v2224
    %v2226 = vpop.xlane.xlu0 %2225
    %v2227 = vrcp.pop %v2223
    %v2228 = vmul.f32 %v2223, %v2227
    %v2229 = vsub.f32 1.0, %v2228
    %v2230 = vmul.f32 %v2227, %v2229
    %v2231 = vadd.f32 %v2227, %v2230
    %vm2232 = vweird.f32 %v2223
    %vm2233 = vweird.f32 %v2227
    %vm2234 = vmor %vm2232, %vm2233
    %v2235 = vsel %vm2234, %v2227, %v2231
    %v2236 = vand.u32 2147483647, %v2223
    %vm2237 = vcmp.eq.f32.partialorder %v2236, 8.507059e+37
    %v2238 = vand.u32 %v2223, 2147483648
    %v2239 = vor.u32 1.1754944e-38, %v2238
    %v2240 = vsel %vm2237, %v2239, %v2235
    %v2241 = vrcp.pop %v2226
    %v2242 = vmul.f32 %v2226, %v2241
    %v2243 = vsub.f32 1.0, %v2242
    %v2244 = vmul.f32 %v2241, %v2243
    %v2245 = vadd.f32 %v2241, %v2244
    %vm2246 = vweird.f32 %v2226
    %vm2247 = vweird.f32 %v2241
    %vm2248 = vmor %vm2246, %vm2247
    %v2249 = vsel %vm2248, %v2241, %v2245
    %v2250 = vand.u32 2147483647, %v2226
    %vm2251 = vcmp.eq.f32.partialorder %v2250, 8.507059e+37
    %v2252 = vand.u32 %v2226, 2147483648
    %v2253 = vor.u32 1.1754944e-38, %v2252
    %v2254 = vsel %vm2251, %v2253, %v2249
    %v2255 = vmul.f32 %v2218, %v2240
    %v2256 = vmul.f32 %v2220, %v2254
    %2257 = vrot.lane.b32.xlu0 %v2159, 64
    %v2258 = vpop.permute.xlu0 %2257
    %2259 = vrot.lane.b32.xlu0 %v2162, 64
    %v2260 = vpop.permute.xlu0 %2259
    %v2264 = vsel %vm478, %v2255, 0
    %v2267 = vsel %vm478, %v2256, 0
    %2269 = vmatpush.msra.mxu0 0.0
    %2270 = vmatpush.msra.mxu0 0.0
    %2271 = vmatpush.msra.mxu0 0.0
    %2272 = vmatpush.msra.mxu0 0.0
    %2273 = vmatpush.msra.mxu0 0.0
    %2274 = vmatpush.msra.mxu0 0.0
    %2275 = vmatpush.msra.mxu0 0.0
    %2276 = vmatpush.msra.mxu0 0.0
    %2277 = vmatpush.msra.mxu0 0.0
    %2278 = vmatpush.msra.mxu0 0.0
    %2279 = vmatpush.msra.mxu0 0.0
    %2280 = vmatpush.msra.mxu0 0.0
    %2281 = vmatpush.msra.mxu0 0.0
    %2282 = vmatpush.msra.mxu0 0.0
    %2283 = vmatpush.msra.mxu0 %v2260
    %2284 = vmatpush.msra.mxu0 %v2258
    %2285 = vmatmul.f32.gmra.mxu0 %v2264
    %v2286 = vpop.f32.mrf.mxu0
    %v2287 = vadd.f32 0.0, %v2286
    %2288 = vmatmul.f32.gmra.mxu0 %v2267
    %v2289 = vpop.f32.mrf.mxu0
    %v2290 = vadd.f32 0.0, %v2289
    %2291 = vdwg.mxu0
    %2292 = vrot.lane.b32.xlu0 %v2159, 120
    %v2293 = vpop.permute.xlu0 %2292
    %2294 = vrot.lane.b32.xlu0 %v2162, 120
    %v2295 = vpop.permute.xlu0 %2294
    %2296 = vrot.lane.b32.xlu0 %v2159, 88
    %v2297 = vpop.permute.xlu0 %2296
    %2298 = vrot.lane.b32.xlu0 %v2162, 88
    %v2299 = vpop.permute.xlu0 %2298
    %v2300 = vsel %vm442, %v2293, 0
    %v2302 = vsel %vm442, %v2295, 0
    %v2304 = vsel %vm442, %v2297, 0
    %v2306 = vsel %vm442, %v2299, 0
    %2308 = vmatpush.xpose.msra.mxu0 0.0
    %2309 = vmatpush.xpose.msra.mxu0 0.0
    %2310 = vmatpush.xpose.msra.mxu0 0.0
    %2311 = vmatpush.xpose.msra.mxu0 0.0
    %2312 = vmatpush.xpose.msra.mxu0 0.0
    %2313 = vmatpush.xpose.msra.mxu0 0.0
    %2314 = vmatpush.xpose.msra.mxu0 0.0
    %2315 = vmatpush.xpose.msra.mxu0 0.0
    %2316 = vmatpush.xpose.msra.mxu0 0.0
    %2317 = vmatpush.xpose.msra.mxu0 0.0
    %2318 = vmatpush.xpose.msra.mxu0 0.0
    %2319 = vmatpush.xpose.msra.mxu0 0.0
    %2320 = vmatpush.xpose.msra.mxu0 0.0
    %2321 = vmatpush.xpose.msra.mxu0 0.0
    %2322 = vmatpush.xpose.msra.mxu0 %v2306
    %2323 = vmatpush.xpose.msra.mxu0 %v2304
    %2324 = vmatmul.f32.gmra.mxu0 %v2300
    %v2325 = vpop.f32.mrf.mxu0
    %v2326 = vadd.f32 0.0, %v2325
    %2327 = vmatmul.f32.gmra.mxu0 %v2302
    %v2328 = vpop.f32.mrf.mxu0
    %v2329 = vadd.f32 0.0, %v2328
    %2330 = vdwg.mxu0
    %v2331 = vmul.f32 %v2326, 0.17677669
    %v2332 = vmul.f32 %v2329, 0.17677669
    %v2333 = vsel %vm333, %v2331, -inf
    %v2334 = vsel %vm334, %v2332, -inf
    %v2335 = vsel %vm478, %v2333, -inf
    %2336 = vmax.xlane.f32.xlu0 %v2335
    %v2337 = vpop.xlane.xlu0 %2336
    %v2338 = vsel %vm478, %v2334, -inf
    %2339 = vmax.xlane.f32.xlu0 %v2338
    %v2340 = vpop.xlane.xlu0 %2339
    %v2341 = vsub.f32 %v2333, %v2337
    %v2342 = vsub.f32 %v2334, %v2340
    %v2343 = vmul.f32 %v2341, 1.442695
    %v2344 = vpow.pop %v2343
    %v2345 = vmul.f32 %v2342, 1.442695
    %v2346 = vpow.pop %v2345
    %v2347 = vsel %vm478, %v2344, 0.0
    %2348 = vadd.xlane.f32.xlu0 %v2347
    %v2349 = vpop.xlane.xlu0 %2348
    %v2350 = vsel %vm478, %v2346, 0.0
    %2351 = vadd.xlane.f32.xlu0 %v2350
    %v2352 = vpop.xlane.xlu0 %2351
    %v2353 = vrcp.pop %v2349
    %v2354 = vmul.f32 %v2349, %v2353
    %v2355 = vsub.f32 1.0, %v2354
    %v2356 = vmul.f32 %v2353, %v2355
    %v2357 = vadd.f32 %v2353, %v2356
    %vm2358 = vweird.f32 %v2349
    %vm2359 = vweird.f32 %v2353
    %vm2360 = vmor %vm2358, %vm2359
    %v2361 = vsel %vm2360, %v2353, %v2357
    %v2362 = vand.u32 2147483647, %v2349
    %vm2363 = vcmp.eq.f32.partialorder %v2362, 8.507059e+37
    %v2364 = vand.u32 %v2349, 2147483648
    %v2365 = vor.u32 1.1754944e-38, %v2364
    %v2366 = vsel %vm2363, %v2365, %v2361
    %v2367 = vrcp.pop %v2352
    %v2368 = vmul.f32 %v2352, %v2367
    %v2369 = vsub.f32 1.0, %v2368
    %v2370 = vmul.f32 %v2367, %v2369
    %v2371 = vadd.f32 %v2367, %v2370
    %vm2372 = vweird.f32 %v2352
    %vm2373 = vweird.f32 %v2367
    %vm2374 = vmor %vm2372, %vm2373
    %v2375 = vsel %vm2374, %v2367, %v2371
    %v2376 = vand.u32 2147483647, %v2352
    %vm2377 = vcmp.eq.f32.partialorder %v2376, 8.507059e+37
    %v2378 = vand.u32 %v2352, 2147483648
    %v2379 = vor.u32 1.1754944e-38, %v2378
    %v2380 = vsel %vm2377, %v2379, %v2375
    %v2381 = vmul.f32 %v2344, %v2366
    %v2382 = vmul.f32 %v2346, %v2380
    %2383 = vrot.lane.b32.xlu0 %v2159, 56
    %v2384 = vpop.permute.xlu0 %2383
    %2385 = vrot.lane.b32.xlu0 %v2162, 56
    %v2386 = vpop.permute.xlu0 %2385
    %v2390 = vsel %vm478, %v2381, 0
    %v2393 = vsel %vm478, %v2382, 0
    %2395 = vmatpush.msra.mxu0 0.0
    %2396 = vmatpush.msra.mxu0 0.0
    %2397 = vmatpush.msra.mxu0 0.0
    %2398 = vmatpush.msra.mxu0 0.0
    %2399 = vmatpush.msra.mxu0 0.0
    %2400 = vmatpush.msra.mxu0 0.0
    %2401 = vmatpush.msra.mxu0 0.0
    %2402 = vmatpush.msra.mxu0 0.0
    %2403 = vmatpush.msra.mxu0 0.0
    %2404 = vmatpush.msra.mxu0 0.0
    %2405 = vmatpush.msra.mxu0 0.0
    %2406 = vmatpush.msra.mxu0 0.0
    %2407 = vmatpush.msra.mxu0 0.0
    %2408 = vmatpush.msra.mxu0 0.0
    %2409 = vmatpush.msra.mxu0 %v2386
    %2410 = vmatpush.msra.mxu0 %v2384
    %2411 = vmatmul.f32.gmra.mxu0 %v2390
    %v2412 = vpop.f32.mrf.mxu0
    %v2413 = vadd.f32 0.0, %v2412
    %2414 = vmatmul.f32.gmra.mxu0 %v2393
    %v2415 = vpop.f32.mrf.mxu0
    %v2416 = vadd.f32 0.0, %v2415
    %2417 = vdwg.mxu0
    %v2419 = vsel %vm442, %v2413, 0
    %v2422 = vsel %vm442, %v2416, 0
    %2424 = vmatpush.msra.mxu0 0.0
    %2425 = vmatpush.msra.mxu0 0.0
    %2426 = vmatpush.msra.mxu0 0.0
    %2427 = vmatpush.msra.mxu0 0.0
    %2428 = vmatpush.msra.mxu0 0.0
    %2429 = vmatpush.msra.mxu0 0.0
    %2430 = vmatpush.msra.mxu0 0.0
    %2431 = vmatpush.msra.mxu0 0.0
    %2432 = vmatpush.msra.mxu0 0.0
    %2433 = vmatpush.msra.mxu0 0.0
    %2434 = vmatpush.msra.mxu0 0.0
    %2435 = vmatpush.msra.mxu0 0.0
    %2436 = vmatpush.msra.mxu0 0.0
    %2437 = vmatpush.msra.mxu0 0.0
    %2438 = vmatpush.msra.mxu0 0.0
    %2439 = vmatpush.msra.mxu0 %v2165
    %2440 = vmatmul.f32.gmra.mxu0 %v2419
    %v2441 = vpop.f32.mrf.mxu0
    %v2442 = vadd.f32 0.0, %v2441
    %2443 = vmatmul.f32.gmra.mxu0 %v2422
    %v2444 = vpop.f32.mrf.mxu0
    %v2445 = vadd.f32 0.0, %v2444
    %2446 = vdwg.mxu0
    %v2448 = vsel %vm442, %v2287, 0
    %v2451 = vsel %vm442, %v2290, 0
    %2453 = vmatpush.msra.mxu0 0.0
    %2454 = vmatpush.msra.mxu0 0.0
    %2455 = vmatpush.msra.mxu0 0.0
    %2456 = vmatpush.msra.mxu0 0.0
    %2457 = vmatpush.msra.mxu0 0.0
    %2458 = vmatpush.msra.mxu0 0.0
    %2459 = vmatpush.msra.mxu0 0.0
    %2460 = vmatpush.msra.mxu0 0.0
    %2461 = vmatpush.msra.mxu0 0.0
    %2462 = vmatpush.msra.mxu0 0.0
    %2463 = vmatpush.msra.mxu0 0.0
    %2464 = vmatpush.msra.mxu0 0.0
    %2465 = vmatpush.msra.mxu0 0.0
    %2466 = vmatpush.msra.mxu0 0.0
    %2467 = vmatpush.msra.mxu0 0.0
    %2468 = vmatpush.msra.mxu0 %v2164
    %2469 = vmatmul.f32.gmra.mxu0 %v2448
    %v2470 = vpop.f32.mrf.mxu0
    %v2471 = vadd.f32 %v2442, %v2470
    %2472 = vmatmul.f32.gmra.mxu0 %v2451
    %v2473 = vpop.f32.mrf.mxu0
    %v2474 = vadd.f32 %v2445, %v2473
    %2475 = vdwg.mxu0
    %2476 = vrot.lane.b32.xlu0 %v2159, 112
    %v2477 = vpop.permute.xlu0 %2476
    %2478 = vrot.lane.b32.xlu0 %v2162, 112
    %v2479 = vpop.permute.xlu0 %2478
    %2480 = vrot.lane.b32.xlu0 %v2159, 80
    %v2481 = vpop.permute.xlu0 %2480
    %2482 = vrot.lane.b32.xlu0 %v2162, 80
    %v2483 = vpop.permute.xlu0 %2482
    %v2484 = vsel %vm442, %v2477, 0
    %v2486 = vsel %vm442, %v2479, 0
    %v2488 = vsel %vm442, %v2481, 0
    %v2490 = vsel %vm442, %v2483, 0
    %2492 = vmatpush.xpose.msra.mxu0 0.0
    %2493 = vmatpush.xpose.msra.mxu0 0.0
    %2494 = vmatpush.xpose.msra.mxu0 0.0
    %2495 = vmatpush.xpose.msra.mxu0 0.0
    %2496 = vmatpush.xpose.msra.mxu0 0.0
    %2497 = vmatpush.xpose.msra.mxu0 0.0
    %2498 = vmatpush.xpose.msra.mxu0 0.0
    %2499 = vmatpush.xpose.msra.mxu0 0.0
    %2500 = vmatpush.xpose.msra.mxu0 0.0
    %2501 = vmatpush.xpose.msra.mxu0 0.0
    %2502 = vmatpush.xpose.msra.mxu0 0.0
    %2503 = vmatpush.xpose.msra.mxu0 0.0
    %2504 = vmatpush.xpose.msra.mxu0 0.0
    %2505 = vmatpush.xpose.msra.mxu0 0.0
    %2506 = vmatpush.xpose.msra.mxu0 %v2490
    %2507 = vmatpush.xpose.msra.mxu0 %v2488
    %2508 = vmatmul.f32.gmra.mxu0 %v2484
    %v2509 = vpop.f32.mrf.mxu0
    %v2510 = vadd.f32 0.0, %v2509
    %2511 = vmatmul.f32.gmra.mxu0 %v2486
    %v2512 = vpop.f32.mrf.mxu0
    %v2513 = vadd.f32 0.0, %v2512
    %2514 = vdwg.mxu0
    %v2515 = vmul.f32 %v2510, 0.17677669
    %v2516 = vmul.f32 %v2513, 0.17677669
    %v2517 = vsel %vm333, %v2515, -inf
    %v2518 = vsel %vm334, %v2516, -inf
    %v2519 = vsel %vm478, %v2517, -inf
    %2520 = vmax.xlane.f32.xlu0 %v2519
    %v2521 = vpop.xlane.xlu0 %2520
    %v2522 = vsel %vm478, %v2518, -inf
    %2523 = vmax.xlane.f32.xlu0 %v2522
    %v2524 = vpop.xlane.xlu0 %2523
    %v2525 = vsub.f32 %v2517, %v2521
    %v2526 = vsub.f32 %v2518, %v2524
    %v2527 = vmul.f32 %v2525, 1.442695
    %v2528 = vpow.pop %v2527
    %v2529 = vmul.f32 %v2526, 1.442695
    %v2530 = vpow.pop %v2529
    %v2531 = vsel %vm478, %v2528, 0.0
    %2532 = vadd.xlane.f32.xlu0 %v2531
    %v2533 = vpop.xlane.xlu0 %2532
    %v2534 = vsel %vm478, %v2530, 0.0
    %2535 = vadd.xlane.f32.xlu0 %v2534
    %v2536 = vpop.xlane.xlu0 %2535
    %v2537 = vrcp.pop %v2533
    %v2538 = vmul.f32 %v2533, %v2537
    %v2539 = vsub.f32 1.0, %v2538
    %v2540 = vmul.f32 %v2537, %v2539
    %v2541 = vadd.f32 %v2537, %v2540
    %vm2542 = vweird.f32 %v2533
    %vm2543 = vweird.f32 %v2537
    %vm2544 = vmor %vm2542, %vm2543
    %v2545 = vsel %vm2544, %v2537, %v2541
    %v2546 = vand.u32 2147483647, %v2533
    %vm2547 = vcmp.eq.f32.partialorder %v2546, 8.507059e+37
    %v2548 = vand.u32 %v2533, 2147483648
    %v2549 = vor.u32 1.1754944e-38, %v2548
    %v2550 = vsel %vm2547, %v2549, %v2545
    %v2551 = vrcp.pop %v2536
    %v2552 = vmul.f32 %v2536, %v2551
    %v2553 = vsub.f32 1.0, %v2552
    %v2554 = vmul.f32 %v2551, %v2553
    %v2555 = vadd.f32 %v2551, %v2554
    %vm2556 = vweird.f32 %v2536
    %vm2557 = vweird.f32 %v2551
    %vm2558 = vmor %vm2556, %vm2557
    %v2559 = vsel %vm2558, %v2551, %v2555
    %v2560 = vand.u32 2147483647, %v2536
    %vm2561 = vcmp.eq.f32.partialorder %v2560, 8.507059e+37
    %v2562 = vand.u32 %v2536, 2147483648
    %v2563 = vor.u32 1.1754944e-38, %v2562
    %v2564 = vsel %vm2561, %v2563, %v2559
    %v2565 = vmul.f32 %v2528, %v2550
    %v2566 = vmul.f32 %v2530, %v2564
    %2567 = vrot.lane.b32.xlu0 %v2159, 48
    %v2568 = vpop.permute.xlu0 %2567
    %2569 = vrot.lane.b32.xlu0 %v2162, 48
    %v2570 = vpop.permute.xlu0 %2569
    %v2574 = vsel %vm478, %v2565, 0
    %v2577 = vsel %vm478, %v2566, 0
    %2579 = vmatpush.msra.mxu0 0.0
    %2580 = vmatpush.msra.mxu0 0.0
    %2581 = vmatpush.msra.mxu0 0.0
    %2582 = vmatpush.msra.mxu0 0.0
    %2583 = vmatpush.msra.mxu0 0.0
    %2584 = vmatpush.msra.mxu0 0.0
    %2585 = vmatpush.msra.mxu0 0.0
    %2586 = vmatpush.msra.mxu0 0.0
    %2587 = vmatpush.msra.mxu0 0.0
    %2588 = vmatpush.msra.mxu0 0.0
    %2589 = vmatpush.msra.mxu0 0.0
    %2590 = vmatpush.msra.mxu0 0.0
    %2591 = vmatpush.msra.mxu0 0.0
    %2592 = vmatpush.msra.mxu0 0.0
    %2593 = vmatpush.msra.mxu0 %v2570
    %2594 = vmatpush.msra.mxu0 %v2568
    %2595 = vmatmul.f32.gmra.mxu0 %v2574
    %v2596 = vpop.f32.mrf.mxu0
    %v2597 = vadd.f32 0.0, %v2596
    %2598 = vmatmul.f32.gmra.mxu0 %v2577
    %v2599 = vpop.f32.mrf.mxu0
    %v2600 = vadd.f32 0.0, %v2599
    %2601 = vdwg.mxu0
    %v2603 = vsel %vm442, %v2597, 0
    %v2606 = vsel %vm442, %v2600, 0
    %2608 = vmatpush.msra.mxu0 0.0
    %2609 = vmatpush.msra.mxu0 0.0
    %2610 = vmatpush.msra.mxu0 0.0
    %2611 = vmatpush.msra.mxu0 0.0
    %2612 = vmatpush.msra.mxu0 0.0
    %2613 = vmatpush.msra.mxu0 0.0
    %2614 = vmatpush.msra.mxu0 0.0
    %2615 = vmatpush.msra.mxu0 0.0
    %2616 = vmatpush.msra.mxu0 0.0
    %2617 = vmatpush.msra.mxu0 0.0
    %2618 = vmatpush.msra.mxu0 0.0
    %2619 = vmatpush.msra.mxu0 0.0
    %2620 = vmatpush.msra.mxu0 0.0
    %2621 = vmatpush.msra.mxu0 0.0
    %2622 = vmatpush.msra.mxu0 0.0
    %2623 = vmatpush.msra.mxu0 %v2166
    %2624 = vmatmul.f32.gmra.mxu0 %v2603
    %v2625 = vpop.f32.mrf.mxu0
    %v2626 = vadd.f32 0.0, %v2625
    %2627 = vmatmul.f32.gmra.mxu0 %v2606
    %v2628 = vpop.f32.mrf.mxu0
    %v2629 = vadd.f32 0.0, %v2628
    %2630 = vdwg.mxu0
    %v2631 = vadd.f32 %v2471, %v2626
    %v2632 = vadd.f32 %v2474, %v2629
    %2633 = vrot.lane.b32.xlu0 %v2159, 104
    %v2634 = vpop.permute.xlu0 %2633
    %2635 = vrot.lane.b32.xlu0 %v2162, 104
    %v2636 = vpop.permute.xlu0 %2635
    %2637 = vrot.lane.b32.xlu0 %v2159, 72
    %v2638 = vpop.permute.xlu0 %2637
    %2639 = vrot.lane.b32.xlu0 %v2162, 72
    %v2640 = vpop.permute.xlu0 %2639
    %v2641 = vsel %vm442, %v2634, 0
    %v2643 = vsel %vm442, %v2636, 0
    %v2645 = vsel %vm442, %v2638, 0
    %v2647 = vsel %vm442, %v2640, 0
    %2649 = vmatpush.xpose.msra.mxu0 0.0
    %2650 = vmatpush.xpose.msra.mxu0 0.0
    %2651 = vmatpush.xpose.msra.mxu0 0.0
    %2652 = vmatpush.xpose.msra.mxu0 0.0
    %2653 = vmatpush.xpose.msra.mxu0 0.0
    %2654 = vmatpush.xpose.msra.mxu0 0.0
    %2655 = vmatpush.xpose.msra.mxu0 0.0
    %2656 = vmatpush.xpose.msra.mxu0 0.0
    %2657 = vmatpush.xpose.msra.mxu0 0.0
    %2658 = vmatpush.xpose.msra.mxu0 0.0
    %2659 = vmatpush.xpose.msra.mxu0 0.0
    %2660 = vmatpush.xpose.msra.mxu0 0.0
    %2661 = vmatpush.xpose.msra.mxu0 0.0
    %2662 = vmatpush.xpose.msra.mxu0 0.0
    %2663 = vmatpush.xpose.msra.mxu0 %v2647
    %2664 = vmatpush.xpose.msra.mxu0 %v2645
    %2665 = vmatmul.f32.gmra.mxu0 %v2641
    %v2666 = vpop.f32.mrf.mxu0
    %v2667 = vadd.f32 0.0, %v2666
    %2668 = vmatmul.f32.gmra.mxu0 %v2643
    %v2669 = vpop.f32.mrf.mxu0
    %v2670 = vadd.f32 0.0, %v2669
    %2671 = vdwg.mxu0
    %v2672 = vmul.f32 %v2667, 0.17677669
    %v2673 = vmul.f32 %v2670, 0.17677669
    %v2674 = vsel %vm333, %v2672, -inf
    %v2675 = vsel %vm334, %v2673, -inf
    %v2676 = vsel %vm478, %v2674, -inf
    %2677 = vmax.xlane.f32.xlu0 %v2676
    %v2678 = vpop.xlane.xlu0 %2677
    %v2679 = vsel %vm478, %v2675, -inf
    %2680 = vmax.xlane.f32.xlu0 %v2679
    %v2681 = vpop.xlane.xlu0 %2680
    %v2682 = vsub.f32 %v2674, %v2678
    %v2683 = vsub.f32 %v2675, %v2681
    %v2684 = vmul.f32 %v2682, 1.442695
    %v2685 = vpow.pop %v2684
    %v2686 = vmul.f32 %v2683, 1.442695
    %v2687 = vpow.pop %v2686
    %v2688 = vsel %vm478, %v2685, 0.0
    %2689 = vadd.xlane.f32.xlu0 %v2688
    %v2690 = vpop.xlane.xlu0 %2689
    %v2691 = vsel %vm478, %v2687, 0.0
    %2692 = vadd.xlane.f32.xlu0 %v2691
    %v2693 = vpop.xlane.xlu0 %2692
    %v2694 = vrcp.pop %v2690
    %v2695 = vmul.f32 %v2690, %v2694
    %v2696 = vsub.f32 1.0, %v2695
    %v2697 = vmul.f32 %v2694, %v2696
    %v2698 = vadd.f32 %v2694, %v2697
    %vm2699 = vweird.f32 %v2690
    %vm2700 = vweird.f32 %v2694
    %vm2701 = vmor %vm2699, %vm2700
    %v2702 = vsel %vm2701, %v2694, %v2698
    %v2703 = vand.u32 2147483647, %v2690
    %vm2704 = vcmp.eq.f32.partialorder %v2703, 8.507059e+37
    %v2705 = vand.u32 %v2690, 2147483648
    %v2706 = vor.u32 1.1754944e-38, %v2705
    %v2707 = vsel %vm2704, %v2706, %v2702
    %v2708 = vrcp.pop %v2693
    %v2709 = vmul.f32 %v2693, %v2708
    %v2710 = vsub.f32 1.0, %v2709
    %v2711 = vmul.f32 %v2708, %v2710
    %v2712 = vadd.f32 %v2708, %v2711
    %vm2713 = vweird.f32 %v2693
    %vm2714 = vweird.f32 %v2708
    %vm2715 = vmor %vm2713, %vm2714
    %v2716 = vsel %vm2715, %v2708, %v2712
    %v2717 = vand.u32 2147483647, %v2693
    %vm2718 = vcmp.eq.f32.partialorder %v2717, 8.507059e+37
    %v2719 = vand.u32 %v2693, 2147483648
    %v2720 = vor.u32 1.1754944e-38, %v2719
    %v2721 = vsel %vm2718, %v2720, %v2716
    %v2722 = vmul.f32 %v2685, %v2707
    %v2723 = vmul.f32 %v2687, %v2721
    %2724 = vrot.lane.b32.xlu0 %v2159, 40
    %v2725 = vpop.permute.xlu0 %2724
    %2726 = vrot.lane.b32.xlu0 %v2162, 40
    %v2727 = vpop.permute.xlu0 %2726
    %v2731 = vsel %vm478, %v2722, 0
    %v2734 = vsel %vm478, %v2723, 0
    %2736 = vmatpush.msra.mxu0 0.0
    %2737 = vmatpush.msra.mxu0 0.0
    %2738 = vmatpush.msra.mxu0 0.0
    %2739 = vmatpush.msra.mxu0 0.0
    %2740 = vmatpush.msra.mxu0 0.0
    %2741 = vmatpush.msra.mxu0 0.0
    %2742 = vmatpush.msra.mxu0 0.0
    %2743 = vmatpush.msra.mxu0 0.0
    %2744 = vmatpush.msra.mxu0 0.0
    %2745 = vmatpush.msra.mxu0 0.0
    %2746 = vmatpush.msra.mxu0 0.0
    %2747 = vmatpush.msra.mxu0 0.0
    %2748 = vmatpush.msra.mxu0 0.0
    %2749 = vmatpush.msra.mxu0 0.0
    %2750 = vmatpush.msra.mxu0 %v2727
    %2751 = vmatpush.msra.mxu0 %v2725
    %2752 = vmatmul.f32.gmra.mxu0 %v2731
    %v2753 = vpop.f32.mrf.mxu0
    %v2754 = vadd.f32 0.0, %v2753
    %2755 = vmatmul.f32.gmra.mxu0 %v2734
    %v2756 = vpop.f32.mrf.mxu0
    %v2757 = vadd.f32 0.0, %v2756
    %2758 = vdwg.mxu0
    %v2760 = vsel %vm442, %v2754, 0
    %v2763 = vsel %vm442, %v2757, 0
    %2765 = vmatpush.msra.mxu0 0.0
    %2766 = vmatpush.msra.mxu0 0.0
    %2767 = vmatpush.msra.mxu0 0.0
    %2768 = vmatpush.msra.mxu0 0.0
    %2769 = vmatpush.msra.mxu0 0.0
    %2770 = vmatpush.msra.mxu0 0.0
    %2771 = vmatpush.msra.mxu0 0.0
    %2772 = vmatpush.msra.mxu0 0.0
    %2773 = vmatpush.msra.mxu0 0.0
    %2774 = vmatpush.msra.mxu0 0.0
    %2775 = vmatpush.msra.mxu0 0.0
    %2776 = vmatpush.msra.mxu0 0.0
    %2777 = vmatpush.msra.mxu0 0.0
    %2778 = vmatpush.msra.mxu0 0.0
    %2779 = vmatpush.msra.mxu0 0.0
    %2780 = vmatpush.msra.mxu0 %v2167
    %2781 = vmatmul.f32.gmra.mxu0 %v2760
    %v2782 = vpop.f32.mrf.mxu0
    %v2783 = vadd.f32 0.0, %v2782
    %2784 = vmatmul.f32.gmra.mxu0 %v2763
    %v2785 = vpop.f32.mrf.mxu0
    %v2786 = vadd.f32 0.0, %v2785
    %2787 = vdwg.mxu0
    %v2788 = vadd.f32 %v2631, %v2783
    %v2789 = vadd.f32 %v2632, %v2786
    %v2790 = vadd.f32 %v2073, %v2788
    %v2791 = vadd.f32 %v2074, %v2789
    %v2792 = vld [vmem:[%s57] sm:$0x1]
    %v2794 = vperm.slane %v2792, 0
    %v2796 = vadd.f32 %v2790, %v2794
    %v2797 = vadd.f32 %v2791, %v2794
    %v2798 = vld [vmem:[%s59] sm:$0x1]
    %v2799 = vld [vmem:[%s61] sm:$0x1]
    %v2800 = vsel %vm337, %v2796, 0.0
    %2801 = vadd.xlane.f32.xlu0 %v2800
    %v2802 = vpop.xlane.xlu0 %2801
    %v2803 = vsel %vm337, %v2797, 0.0
    %2804 = vadd.xlane.f32.xlu0 %v2803
    %v2805 = vpop.xlane.xlu0 %2804
    %v2806 = vmul.f32 %v2802, %v350
    %v2807 = vmul.f32 %v2805, %v350
    %v2808 = vsub.f32 %v2796, %v2806
    %v2809 = vsub.f32 %v2797, %v2807
    %v2810 = vmul.f32 %v2808, %v2808
    %v2811 = vmul.f32 %v2809, %v2809
    %v2812 = vsel %vm337, %v2810, 0.0
    %2813 = vadd.xlane.f32.xlu0 %v2812
    %v2814 = vpop.xlane.xlu0 %2813
    %v2815 = vsel %vm337, %v2811, 0.0
    %2816 = vadd.xlane.f32.xlu0 %v2815
    %v2817 = vpop.xlane.xlu0 %2816
    %v2818 = vmul.f32 %v2814, %v350
    %v2819 = vmul.f32 %v2817, %v350
    %v2820 = vadd.f32 %v2818, 1e-05
    %v2821 = vadd.f32 %v2819, 1e-05
    %v2822 = vrsqrt.pop %v2820
    %v2823 = vmul.f32 %v2822, %v2820
    %v2824 = vmul.f32 %v2823, %v2822
    %v2825 = vmul.f32 0.5, %v2824
    %v2826 = vsub.f32 1.5, %v2825
    %v2827 = vmul.f32 %v2822, %v2826
    %vm2828 = vweird.f32 %v2820
    %vm2829 = vweird.f32 %v2822
    %vm2830 = vmor %vm2828, %vm2829
    %v2831 = vsel %vm2830, %v2822, %v2827
    %v2832 = vrsqrt.pop %v2821
    %v2833 = vmul.f32 %v2832, %v2821
    %v2834 = vmul.f32 %v2833, %v2832
    %v2835 = vmul.f32 0.5, %v2834
    %v2836 = vsub.f32 1.5, %v2835
    %v2837 = vmul.f32 %v2832, %v2836
    %vm2838 = vweird.f32 %v2821
    %vm2839 = vweird.f32 %v2832
    %vm2840 = vmor %vm2838, %vm2839
    %v2841 = vsel %vm2840, %v2832, %v2837
    %v2842 = vmul.f32 %v2808, %v2831
    %v2843 = vmul.f32 %v2809, %v2841
    %v2845 = vperm.slane %v2798, 0
    %v2847 = vmul.f32 %v2842, %v2845
    %v2848 = vmul.f32 %v2843, %v2845
    %v2850 = vperm.slane %v2799, 0
    %v2852 = vadd.f32 %v2847, %v2850
    %v2853 = vadd.f32 %v2848, %v2850
    %v2854 = vld [vmem:[%s63] sm:$0xff]
    %v2855 = vld [vmem:[%s63 + $0x8] sm:$0xff]
    %v2856 = vld [vmem:[%s63 + $0x10] sm:$0xff]
    %v2857 = vld [vmem:[%s63 + $0x18] sm:$0xff]
    %v2858 = vld [vmem:[%s65] sm:$0x1]
    %v2860 = vperm.slane %v2858, 0
    %v2863 = vsel %vm337, %v2852, 0
    %v2866 = vsel %vm337, %v2853, 0
    %2868 = vmatpush.msra.mxu0 0.0
    %2869 = vmatpush.msra.mxu0 0.0
    %2870 = vmatpush.msra.mxu0 0.0
    %2871 = vmatpush.msra.mxu0 0.0
    %2872 = vmatpush.msra.mxu0 0.0
    %2873 = vmatpush.msra.mxu0 0.0
    %2874 = vmatpush.msra.mxu0 0.0
    %2875 = vmatpush.msra.mxu0 0.0
    %2876 = vmatpush.msra.mxu0 0.0
    %2877 = vmatpush.msra.mxu0 0.0
    %2878 = vmatpush.msra.mxu0 0.0
    %2879 = vmatpush.msra.mxu0 0.0
    %2880 = vmatpush.msra.mxu0 %v2857
    %2881 = vmatpush.msra.mxu0 %v2856
    %2882 = vmatpush.msra.mxu0 %v2855
    %2883 = vmatpush.msra.mxu0 %v2854
    %2884 = vmatmul.f32.gmra.mxu0 %v2863
    %v2885 = vpop.f32.mrf.mxu0
    %v2886 = vadd.f32 %v2860, %v2885
    %2887 = vmatmul.f32.gmra.mxu0 %v2866
    %v2888 = vpop.f32.mrf.mxu0
    %v2889 = vadd.f32 %v2860, %v2888
    %2890 = vdwg.mxu0
    %v2891 = vmax.f32 %v2886, 0.0
    %v2892 = vmax.f32 %v2889, 0.0
    %v2893 = vld [vmem:[%s67] sm:$0xff]
    %v2894 = vld [vmem:[%s67 + $0x8] sm:$0xff]
    %v2895 = vld [vmem:[%s67 + $0x10] sm:$0xff]
    %v2896 = vld [vmem:[%s67 + $0x18] sm:$0xff]
    %v2897 = vld [vmem:[%s67 + $0x20] sm:$0xff]
    %v2898 = vld [vmem:[%s67 + $0x28] sm:$0xff]
    %v2899 = vld [vmem:[%s67 + $0x30] sm:$0xff]
    %v2900 = vld [vmem:[%s67 + $0x38] sm:$0xff]
    %v2901 = vld [vmem:[%s67 + $0x40] sm:$0xff]
    %v2902 = vld [vmem:[%s67 + $0x48] sm:$0xff]
    %v2903 = vld [vmem:[%s67 + $0x50] sm:$0xff]
    %v2904 = vld [vmem:[%s67 + $0x58] sm:$0xff]
    %v2905 = vld [vmem:[%s67 + $0x60] sm:$0xff]
    %v2906 = vld [vmem:[%s67 + $0x68] sm:$0xff]
    %v2907 = vld [vmem:[%s67 + $0x70] sm:$0xff]
    %v2908 = vld [vmem:[%s67 + $0x78] sm:$0xff]
    %2909 = vmatpush.msra.mxu0 %v2908
    %2910 = vmatpush.msra.mxu0 %v2907
    %2911 = vmatpush.msra.mxu0 %v2906
    %2912 = vmatpush.msra.mxu0 %v2905
    %2913 = vmatpush.msra.mxu0 %v2904
    %2914 = vmatpush.msra.mxu0 %v2903
    %2915 = vmatpush.msra.mxu0 %v2902
    %2916 = vmatpush.msra.mxu0 %v2901
    %2917 = vmatpush.msra.mxu0 %v2900
    %2918 = vmatpush.msra.mxu0 %v2899
    %2919 = vmatpush.msra.mxu0 %v2898
    %2920 = vmatpush.msra.mxu0 %v2897
    %2921 = vmatpush.msra.mxu0 %v2896
    %2922 = vmatpush.msra.mxu0 %v2895
    %2923 = vmatpush.msra.mxu0 %v2894
    %2924 = vmatpush.msra.mxu0 %v2893
    %2925 = vmatmul.f32.gmra.mxu0 %v2891
    %v2926 = vpop.f32.mrf.mxu0
    %v2927 = vadd.f32 0.0, %v2926
    %2928 = vmatmul.f32.gmra.mxu0 %v2892
    %v2929 = vpop.f32.mrf.mxu0
    %v2930 = vadd.f32 0.0, %v2929
    %2931 = vdwg.mxu0
    %v2932 = vadd.f32 %v2796, %v2927
    %v2933 = vadd.f32 %v2797, %v2930
    %v2934 = vld [vmem:[%s69] sm:$0x1]
    %v2936 = vperm.slane %v2934, 0
    %v2938 = vadd.f32 %v2932, %v2936
    %v2939 = vadd.f32 %v2933, %v2936
    %v2940 = vld [vmem:[%s71] sm:$0x1]
    %v2941 = vld [vmem:[#allocation2] sm:$0x1]
    %v2942 = vsel %vm337, %v2938, 0.0
    %2943 = vadd.xlane.f32.xlu0 %v2942
    %v2944 = vpop.xlane.xlu0 %2943
    %v2945 = vsel %vm337, %v2939, 0.0
    %2946 = vadd.xlane.f32.xlu0 %v2945
    %v2947 = vpop.xlane.xlu0 %2946
    %v2948 = vmul.f32 %v2944, %v350
    %v2949 = vmul.f32 %v2947, %v350
    %v2950 = vsub.f32 %v2938, %v2948
    %v2951 = vsub.f32 %v2939, %v2949
    %v2952 = vmul.f32 %v2950, %v2950
    %v2953 = vmul.f32 %v2951, %v2951
    %v2954 = vsel %vm337, %v2952, 0.0
    %2955 = vadd.xlane.f32.xlu0 %v2954
    %v2956 = vpop.xlane.xlu0 %2955
    %v2957 = vsel %vm337, %v2953, 0.0
    %2958 = vadd.xlane.f32.xlu0 %v2957
    %v2959 = vpop.xlane.xlu0 %2958
    %v2960 = vmul.f32 %v2956, %v350
    %v2961 = vmul.f32 %v2959, %v350
    %v2962 = vadd.f32 %v2960, 1e-05
    %v2963 = vadd.f32 %v2961, 1e-05
    %v2964 = vrsqrt.pop %v2962
    %v2965 = vmul.f32 %v2964, %v2962
    %v2966 = vmul.f32 %v2965, %v2964
    %v2967 = vmul.f32 0.5, %v2966
    %v2968 = vsub.f32 1.5, %v2967
    %v2969 = vmul.f32 %v2964, %v2968
    %vm2970 = vweird.f32 %v2962
    %vm2971 = vweird.f32 %v2964
    %vm2972 = vmor %vm2970, %vm2971
    %v2973 = vsel %vm2972, %v2964, %v2969
    %v2974 = vrsqrt.pop %v2963
    %v2975 = vmul.f32 %v2974, %v2963
    %v2976 = vmul.f32 %v2975, %v2974
    %v2977 = vmul.f32 0.5, %v2976
    %v2978 = vsub.f32 1.5, %v2977
    %v2979 = vmul.f32 %v2974, %v2978
    %vm2980 = vweird.f32 %v2963
    %vm2981 = vweird.f32 %v2974
    %vm2982 = vmor %vm2980, %vm2981
    %v2983 = vsel %vm2982, %v2974, %v2979
    %v2984 = vmul.f32 %v2950, %v2973
    %v2985 = vmul.f32 %v2951, %v2983
    %v2987 = vperm.slane %v2940, 0
    %v2989 = vmul.f32 %v2984, %v2987
    %v2990 = vmul.f32 %v2985, %v2987
    %v2992 = vperm.slane %v2941, 0
    %v2994 = vadd.f32 %v2989, %v2992
    %v2995 = vadd.f32 %v2990, %v2992
    %v2996 = vld [vmem:[%s75] sm:$0xff]
    %v2997 = vld [vmem:[%s75 + $0x8] sm:$0xff]
    %v2998 = vld [vmem:[%s75 + $0x10] sm:$0xff]
    %v2999 = vld [vmem:[%s75 + $0x18] sm:$0xff]
    %v3001 = vsel %vm337, %v2994, 0
    %v3004 = vsel %vm337, %v2995, 0
    %3006 = vmatpush.msra.mxu0 0.0
    %3007 = vmatpush.msra.mxu0 0.0
    %3008 = vmatpush.msra.mxu0 0.0
    %3009 = vmatpush.msra.mxu0 0.0
    %3010 = vmatpush.msra.mxu0 0.0
    %3011 = vmatpush.msra.mxu0 0.0
    %3012 = vmatpush.msra.mxu0 0.0
    %3013 = vmatpush.msra.mxu0 0.0
    %3014 = vmatpush.msra.mxu0 0.0
    %3015 = vmatpush.msra.mxu0 0.0
    %3016 = vmatpush.msra.mxu0 0.0
    %3017 = vmatpush.msra.mxu0 0.0
    %3018 = vmatpush.msra.mxu0 %v2999
    %3019 = vmatpush.msra.mxu0 %v2998
    %3020 = vmatpush.msra.mxu0 %v2997
    %3021 = vmatpush.msra.mxu0 %v2996
    %3022 = vmatmul.f32.gmra.mxu0 %v3001
    %v3023 = vpop.f32.mrf.mxu0
    %v3024 = vadd.f32 0.0, %v3023
    %3025 = vmatmul.f32.gmra.mxu0 %v3004
    %v3026 = vpop.f32.mrf.mxu0
    %v3027 = vadd.f32 0.0, %v3026
    %3028 = vdwg.mxu0
    %v3029 = vld [vmem:[%s77] sm:$0xff]
    %v3030 = vld [vmem:[%s77 + $0x8] sm:$0xff]
    %v3031 = vld [vmem:[%s77 + $0x10] sm:$0xff]
    %v3032 = vld [vmem:[%s77 + $0x18] sm:$0xff]
    %3035 = vrot.lane.b32.xlu0 %v3024, 96
    %v3036 = vpop.permute.xlu0 %3035
    %3037 = vrot.lane.b32.xlu0 %v3027, 96
    %v3038 = vpop.permute.xlu0 %3037
    %v3039 = vsel %vm442, %v3024, 0
    %v3041 = vsel %vm442, %v3027, 0
    %v3043 = vsel %vm442, %v3036, 0
    %v3045 = vsel %vm442, %v3038, 0
    %3047 = vmatpush.xpose.msra.mxu0 0.0
    %3048 = vmatpush.xpose.msra.mxu0 0.0
    %3049 = vmatpush.xpose.msra.mxu0 0.0
    %3050 = vmatpush.xpose.msra.mxu0 0.0
    %3051 = vmatpush.xpose.msra.mxu0 0.0
    %3052 = vmatpush.xpose.msra.mxu0 0.0
    %3053 = vmatpush.xpose.msra.mxu0 0.0
    %3054 = vmatpush.xpose.msra.mxu0 0.0
    %3055 = vmatpush.xpose.msra.mxu0 0.0
    %3056 = vmatpush.xpose.msra.mxu0 0.0
    %3057 = vmatpush.xpose.msra.mxu0 0.0
    %3058 = vmatpush.xpose.msra.mxu0 0.0
    %3059 = vmatpush.xpose.msra.mxu0 0.0
    %3060 = vmatpush.xpose.msra.mxu0 0.0
    %3061 = vmatpush.xpose.msra.mxu0 %v3045
    %3062 = vmatpush.xpose.msra.mxu0 %v3043
    %3063 = vmatmul.f32.gmra.mxu0 %v3039
    %v3064 = vpop.f32.mrf.mxu0
    %v3065 = vadd.f32 0.0, %v3064
    %3066 = vmatmul.f32.gmra.mxu0 %v3041
    %v3067 = vpop.f32.mrf.mxu0
    %v3068 = vadd.f32 0.0, %v3067
    %3069 = vdwg.mxu0
    %v3070 = vmul.f32 %v3065, 0.17677669
    %v3071 = vmul.f32 %v3068, 0.17677669
    %v3072 = vsel %vm333, %v3070, -inf
    %v3073 = vsel %vm334, %v3071, -inf
    %v3074 = vsel %vm478, %v3072, -inf
    %3075 = vmax.xlane.f32.xlu0 %v3074
    %v3076 = vpop.xlane.xlu0 %3075
    %v3077 = vsel %vm478, %v3073, -inf
    %3078 = vmax.xlane.f32.xlu0 %v3077
    %v3079 = vpop.xlane.xlu0 %3078
    %v3080 = vsub.f32 %v3072, %v3076
    %v3081 = vsub.f32 %v3073, %v3079
    %v3082 = vmul.f32 %v3080, 1.442695
    %v3083 = vpow.pop %v3082
    %v3084 = vmul.f32 %v3081, 1.442695
    %v3085 = vpow.pop %v3084
    %v3086 = vsel %vm478, %v3083, 0.0
    %3087 = vadd.xlane.f32.xlu0 %v3086
    %v3088 = vpop.xlane.xlu0 %3087
    %v3089 = vsel %vm478, %v3085, 0.0
    %3090 = vadd.xlane.f32.xlu0 %v3089
    %v3091 = vpop.xlane.xlu0 %3090
    %v3092 = vrcp.pop %v3088
    %v3093 = vmul.f32 %v3088, %v3092
    %v3094 = vsub.f32 1.0, %v3093
    %v3095 = vmul.f32 %v3092, %v3094
    %v3096 = vadd.f32 %v3092, %v3095
    %vm3097 = vweird.f32 %v3088
    %vm3098 = vweird.f32 %v3092
    %vm3099 = vmor %vm3097, %vm3098
    %v3100 = vsel %vm3099, %v3092, %v3096
    %v3101 = vand.u32 2147483647, %v3088
    %vm3102 = vcmp.eq.f32.partialorder %v3101, 8.507059e+37
    %v3103 = vand.u32 %v3088, 2147483648
    %v3104 = vor.u32 1.1754944e-38, %v3103
    %v3105 = vsel %vm3102, %v3104, %v3100
    %v3106 = vrcp.pop %v3091
    %v3107 = vmul.f32 %v3091, %v3106
    %v3108 = vsub.f32 1.0, %v3107
    %v3109 = vmul.f32 %v3106, %v3108
    %v3110 = vadd.f32 %v3106, %v3109
    %vm3111 = vweird.f32 %v3091
    %vm3112 = vweird.f32 %v3106
    %vm3113 = vmor %vm3111, %vm3112
    %v3114 = vsel %vm3113, %v3106, %v3110
    %v3115 = vand.u32 2147483647, %v3091
    %vm3116 = vcmp.eq.f32.partialorder %v3115, 8.507059e+37
    %v3117 = vand.u32 %v3091, 2147483648
    %v3118 = vor.u32 1.1754944e-38, %v3117
    %v3119 = vsel %vm3116, %v3118, %v3114
    %v3120 = vmul.f32 %v3083, %v3105
    %v3121 = vmul.f32 %v3085, %v3119
    %3122 = vrot.lane.b32.xlu0 %v3024, 64
    %v3123 = vpop.permute.xlu0 %3122
    %3124 = vrot.lane.b32.xlu0 %v3027, 64
    %v3125 = vpop.permute.xlu0 %3124
    %v3129 = vsel %vm478, %v3120, 0
    %v3132 = vsel %vm478, %v3121, 0
    %3134 = vmatpush.msra.mxu0 0.0
    %3135 = vmatpush.msra.mxu0 0.0
    %3136 = vmatpush.msra.mxu0 0.0
    %3137 = vmatpush.msra.mxu0 0.0
    %3138 = vmatpush.msra.mxu0 0.0
    %3139 = vmatpush.msra.mxu0 0.0
    %3140 = vmatpush.msra.mxu0 0.0
    %3141 = vmatpush.msra.mxu0 0.0
    %3142 = vmatpush.msra.mxu0 0.0
    %3143 = vmatpush.msra.mxu0 0.0
    %3144 = vmatpush.msra.mxu0 0.0
    %3145 = vmatpush.msra.mxu0 0.0
    %3146 = vmatpush.msra.mxu0 0.0
    %3147 = vmatpush.msra.mxu0 0.0
    %3148 = vmatpush.msra.mxu0 %v3125
    %3149 = vmatpush.msra.mxu0 %v3123
    %3150 = vmatmul.f32.gmra.mxu0 %v3129
    %v3151 = vpop.f32.mrf.mxu0
    %v3152 = vadd.f32 0.0, %v3151
    %3153 = vmatmul.f32.gmra.mxu0 %v3132
    %v3154 = vpop.f32.mrf.mxu0
    %v3155 = vadd.f32 0.0, %v3154
    %3156 = vdwg.mxu0
    %3157 = vrot.lane.b32.xlu0 %v3024, 120
    %v3158 = vpop.permute.xlu0 %3157
    %3159 = vrot.lane.b32.xlu0 %v3027, 120
    %v3160 = vpop.permute.xlu0 %3159
    %3161 = vrot.lane.b32.xlu0 %v3024, 88
    %v3162 = vpop.permute.xlu0 %3161
    %3163 = vrot.lane.b32.xlu0 %v3027, 88
    %v3164 = vpop.permute.xlu0 %3163
    %v3165 = vsel %vm442, %v3158, 0
    %v3167 = vsel %vm442, %v3160, 0
    %v3169 = vsel %vm442, %v3162, 0
    %v3171 = vsel %vm442, %v3164, 0
    %3173 = vmatpush.xpose.msra.mxu0 0.0
    %3174 = vmatpush.xpose.msra.mxu0 0.0
    %3175 = vmatpush.xpose.msra.mxu0 0.0
    %3176 = vmatpush.xpose.msra.mxu0 0.0
    %3177 = vmatpush.xpose.msra.mxu0 0.0
    %3178 = vmatpush.xpose.msra.mxu0 0.0
    %3179 = vmatpush.xpose.msra.mxu0 0.0
    %3180 = vmatpush.xpose.msra.mxu0 0.0
    %3181 = vmatpush.xpose.msra.mxu0 0.0
    %3182 = vmatpush.xpose.msra.mxu0 0.0
    %3183 = vmatpush.xpose.msra.mxu0 0.0
    %3184 = vmatpush.xpose.msra.mxu0 0.0
    %3185 = vmatpush.xpose.msra.mxu0 0.0
    %3186 = vmatpush.xpose.msra.mxu0 0.0
    %3187 = vmatpush.xpose.msra.mxu0 %v3171
    %3188 = vmatpush.xpose.msra.mxu0 %v3169
    %3189 = vmatmul.f32.gmra.mxu0 %v3165
    %v3190 = vpop.f32.mrf.mxu0
    %v3191 = vadd.f32 0.0, %v3190
    %3192 = vmatmul.f32.gmra.mxu0 %v3167
    %v3193 = vpop.f32.mrf.mxu0
    %v3194 = vadd.f32 0.0, %v3193
    %3195 = vdwg.mxu0
    %v3196 = vmul.f32 %v3191, 0.17677669
    %v3197 = vmul.f32 %v3194, 0.17677669
    %v3198 = vsel %vm333, %v3196, -inf
    %v3199 = vsel %vm334, %v3197, -inf
    %v3200 = vsel %vm478, %v3198, -inf
    %3201 = vmax.xlane.f32.xlu0 %v3200
    %v3202 = vpop.xlane.xlu0 %3201
    %v3203 = vsel %vm478, %v3199, -inf
    %3204 = vmax.xlane.f32.xlu0 %v3203
    %v3205 = vpop.xlane.xlu0 %3204
    %v3206 = vsub.f32 %v3198, %v3202
    %v3207 = vsub.f32 %v3199, %v3205
    %v3208 = vmul.f32 %v3206, 1.442695
    %v3209 = vpow.pop %v3208
    %v3210 = vmul.f32 %v3207, 1.442695
    %v3211 = vpow.pop %v3210
    %v3212 = vsel %vm478, %v3209, 0.0
    %3213 = vadd.xlane.f32.xlu0 %v3212
    %v3214 = vpop.xlane.xlu0 %3213
    %v3215 = vsel %vm478, %v3211, 0.0
    %3216 = vadd.xlane.f32.xlu0 %v3215
    %v3217 = vpop.xlane.xlu0 %3216
    %v3218 = vrcp.pop %v3214
    %v3219 = vmul.f32 %v3214, %v3218
    %v3220 = vsub.f32 1.0, %v3219
    %v3221 = vmul.f32 %v3218, %v3220
    %v3222 = vadd.f32 %v3218, %v3221
    %vm3223 = vweird.f32 %v3214
    %vm3224 = vweird.f32 %v3218
    %vm3225 = vmor %vm3223, %vm3224
    %v3226 = vsel %vm3225, %v3218, %v3222
    %v3227 = vand.u32 2147483647, %v3214
    %vm3228 = vcmp.eq.f32.partialorder %v3227, 8.507059e+37
    %v3229 = vand.u32 %v3214, 2147483648
    %v3230 = vor.u32 1.1754944e-38, %v3229
    %v3231 = vsel %vm3228, %v3230, %v3226
    %v3232 = vrcp.pop %v3217
    %v3233 = vmul.f32 %v3217, %v3232
    %v3234 = vsub.f32 1.0, %v3233
    %v3235 = vmul.f32 %v3232, %v3234
    %v3236 = vadd.f32 %v3232, %v3235
    %vm3237 = vweird.f32 %v3217
    %vm3238 = vweird.f32 %v3232
    %vm3239 = vmor %vm3237, %vm3238
    %v3240 = vsel %vm3239, %v3232, %v3236
    %v3241 = vand.u32 2147483647, %v3217
    %vm3242 = vcmp.eq.f32.partialorder %v3241, 8.507059e+37
    %v3243 = vand.u32 %v3217, 2147483648
    %v3244 = vor.u32 1.1754944e-38, %v3243
    %v3245 = vsel %vm3242, %v3244, %v3240
    %v3246 = vmul.f32 %v3209, %v3231
    %v3247 = vmul.f32 %v3211, %v3245
    %3248 = vrot.lane.b32.xlu0 %v3024, 56
    %v3249 = vpop.permute.xlu0 %3248
    %3250 = vrot.lane.b32.xlu0 %v3027, 56
    %v3251 = vpop.permute.xlu0 %3250
    %v3255 = vsel %vm478, %v3246, 0
    %v3258 = vsel %vm478, %v3247, 0
    %3260 = vmatpush.msra.mxu0 0.0
    %3261 = vmatpush.msra.mxu0 0.0
    %3262 = vmatpush.msra.mxu0 0.0
    %3263 = vmatpush.msra.mxu0 0.0
    %3264 = vmatpush.msra.mxu0 0.0
    %3265 = vmatpush.msra.mxu0 0.0
    %3266 = vmatpush.msra.mxu0 0.0
    %3267 = vmatpush.msra.mxu0 0.0
    %3268 = vmatpush.msra.mxu0 0.0
    %3269 = vmatpush.msra.mxu0 0.0
    %3270 = vmatpush.msra.mxu0 0.0
    %3271 = vmatpush.msra.mxu0 0.0
    %3272 = vmatpush.msra.mxu0 0.0
    %3273 = vmatpush.msra.mxu0 0.0
    %3274 = vmatpush.msra.mxu0 %v3251
    %3275 = vmatpush.msra.mxu0 %v3249
    %3276 = vmatmul.f32.gmra.mxu0 %v3255
    %v3277 = vpop.f32.mrf.mxu0
    %v3278 = vadd.f32 0.0, %v3277
    %3279 = vmatmul.f32.gmra.mxu0 %v3258
    %v3280 = vpop.f32.mrf.mxu0
    %v3281 = vadd.f32 0.0, %v3280
    %3282 = vdwg.mxu0
    %v3284 = vsel %vm442, %v3278, 0
    %v3287 = vsel %vm442, %v3281, 0
    %3289 = vmatpush.msra.mxu0 0.0
    %3290 = vmatpush.msra.mxu0 0.0
    %3291 = vmatpush.msra.mxu0 0.0
    %3292 = vmatpush.msra.mxu0 0.0
    %3293 = vmatpush.msra.mxu0 0.0
    %3294 = vmatpush.msra.mxu0 0.0
    %3295 = vmatpush.msra.mxu0 0.0
    %3296 = vmatpush.msra.mxu0 0.0
    %3297 = vmatpush.msra.mxu0 0.0
    %3298 = vmatpush.msra.mxu0 0.0
    %3299 = vmatpush.msra.mxu0 0.0
    %3300 = vmatpush.msra.mxu0 0.0
    %3301 = vmatpush.msra.mxu0 0.0
    %3302 = vmatpush.msra.mxu0 0.0
    %3303 = vmatpush.msra.mxu0 0.0
    %3304 = vmatpush.msra.mxu0 %v3030
    %3305 = vmatmul.f32.gmra.mxu0 %v3284
    %v3306 = vpop.f32.mrf.mxu0
    %v3307 = vadd.f32 0.0, %v3306
    %3308 = vmatmul.f32.gmra.mxu0 %v3287
    %v3309 = vpop.f32.mrf.mxu0
    %v3310 = vadd.f32 0.0, %v3309
    %3311 = vdwg.mxu0
    %v3313 = vsel %vm442, %v3152, 0
    %v3316 = vsel %vm442, %v3155, 0
    %3318 = vmatpush.msra.mxu0 0.0
    %3319 = vmatpush.msra.mxu0 0.0
    %3320 = vmatpush.msra.mxu0 0.0
    %3321 = vmatpush.msra.mxu0 0.0
    %3322 = vmatpush.msra.mxu0 0.0
    %3323 = vmatpush.msra.mxu0 0.0
    %3324 = vmatpush.msra.mxu0 0.0
    %3325 = vmatpush.msra.mxu0 0.0
    %3326 = vmatpush.msra.mxu0 0.0
    %3327 = vmatpush.msra.mxu0 0.0
    %3328 = vmatpush.msra.mxu0 0.0
    %3329 = vmatpush.msra.mxu0 0.0
    %3330 = vmatpush.msra.mxu0 0.0
    %3331 = vmatpush.msra.mxu0 0.0
    %3332 = vmatpush.msra.mxu0 0.0
    %3333 = vmatpush.msra.mxu0 %v3029
    %3334 = vmatmul.f32.gmra.mxu0 %v3313
    %v3335 = vpop.f32.mrf.mxu0
    %v3336 = vadd.f32 %v3307, %v3335
    %3337 = vmatmul.f32.gmra.mxu0 %v3316
    %v3338 = vpop.f32.mrf.mxu0
    %v3339 = vadd.f32 %v3310, %v3338
    %3340 = vdwg.mxu0
    %3341 = vrot.lane.b32.xlu0 %v3024, 112
    %v3342 = vpop.permute.xlu0 %3341
    %3343 = vrot.lane.b32.xlu0 %v3027, 112
    %v3344 = vpop.permute.xlu0 %3343
    %3345 = vrot.lane.b32.xlu0 %v3024, 80
    %v3346 = vpop.permute.xlu0 %3345
    %3347 = vrot.lane.b32.xlu0 %v3027, 80
    %v3348 = vpop.permute.xlu0 %3347
    %v3349 = vsel %vm442, %v3342, 0
    %v3351 = vsel %vm442, %v3344, 0
    %v3353 = vsel %vm442, %v3346, 0
    %v3355 = vsel %vm442, %v3348, 0
    %3357 = vmatpush.xpose.msra.mxu0 0.0
    %3358 = vmatpush.xpose.msra.mxu0 0.0
    %3359 = vmatpush.xpose.msra.mxu0 0.0
    %3360 = vmatpush.xpose.msra.mxu0 0.0
    %3361 = vmatpush.xpose.msra.mxu0 0.0
    %3362 = vmatpush.xpose.msra.mxu0 0.0
    %3363 = vmatpush.xpose.msra.mxu0 0.0
    %3364 = vmatpush.xpose.msra.mxu0 0.0
    %3365 = vmatpush.xpose.msra.mxu0 0.0
    %3366 = vmatpush.xpose.msra.mxu0 0.0
    %3367 = vmatpush.xpose.msra.mxu0 0.0
    %3368 = vmatpush.xpose.msra.mxu0 0.0
    %3369 = vmatpush.xpose.msra.mxu0 0.0
    %3370 = vmatpush.xpose.msra.mxu0 0.0
    %3371 = vmatpush.xpose.msra.mxu0 %v3355
    %3372 = vmatpush.xpose.msra.mxu0 %v3353
    %3373 = vmatmul.f32.gmra.mxu0 %v3349
    %v3374 = vpop.f32.mrf.mxu0
    %v3375 = vadd.f32 0.0, %v3374
    %3376 = vmatmul.f32.gmra.mxu0 %v3351
    %v3377 = vpop.f32.mrf.mxu0
    %v3378 = vadd.f32 0.0, %v3377
    %3379 = vdwg.mxu0
    %v3380 = vmul.f32 %v3375, 0.17677669
    %v3381 = vmul.f32 %v3378, 0.17677669
    %v3382 = vsel %vm333, %v3380, -inf
    %v3383 = vsel %vm334, %v3381, -inf
    %v3384 = vsel %vm478, %v3382, -inf
    %3385 = vmax.xlane.f32.xlu0 %v3384
    %v3386 = vpop.xlane.xlu0 %3385
    %v3387 = vsel %vm478, %v3383, -inf
    %3388 = vmax.xlane.f32.xlu0 %v3387
    %v3389 = vpop.xlane.xlu0 %3388
    %v3390 = vsub.f32 %v3382, %v3386
    %v3391 = vsub.f32 %v3383, %v3389
    %v3392 = vmul.f32 %v3390, 1.442695
    %v3393 = vpow.pop %v3392
    %v3394 = vmul.f32 %v3391, 1.442695
    %v3395 = vpow.pop %v3394
    %v3396 = vsel %vm478, %v3393, 0.0
    %3397 = vadd.xlane.f32.xlu0 %v3396
    %v3398 = vpop.xlane.xlu0 %3397
    %v3399 = vsel %vm478, %v3395, 0.0
    %3400 = vadd.xlane.f32.xlu0 %v3399
    %v3401 = vpop.xlane.xlu0 %3400
    %v3402 = vrcp.pop %v3398
    %v3403 = vmul.f32 %v3398, %v3402
    %v3404 = vsub.f32 1.0, %v3403
    %v3405 = vmul.f32 %v3402, %v3404
    %v3406 = vadd.f32 %v3402, %v3405
    %vm3407 = vweird.f32 %v3398
    %vm3408 = vweird.f32 %v3402
    %vm3409 = vmor %vm3407, %vm3408
    %v3410 = vsel %vm3409, %v3402, %v3406
    %v3411 = vand.u32 2147483647, %v3398
    %vm3412 = vcmp.eq.f32.partialorder %v3411, 8.507059e+37
    %v3413 = vand.u32 %v3398, 2147483648
    %v3414 = vor.u32 1.1754944e-38, %v3413
    %v3415 = vsel %vm3412, %v3414, %v3410
    %v3416 = vrcp.pop %v3401
    %v3417 = vmul.f32 %v3401, %v3416
    %v3418 = vsub.f32 1.0, %v3417
    %v3419 = vmul.f32 %v3416, %v3418
    %v3420 = vadd.f32 %v3416, %v3419
    %vm3421 = vweird.f32 %v3401
    %vm3422 = vweird.f32 %v3416
    %vm3423 = vmor %vm3421, %vm3422
    %v3424 = vsel %vm3423, %v3416, %v3420
    %v3425 = vand.u32 2147483647, %v3401
    %vm3426 = vcmp.eq.f32.partialorder %v3425, 8.507059e+37
    %v3427 = vand.u32 %v3401, 2147483648
    %v3428 = vor.u32 1.1754944e-38, %v3427
    %v3429 = vsel %vm3426, %v3428, %v3424
    %v3430 = vmul.f32 %v3393, %v3415
    %v3431 = vmul.f32 %v3395, %v3429
    %3432 = vrot.lane.b32.xlu0 %v3024, 48
    %v3433 = vpop.permute.xlu0 %3432
    %3434 = vrot.lane.b32.xlu0 %v3027, 48
    %v3435 = vpop.permute.xlu0 %3434
    %v3439 = vsel %vm478, %v3430, 0
    %v3442 = vsel %vm478, %v3431, 0
    %3444 = vmatpush.msra.mxu0 0.0
    %3445 = vmatpush.msra.mxu0 0.0
    %3446 = vmatpush.msra.mxu0 0.0
    %3447 = vmatpush.msra.mxu0 0.0
    %3448 = vmatpush.msra.mxu0 0.0
    %3449 = vmatpush.msra.mxu0 0.0
    %3450 = vmatpush.msra.mxu0 0.0
    %3451 = vmatpush.msra.mxu0 0.0
    %3452 = vmatpush.msra.mxu0 0.0
    %3453 = vmatpush.msra.mxu0 0.0
    %3454 = vmatpush.msra.mxu0 0.0
    %3455 = vmatpush.msra.mxu0 0.0
    %3456 = vmatpush.msra.mxu0 0.0
    %3457 = vmatpush.msra.mxu0 0.0
    %3458 = vmatpush.msra.mxu0 %v3435
    %3459 = vmatpush.msra.mxu0 %v3433
    %3460 = vmatmul.f32.gmra.mxu0 %v3439
    %v3461 = vpop.f32.mrf.mxu0
    %v3462 = vadd.f32 0.0, %v3461
    %3463 = vmatmul.f32.gmra.mxu0 %v3442
    %v3464 = vpop.f32.mrf.mxu0
    %v3465 = vadd.f32 0.0, %v3464
    %3466 = vdwg.mxu0
    %v3468 = vsel %vm442, %v3462, 0
    %v3471 = vsel %vm442, %v3465, 0
    %3473 = vmatpush.msra.mxu0 0.0
    %3474 = vmatpush.msra.mxu0 0.0
    %3475 = vmatpush.msra.mxu0 0.0
    %3476 = vmatpush.msra.mxu0 0.0
    %3477 = vmatpush.msra.mxu0 0.0
    %3478 = vmatpush.msra.mxu0 0.0
    %3479 = vmatpush.msra.mxu0 0.0
    %3480 = vmatpush.msra.mxu0 0.0
    %3481 = vmatpush.msra.mxu0 0.0
    %3482 = vmatpush.msra.mxu0 0.0
    %3483 = vmatpush.msra.mxu0 0.0
    %3484 = vmatpush.msra.mxu0 0.0
    %3485 = vmatpush.msra.mxu0 0.0
    %3486 = vmatpush.msra.mxu0 0.0
    %3487 = vmatpush.msra.mxu0 0.0
    %3488 = vmatpush.msra.mxu0 %v3031
    %3489 = vmatmul.f32.gmra.mxu0 %v3468
    %v3490 = vpop.f32.mrf.mxu0
    %v3491 = vadd.f32 0.0, %v3490
    %3492 = vmatmul.f32.gmra.mxu0 %v3471
    %v3493 = vpop.f32.mrf.mxu0
    %v3494 = vadd.f32 0.0, %v3493
    %3495 = vdwg.mxu0
    %v3496 = vadd.f32 %v3336, %v3491
    %v3497 = vadd.f32 %v3339, %v3494
    %3498 = vrot.lane.b32.xlu0 %v3024, 104
    %v3499 = vpop.permute.xlu0 %3498
    %3500 = vrot.lane.b32.xlu0 %v3027, 104
    %v3501 = vpop.permute.xlu0 %3500
    %3502 = vrot.lane.b32.xlu0 %v3024, 72
    %v3503 = vpop.permute.xlu0 %3502
    %3504 = vrot.lane.b32.xlu0 %v3027, 72
    %v3505 = vpop.permute.xlu0 %3504
    %v3506 = vsel %vm442, %v3499, 0
    %v3508 = vsel %vm442, %v3501, 0
    %v3510 = vsel %vm442, %v3503, 0
    %v3512 = vsel %vm442, %v3505, 0
    %3514 = vmatpush.xpose.msra.mxu0 0.0
    %3515 = vmatpush.xpose.msra.mxu0 0.0
    %3516 = vmatpush.xpose.msra.mxu0 0.0
    %3517 = vmatpush.xpose.msra.mxu0 0.0
    %3518 = vmatpush.xpose.msra.mxu0 0.0
    %3519 = vmatpush.xpose.msra.mxu0 0.0
    %3520 = vmatpush.xpose.msra.mxu0 0.0
    %3521 = vmatpush.xpose.msra.mxu0 0.0
    %3522 = vmatpush.xpose.msra.mxu0 0.0
    %3523 = vmatpush.xpose.msra.mxu0 0.0
    %3524 = vmatpush.xpose.msra.mxu0 0.0
    %3525 = vmatpush.xpose.msra.mxu0 0.0
    %3526 = vmatpush.xpose.msra.mxu0 0.0
    %3527 = vmatpush.xpose.msra.mxu0 0.0
    %3528 = vmatpush.xpose.msra.mxu0 %v3512
    %3529 = vmatpush.xpose.msra.mxu0 %v3510
    %3530 = vmatmul.f32.gmra.mxu0 %v3506
    %v3531 = vpop.f32.mrf.mxu0
    %v3532 = vadd.f32 0.0, %v3531
    %3533 = vmatmul.f32.gmra.mxu0 %v3508
    %v3534 = vpop.f32.mrf.mxu0
    %v3535 = vadd.f32 0.0, %v3534
    %3536 = vdwg.mxu0
    %v3537 = vmul.f32 %v3532, 0.17677669
    %v3538 = vmul.f32 %v3535, 0.17677669
    %v3539 = vsel %vm333, %v3537, -inf
    %v3540 = vsel %vm334, %v3538, -inf
    %v3541 = vsel %vm478, %v3539, -inf
    %3542 = vmax.xlane.f32.xlu0 %v3541
    %v3543 = vpop.xlane.xlu0 %3542
    %v3544 = vsel %vm478, %v3540, -inf
    %3545 = vmax.xlane.f32.xlu0 %v3544
    %v3546 = vpop.xlane.xlu0 %3545
    %v3547 = vsub.f32 %v3539, %v3543
    %v3548 = vsub.f32 %v3540, %v3546
    %v3549 = vmul.f32 %v3547, 1.442695
    %v3550 = vpow.pop %v3549
    %v3551 = vmul.f32 %v3548, 1.442695
    %v3552 = vpow.pop %v3551
    %v3553 = vsel %vm478, %v3550, 0.0
    %3554 = vadd.xlane.f32.xlu0 %v3553
    %v3555 = vpop.xlane.xlu0 %3554
    %v3556 = vsel %vm478, %v3552, 0.0
    %3557 = vadd.xlane.f32.xlu0 %v3556
    %v3558 = vpop.xlane.xlu0 %3557
    %v3559 = vrcp.pop %v3555
    %v3560 = vmul.f32 %v3555, %v3559
    %v3561 = vsub.f32 1.0, %v3560
    %v3562 = vmul.f32 %v3559, %v3561
    %v3563 = vadd.f32 %v3559, %v3562
    %vm3564 = vweird.f32 %v3555
    %vm3565 = vweird.f32 %v3559
    %vm3566 = vmor %vm3564, %vm3565
    %v3567 = vsel %vm3566, %v3559, %v3563
    %v3568 = vand.u32 2147483647, %v3555
    %vm3569 = vcmp.eq.f32.partialorder %v3568, 8.507059e+37
    %v3570 = vand.u32 %v3555, 2147483648
    %v3571 = vor.u32 1.1754944e-38, %v3570
    %v3572 = vsel %vm3569, %v3571, %v3567
    %v3573 = vrcp.pop %v3558
    %v3574 = vmul.f32 %v3558, %v3573
    %v3575 = vsub.f32 1.0, %v3574
    %v3576 = vmul.f32 %v3573, %v3575
    %v3577 = vadd.f32 %v3573, %v3576
    %vm3578 = vweird.f32 %v3558
    %vm3579 = vweird.f32 %v3573
    %vm3580 = vmor %vm3578, %vm3579
    %v3581 = vsel %vm3580, %v3573, %v3577
    %v3582 = vand.u32 2147483647, %v3558
    %vm3583 = vcmp.eq.f32.partialorder %v3582, 8.507059e+37
    %v3584 = vand.u32 %v3558, 2147483648
    %v3585 = vor.u32 1.1754944e-38, %v3584
    %v3586 = vsel %vm3583, %v3585, %v3581
    %v3587 = vmul.f32 %v3550, %v3572
    %v3588 = vmul.f32 %v3552, %v3586
    %3589 = vrot.lane.b32.xlu0 %v3024, 40
    %v3590 = vpop.permute.xlu0 %3589
    %3591 = vrot.lane.b32.xlu0 %v3027, 40
    %v3592 = vpop.permute.xlu0 %3591
    %v3596 = vsel %vm478, %v3587, 0
    %v3599 = vsel %vm478, %v3588, 0
    %3601 = vmatpush.msra.mxu0 0.0
    %3602 = vmatpush.msra.mxu0 0.0
    %3603 = vmatpush.msra.mxu0 0.0
    %3604 = vmatpush.msra.mxu0 0.0
    %3605 = vmatpush.msra.mxu0 0.0
    %3606 = vmatpush.msra.mxu0 0.0
    %3607 = vmatpush.msra.mxu0 0.0
    %3608 = vmatpush.msra.mxu0 0.0
    %3609 = vmatpush.msra.mxu0 0.0
    %3610 = vmatpush.msra.mxu0 0.0
    %3611 = vmatpush.msra.mxu0 0.0
    %3612 = vmatpush.msra.mxu0 0.0
    %3613 = vmatpush.msra.mxu0 0.0
    %3614 = vmatpush.msra.mxu0 0.0
    %3615 = vmatpush.msra.mxu0 %v3592
    %3616 = vmatpush.msra.mxu0 %v3590
    %3617 = vmatmul.f32.gmra.mxu0 %v3596
    %v3618 = vpop.f32.mrf.mxu0
    %v3619 = vadd.f32 0.0, %v3618
    %3620 = vmatmul.f32.gmra.mxu0 %v3599
    %v3621 = vpop.f32.mrf.mxu0
    %v3622 = vadd.f32 0.0, %v3621
    %3623 = vdwg.mxu0
    %v3625 = vsel %vm442, %v3619, 0
    %v3628 = vsel %vm442, %v3622, 0
    %3630 = vmatpush.msra.mxu0 0.0
    %3631 = vmatpush.msra.mxu0 0.0
    %3632 = vmatpush.msra.mxu0 0.0
    %3633 = vmatpush.msra.mxu0 0.0
    %3634 = vmatpush.msra.mxu0 0.0
    %3635 = vmatpush.msra.mxu0 0.0
    %3636 = vmatpush.msra.mxu0 0.0
    %3637 = vmatpush.msra.mxu0 0.0
    %3638 = vmatpush.msra.mxu0 0.0
    %3639 = vmatpush.msra.mxu0 0.0
    %3640 = vmatpush.msra.mxu0 0.0
    %3641 = vmatpush.msra.mxu0 0.0
    %3642 = vmatpush.msra.mxu0 0.0
    %3643 = vmatpush.msra.mxu0 0.0
    %3644 = vmatpush.msra.mxu0 0.0
    %3645 = vmatpush.msra.mxu0 %v3032
    %3646 = vmatmul.f32.gmra.mxu0 %v3625
    %v3647 = vpop.f32.mrf.mxu0
    %v3648 = vadd.f32 0.0, %v3647
    %3649 = vmatmul.f32.gmra.mxu0 %v3628
    %v3650 = vpop.f32.mrf.mxu0
    %v3651 = vadd.f32 0.0, %v3650
    %3652 = vdwg.mxu0
    %v3653 = vadd.f32 %v3496, %v3648
    %v3654 = vadd.f32 %v3497, %v3651
    %v3655 = vadd.f32 %v2938, %v3653
    %v3656 = vadd.f32 %v2939, %v3654
    %v3657 = vld [vmem:[#allocation5] sm:$0x1]
    %v3659 = vperm.slane %v3657, 0
    %v3661 = vadd.f32 %v3655, %v3659
    %v3662 = vadd.f32 %v3656, %v3659
    %v3663 = vld [vmem:[#allocation7] sm:$0x1]
    %v3664 = vld [vmem:[#allocation8] sm:$0x1]
    %v3665 = vsel %vm337, %v3661, 0.0
    %3666 = vadd.xlane.f32.xlu0 %v3665
    %v3667 = vpop.xlane.xlu0 %3666
    %v3668 = vsel %vm337, %v3662, 0.0
    %3669 = vadd.xlane.f32.xlu0 %v3668
    %v3670 = vpop.xlane.xlu0 %3669
    %v3671 = vmul.f32 %v3667, %v350
    %v3672 = vmul.f32 %v3670, %v350
    %v3673 = vsub.f32 %v3661, %v3671
    %v3674 = vsub.f32 %v3662, %v3672
    %v3675 = vmul.f32 %v3673, %v3673
    %v3676 = vmul.f32 %v3674, %v3674
    %v3677 = vsel %vm337, %v3675, 0.0
    %3678 = vadd.xlane.f32.xlu0 %v3677
    %v3679 = vpop.xlane.xlu0 %3678
    %v3680 = vsel %vm337, %v3676, 0.0
    %3681 = vadd.xlane.f32.xlu0 %v3680
    %v3682 = vpop.xlane.xlu0 %3681
    %v3683 = vmul.f32 %v3679, %v350
    %v3684 = vmul.f32 %v3682, %v350
    %v3685 = vadd.f32 %v3683, 1e-05
    %v3686 = vadd.f32 %v3684, 1e-05
    %v3687 = vrsqrt.pop %v3685
    %v3688 = vmul.f32 %v3687, %v3685
    %v3689 = vmul.f32 %v3688, %v3687
    %v3690 = vmul.f32 0.5, %v3689
    %v3691 = vsub.f32 1.5, %v3690
    %v3692 = vmul.f32 %v3687, %v3691
    %vm3693 = vweird.f32 %v3685
    %vm3694 = vweird.f32 %v3687
    %vm3695 = vmor %vm3693, %vm3694
    %v3696 = vsel %vm3695, %v3687, %v3692
    %v3697 = vrsqrt.pop %v3686
    %v3698 = vmul.f32 %v3697, %v3686
    %v3699 = vmul.f32 %v3698, %v3697
    %v3700 = vmul.f32 0.5, %v3699
    %v3701 = vsub.f32 1.5, %v3700
    %v3702 = vmul.f32 %v3697, %v3701
    %vm3703 = vweird.f32 %v3686
    %vm3704 = vweird.f32 %v3697
    %vm3705 = vmor %vm3703, %vm3704
    %v3706 = vsel %vm3705, %v3697, %v3702
    %v3707 = vmul.f32 %v3673, %v3696
    %v3708 = vmul.f32 %v3674, %v3706
    %v3710 = vperm.slane %v3663, 0
    %v3712 = vmul.f32 %v3707, %v3710
    %v3713 = vmul.f32 %v3708, %v3710
    %v3715 = vperm.slane %v3664, 0
    %v3717 = vadd.f32 %v3712, %v3715
    %v3718 = vadd.f32 %v3713, %v3715
    %v3719 = vld [vmem:[%s85] sm:$0xff]
    %v3720 = vld [vmem:[%s85 + $0x8] sm:$0xff]
    %v3721 = vld [vmem:[%s85 + $0x10] sm:$0xff]
    %v3722 = vld [vmem:[%s85 + $0x18] sm:$0xff]
    %v3723 = vld [vmem:[#allocation10] sm:$0x1]
    %v3725 = vperm.slane %v3723, 0
    %v3728 = vsel %vm337, %v3717, 0
    %v3731 = vsel %vm337, %v3718, 0
    %3733 = vmatpush.msra.mxu0 0.0
    %3734 = vmatpush.msra.mxu0 0.0
    %3735 = vmatpush.msra.mxu0 0.0
    %3736 = vmatpush.msra.mxu0 0.0
    %3737 = vmatpush.msra.mxu0 0.0
    %3738 = vmatpush.msra.mxu0 0.0
    %3739 = vmatpush.msra.mxu0 0.0
    %3740 = vmatpush.msra.mxu0 0.0
    %3741 = vmatpush.msra.mxu0 0.0
    %3742 = vmatpush.msra.mxu0 0.0
    %3743 = vmatpush.msra.mxu0 0.0
    %3744 = vmatpush.msra.mxu0 0.0
    %3745 = vmatpush.msra.mxu0 %v3722
    %3746 = vmatpush.msra.mxu0 %v3721
    %3747 = vmatpush.msra.mxu0 %v3720
    %3748 = vmatpush.msra.mxu0 %v3719
    %3749 = vmatmul.f32.gmra.mxu0 %v3728
    %v3750 = vpop.f32.mrf.mxu0
    %v3751 = vadd.f32 %v3725, %v3750
    %3752 = vmatmul.f32.gmra.mxu0 %v3731
    %v3753 = vpop.f32.mrf.mxu0
    %v3754 = vadd.f32 %v3725, %v3753
    %3755 = vdwg.mxu0
    %v3756 = vmax.f32 %v3751, 0.0
    %v3757 = vmax.f32 %v3754, 0.0
    %v3758 = vld [vmem:[%s89] sm:$0xff]
    %v3759 = vld [vmem:[%s89 + $0x8] sm:$0xff]
    %v3760 = vld [vmem:[%s89 + $0x10] sm:$0xff]
    %v3761 = vld [vmem:[%s89 + $0x18] sm:$0xff]
    %v3762 = vld [vmem:[%s89 + $0x20] sm:$0xff]
    %v3763 = vld [vmem:[%s89 + $0x28] sm:$0xff]
    %v3764 = vld [vmem:[%s89 + $0x30] sm:$0xff]
    %v3765 = vld [vmem:[%s89 + $0x38] sm:$0xff]
    %v3766 = vld [vmem:[%s89 + $0x40] sm:$0xff]
    %v3767 = vld [vmem:[%s89 + $0x48] sm:$0xff]
    %v3768 = vld [vmem:[%s89 + $0x50] sm:$0xff]
    %v3769 = vld [vmem:[%s89 + $0x58] sm:$0xff]
    %v3770 = vld [vmem:[%s89 + $0x60] sm:$0xff]
    %v3771 = vld [vmem:[%s89 + $0x68] sm:$0xff]
    %v3772 = vld [vmem:[%s89 + $0x70] sm:$0xff]
    %v3773 = vld [vmem:[%s89 + $0x78] sm:$0xff]
    %3774 = vmatpush.msra.mxu0 %v3773
    %3775 = vmatpush.msra.mxu0 %v3772
    %3776 = vmatpush.msra.mxu0 %v3771
    %3777 = vmatpush.msra.mxu0 %v3770
    %3778 = vmatpush.msra.mxu0 %v3769
    %3779 = vmatpush.msra.mxu0 %v3768
    %3780 = vmatpush.msra.mxu0 %v3767
    %3781 = vmatpush.msra.mxu0 %v3766
    %3782 = vmatpush.msra.mxu0 %v3765
    %3783 = vmatpush.msra.mxu0 %v3764
    %3784 = vmatpush.msra.mxu0 %v3763
    %3785 = vmatpush.msra.mxu0 %v3762
    %3786 = vmatpush.msra.mxu0 %v3761
    %3787 = vmatpush.msra.mxu0 %v3760
    %3788 = vmatpush.msra.mxu0 %v3759
    %3789 = vmatpush.msra.mxu0 %v3758
    %3790 = vmatmul.f32.gmra.mxu0 %v3756
    %v3791 = vpop.f32.mrf.mxu0
    %v3792 = vadd.f32 0.0, %v3791
    %3793 = vmatmul.f32.gmra.mxu0 %v3757
    %v3794 = vpop.f32.mrf.mxu0
    %v3795 = vadd.f32 0.0, %v3794
    %3796 = vdwg.mxu0
    %v3797 = vadd.f32 %v3661, %v3792
    %v3798 = vadd.f32 %v3662, %v3795
    %v3799 = vld [vmem:[#allocation11] sm:$0x1]
    %v3801 = vperm.slane %v3799, 0
    %v3803 = vadd.f32 %v3797, %v3801
    %v3804 = vadd.f32 %v3798, %v3801
    %v3805 = vld [vmem:[#allocation13] sm:$0x1]
    %v3806 = vld [vmem:[#allocation14] sm:$0x1]
    %v3807 = vsel %vm337, %v3803, 0.0
    %3808 = vadd.xlane.f32.xlu0 %v3807
    %v3809 = vpop.xlane.xlu0 %3808
    %v3810 = vsel %vm337, %v3804, 0.0
    %3811 = vadd.xlane.f32.xlu0 %v3810
    %v3812 = vpop.xlane.xlu0 %3811
    %v3813 = vmul.f32 %v3809, %v350
    %v3814 = vmul.f32 %v3812, %v350
    %v3815 = vsub.f32 %v3803, %v3813
    %v3816 = vsub.f32 %v3804, %v3814
    %v3817 = vmul.f32 %v3815, %v3815
    %v3818 = vmul.f32 %v3816, %v3816
    %v3819 = vsel %vm337, %v3817, 0.0
    %3820 = vadd.xlane.f32.xlu0 %v3819
    %v3821 = vpop.xlane.xlu0 %3820
    %v3822 = vsel %vm337, %v3818, 0.0
    %3823 = vadd.xlane.f32.xlu0 %v3822
    %v3824 = vpop.xlane.xlu0 %3823
    %v3825 = vmul.f32 %v3821, %v350
    %v3826 = vmul.f32 %v3824, %v350
    %v3827 = vadd.f32 %v3825, 1e-05
    %v3828 = vadd.f32 %v3826, 1e-05
    %v3829 = vrsqrt.pop %v3827
    %v3830 = vmul.f32 %v3829, %v3827
    %v3831 = vmul.f32 %v3830, %v3829
    %v3832 = vmul.f32 0.5, %v3831
    %v3833 = vsub.f32 1.5, %v3832
    %v3834 = vmul.f32 %v3829, %v3833
    %vm3835 = vweird.f32 %v3827
    %vm3836 = vweird.f32 %v3829
    %vm3837 = vmor %vm3835, %vm3836
    %v3838 = vsel %vm3837, %v3829, %v3834
    %v3839 = vrsqrt.pop %v3828
    %v3840 = vmul.f32 %v3839, %v3828
    %v3841 = vmul.f32 %v3840, %v3839
    %v3842 = vmul.f32 0.5, %v3841
    %v3843 = vsub.f32 1.5, %v3842
    %v3844 = vmul.f32 %v3839, %v3843
    %vm3845 = vweird.f32 %v3828
    %vm3846 = vweird.f32 %v3839
    %vm3847 = vmor %vm3845, %vm3846
    %v3848 = vsel %vm3847, %v3839, %v3844
    %v3849 = vmul.f32 %v3815, %v3838
    %v3850 = vmul.f32 %v3816, %v3848
    %v3852 = vperm.slane %v3805, 0
    %v3854 = vmul.f32 %v3849, %v3852
    %v3855 = vmul.f32 %v3850, %v3852
    %v3857 = vperm.slane %v3806, 0
    %v3859 = vadd.f32 %v3854, %v3857
    %v3860 = vadd.f32 %v3855, %v3857
    %v3861 = vld [vmem:[%s97] sm:$0xff]
    %v3862 = vld [vmem:[%s97 + $0x8] sm:$0xff]
    %v3863 = vld [vmem:[%s97 + $0x10] sm:$0xff]
    %v3864 = vld [vmem:[%s97 + $0x18] sm:$0xff]
    %v3865 = vld [vmem:[#allocation16] sm:$0x1]
    %v3867 = vperm.slane %v3865, 0
    %v3870 = vsel %vm337, %v3859, 0
    %v3873 = vsel %vm337, %v3860, 0
    %3875 = vmatpush.msra.mxu0 0.0
    %3876 = vmatpush.msra.mxu0 0.0
    %3877 = vmatpush.msra.mxu0 0.0
    %3878 = vmatpush.msra.mxu0 0.0
    %3879 = vmatpush.msra.mxu0 0.0
    %3880 = vmatpush.msra.mxu0 0.0
    %3881 = vmatpush.msra.mxu0 0.0
    %3882 = vmatpush.msra.mxu0 0.0
    %3883 = vmatpush.msra.mxu0 0.0
    %3884 = vmatpush.msra.mxu0 0.0
    %3885 = vmatpush.msra.mxu0 0.0
    %3886 = vmatpush.msra.mxu0 0.0
    %3887 = vmatpush.msra.mxu0 %v3864
    %3888 = vmatpush.msra.mxu0 %v3863
    %3889 = vmatpush.msra.mxu0 %v3862
    %3890 = vmatpush.msra.mxu0 %v3861
    %3891 = vmatmul.f32.gmra.mxu0 %v3870
    %v3892 = vpop.f32.mrf.mxu0
    %v3893 = vadd.f32 %v3867, %v3892
    %3894 = vmatmul.f32.gmra.mxu0 %v3873
    %v3895 = vpop.f32.mrf.mxu0
    %v3896 = vadd.f32 %v3867, %v3895
    %3897 = vdwg.mxu0
    %3898 = vst [vmem:[#allocation17] sm:$0xff] %v3893
    %3899 = vst [vmem:[#allocation17 + $0x8] sm:$0xff] %v3896
    // Predicated region
    $region238: #{tpu_custom_call.1} parent=1 // pred_check
      _
    $region239: #{tpu_custom_call.1} parent=1 // pred_check_branch
      %3901 = sbr.rel (0) target = $region241
    $region240: #{tpu_custom_call.1} parent=1 // pred_region
      %3903 = vsyncadd [#allocation4], 0
      %s3904 = sshll.u32 [#allocation17], 4
      %s3905 = int_to_ptr.vmem [resolvable:$true] %s3904
      %s3906 = sshll.u32 %s101, 4
      %s3907 = int_to_ptr.hbm [resolvable:$true] %s3906
      %3912 = dma.vmem_to_hbm [thread:$0]  %s3905, 256, %s3907, [#allocation4], 128, 128, 8
    $region241: #{tpu_custom_call.1} parent=1 // pred_fallthru
      _
    // Predicated region
    $region242: #{tpu_custom_call.1} parent=1 // pred_check
      _
    $region243: #{tpu_custom_call.1} parent=1 // pred_check_branch
      %3914 = sbr.rel (0) target = $region245
    $region244: #{tpu_custom_call.1} parent=1 // pred_region
      %3916 = dma.done [#allocation4], 256
    $region245: #{tpu_custom_call.1} parent=1 // pred_fallthru
      _
    %3917 = vsyncpa [#allocation3], 1
    %3918 = vsyncpa [#allocation6], 1
    %3919 = vsyncpa [#allocation9], 1
    %3920 = vsyncpa [#allocation12], 1
    %3921 = vsyncpa [#allocation15], 1
    %3922 = vsyncpa [#allocation4], 1

</llo_original>
